<compile_context>
chip_gen: v5e
topology: v5e:2x2
jax: 0.10.0
libtpu: 0.0.40
codegen_flags: <defaults>
</compile_context>

<pallas_src>
import functools

import jax
import jax.numpy as jnp
from jax.experimental import pallas as pl
from jax.experimental.pallas import tpu as pltpu


def _round_up(x, m):
    return (x + m - 1) // m * m


# ----------------------------------------------------------------------------
# Fused kernel: expand 1x1 -> depthwise 3x3 -> project 1x1 (+ residual)
# ----------------------------------------------------------------------------
def _fused_ir_kernel(*refs, expand, stride, th, h, w, wo, wp2, wph, use_res,
                     row_chunk, zero_bottom):
    if expand:
        (x_ref, w1_ref, b1_ref, wd_ref, b2_ref, w3_ref, b3_ref,
         o_ref, hid_ref) = refs
    else:
        (x_ref, wd_ref, b2_ref, w3_ref, b3_ref, o_ref, hid_ref) = refs
        w1_ref = b1_ref = None

    r, _, chp = hid_ref.shape                 # (halo rows, padded W, C_hidden)
    cout_p = o_ref.shape[-1]
    j = pl.program_id(1)
    # Top (spatially padded) input row of this tile's halo window.
    row0 = pl.multiple_of(j * (th * stride), th * stride)

    # ---- stage 1: 1x1 expand (bf16 MXU) + bias + ReLU6 -> bf16 VMEM scratch --
    for h0 in range(0, r, row_chunk):
        hn = min(row_chunk, r - h0)
        xs = x_ref[0, pl.ds(row0 + h0, hn), :, :]          # (hn, wp2, cin_p)
        if expand:
            xin = xs.reshape(hn * wp2, xs.shape[-1]).astype(jnp.bfloat16)
            hz = jnp.dot(xin, w1_ref[...], preferred_element_type=jnp.float32)
            hz = jnp.clip(hz + b1_ref[0], 0.0, 6.0).reshape(hn, wp2, chp)
            hid_ref[h0:h0 + hn, :, :] = hz.astype(hid_ref.dtype)
        else:
            hid_ref[h0:h0 + hn, :, :] = xs.astype(hid_ref.dtype)

    # The expand also ran over the spatial zero-padding, where ReLU6(bias) is
    # wrong.  Only the border positions the depthwise actually reads need
    # fixing: two columns (always) and the top/bottom padded rows (first/last
    # tile only) -> tiny writes instead of a full-tensor mask.
    if expand:
        zcol = jnp.zeros((r, 1, chp), hid_ref.dtype)
        zrow = jnp.zeros((1, wp2, chp), hid_ref.dtype)
        if stride == 1:
            hid_ref[:, 0:1, :] = zcol                      # left pad column
            hid_ref[:, w + 1:w + 2, :] = zcol              # right pad column
        else:
            hid_ref[:, 0:1, :] = zcol                      # even plane col 0
            if w % 2 == 1:
                hid_ref[:, wo:wo + 1, :] = zcol            # even plane col wo

        @pl.when(j == 0)
        def _():
            hid_ref[0:1, :, :] = zrow                      # top pad row

        if zero_bottom:
            @pl.when(j == pl.num_programs(1) - 1)
            def _():
                hid_ref[r - 1:r, :, :] = zrow              # bottom pad row

    # ---- stage 2+3: 3x3 depthwise + ReLU6, 1x1 project (+ residual) ---------
    k = wd_ref[...]                                        # (9, chp), BN folded
    n_chunks = (th + row_chunk - 1) // row_chunk
    for ci in range(n_chunks):
        ck = ci * row_chunk
        cn = min(row_chunk, th - ck)
        acc = jnp.zeros((cn, wo, chp), jnp.float32)
        for dh in range(3):
            if stride == 1:
                band = hid_ref[ck + dh:ck + dh + cn, :, :].astype(jnp.float32)
                taps = (band[:, 0:wo, :],
                        band[:, 1:1 + wo, :],
                        band[:, 2:2 + wo, :])
            else:
                # rows 2c+dh, 2(c+1)+dh, ... : contiguous load + major-axis
                # stride-2 slice of the value (no strided sublane access).
                rows = hid_ref[2 * ck + dh:2 * ck + dh + 2 * cn - 1, :, :]
                band = rows[::2].astype(jnp.float32)
                taps = (band[:, 0:wo, :],                  # even cols  2c
                        band[:, wph:wph + wo, :],          # odd  cols  2c+1
                        band[:, 1:1 + wo, :])              # even cols  2c+2
            for dw in range(3):
                acc = acc + taps[dw] * k[dh * 3 + dw]
        d = jnp.clip(acc + b2_ref[0], 0.0, 6.0)

        lhs = d.reshape(cn * wo, chp).astype(jnp.bfloat16)
        out = jnp.dot(lhs, w3_ref[...], preferred_element_type=jnp.float32)
        out = (out + b3_ref[0]).reshape(cn, wo, cout_p)
        if use_res:
            xres = x_ref[0, pl.ds(row0 + 1 + ck, cn), :, :]
            out = out + xres[:, 1:1 + w, :]
        o_ref[0, ck:ck + cn, :, :] = out.astype(o_ref.dtype)


# ----------------------------------------------------------------------------
# Host-side parameter prep: fold BN into weights, pad channels, bf16 matmul wts
# ----------------------------------------------------------------------------
def fold_bn(gamma, beta, mean, var, eps=1e-5):
    scale = gamma / jnp.sqrt(var + eps)
    bias = beta - mean * scale
    return scale, bias


def _prepare_params(params, *, inp, oup, expand_ratio, cin_p, chid_p, cout_p):
    hidden = round(inp * expand_ratio)
    prep = {}
    if expand_ratio != 1:
        s1, b1 = fold_bn(*params["bn1"])
        prep["w1"] = jnp.pad(params["w1"] * s1[None, :],
                             ((0, cin_p - inp), (0, chid_p - hidden))
                             ).astype(jnp.bfloat16)
        prep["b1"] = jnp.pad(b1, (0, chid_p - hidden)).reshape(1, chid_p)
    s2, b2 = fold_bn(*params["bn2"])
    prep["wd"] = jnp.pad(params["wd"] * s2[None, :],
                         ((0, 0), (0, chid_p - hidden)))
    prep["b2"] = jnp.pad(b2, (0, chid_p - hidden)).reshape(1, chid_p)
    s3, b3 = fold_bn(*params["bn3"])
    prep["w3"] = jnp.pad(params["w3"] * s3[None, :],
                         ((0, chid_p - hidden), (0, cout_p - oup))
                         ).astype(jnp.bfloat16)
    prep["b3"] = jnp.pad(b3, (0, cout_p - oup)).reshape(1, cout_p)
    return prep


# ----------------------------------------------------------------------------
# Forward wrapper
# ----------------------------------------------------------------------------
def inverted_residual(x_nchw, params, *, inp, oup, stride, expand_ratio,
                      row_tile_cap=32, row_chunk=8):
    assert stride in (1, 2)
    n, cin, h, w = x_nchw.shape
    assert cin == inp
    hidden = round(inp * expand_ratio)
    expand = expand_ratio != 1
    use_res = stride == 1 and inp == oup
    ho = (h - 1) // stride + 1
    wo = (w - 1) // stride + 1

    cin_p = _round_up(inp, 128)
    chid_p = _round_up(hidden, 128)
    cout_p = _round_up(oup, 128)

    # NCHW -> NHWC (channels on the 128-lane axis), pad H by 1 top/bottom and
    # W by 1 left/right, zero-pad channels to a multiple of 128.
    x = jnp.transpose(x_nchw, (0, 2, 3, 1))
    xpad = jnp.pad(x, ((0, 0), (1, 1), (1, 1), (0, cin_p - inp)))

    if stride == 1:
        wph = 0
        wp2 = _round_up(w + 2, 8)
        xp = jnp.pad(xpad, ((0, 0), (0, 0), (0, wp2 - (w + 2)), (0, 0)))
    else:
        # Column de-interleave on the host: even / odd padded columns become
        # two 8-aligned planes, so the stride-2 depthwise uses plain aligned
        # slices in-kernel.
        wph = _round_up(wo + 1, 8)
        wp2 = 2 * wph
        ev = xpad[:, :, 0::2, :]
        od = xpad[:, :, 1::2, :]
        ev = jnp.pad(ev, ((0, 0), (0, 0), (0, wph - ev.shape[2]), (0, 0)))
        od = jnp.pad(od, ((0, 0), (0, 0), (0, wph - od.shape[2]), (0, 0)))
        xp = jnp.concatenate([ev, od], axis=2)

    prep = _prepare_params(params, inp=inp, oup=oup, expand_ratio=expand_ratio,
                           cin_p=cin_p, chid_p=chid_p, cout_p=cout_p)

    # VMEM footprint model -> largest row tile that fits a ~32 MiB budget
    # (leaves headroom inside v7x's 64 MiB per-TC VMEM; v5e/v6e have 128 MiB).
    def footprint(th_):
        r_ = (th_ - 1) * stride + 3
        fp = (h + 2) * wp2 * cin_p * 4 * 2            # input block (dbl-buf)
        fp += th_ * wo * cout_p * 4 * 2               # output block (dbl-buf)
        fp += r_ * wp2 * chid_p * 2                   # bf16 hidden scratch
        fp += (9 * chid_p * 4 + chid_p * 4 + chid_p * cout_p * 2
               + cout_p * 4) * 2                      # depthwise/project wts
        if expand:
            fp += (cin_p * chid_p * 2 + chid_p * 4) * 2
        return fp

    budget = 32 * 1024 * 1024
    th = 1
    for d in range(1, min(ho, row_tile_cap) + 1):
        if ho % d == 0 and footprint(d) <= budget:
            th = d
    r = (th - 1) * stride + 3
    vmem_limit = int(max(32 * 1024 * 1024, footprint(th) + 8 * 1024 * 1024))

    zero_bottom = (ho - 1) * stride + 2 == h + 1      # bottom pad row is read

    kernel = functools.partial(
        _fused_ir_kernel, expand=expand, stride=stride, th=th, h=h, w=w,
        wo=wo, wp2=wp2, wph=wph, use_res=use_res,
        row_chunk=min(row_chunk, th), zero_bottom=zero_bottom)

    def const_spec(shape):
        return pl.BlockSpec(shape, lambda ni, ji: (0,) * len(shape))

    inputs = [xp]
    in_specs = [pl.BlockSpec((1, h + 2, wp2, cin_p),
                             lambda ni, ji: (ni, 0, 0, 0))]
    if expand:
        inputs += [prep["w1"], prep["b1"]]
        in_specs += [const_spec((cin_p, chid_p)), const_spec((1, chid_p))]
    inputs += [prep["wd"], prep["b2"], prep["w3"], prep["b3"]]
    in_specs += [const_spec((9, chid_p)), const_spec((1, chid_p)),
                 const_spec((chid_p, cout_p)), const_spec((1, cout_p))]

    out = pl.pallas_call(
        kernel,
        grid=(n, ho // th),
        in_specs=in_specs,
        out_specs=pl.BlockSpec((1, th, wo, cout_p),
                               lambda ni, ji: (ni, ji, 0, 0)),
        out_shape=jax.ShapeDtypeStruct((n, ho, wo, cout_p), x.dtype),
        scratch_shapes=[pltpu.VMEM((r, wp2, chid_p), jnp.bfloat16)],
        compiler_params=pltpu.CompilerParams(
            dimension_semantics=("parallel", "parallel"),
            vmem_limit_bytes=vmem_limit),
    )(*inputs)

    out = out[:, :, :, :oup]
    return jnp.transpose(out, (0, 3, 1, 2))           # NHWC -> NCHW


# ----------------------------------------------------------------------------
# Synthetic parameters and pure-JAX (f32) reference
# ----------------------------------------------------------------------------
def bn_params(key, c):
    k1, k2, k3, k4 = jax.random.split(key, 4)
    gamma = 1.0 + 0.1 * jax.random.normal(k1, (c,), jnp.float32)
    beta = 0.3 * jax.random.normal(k2, (c,), jnp.float32)
    mean = 0.3 * jax.random.normal(k3, (c,), jnp.float32)
    var = jax.random.uniform(k4, (c,), jnp.float32, minval=0.5, maxval=1.5)
    return gamma, beta, mean, var


def init_params(key, inp, oup, expand_ratio):
    hidden = round(inp * expand_ratio)
    keys = jax.random.split(key, 6)
    p = {}
    if expand_ratio != 1:
        p["w1"] = 0.1 * jax.random.normal(keys[0], (inp, hidden), jnp.float32)
        p["bn1"] = bn_params(keys[1], hidden)
    p["wd"] = 0.1 * jax.random.normal(keys[2], (9, hidden), jnp.float32)
    p["bn2"] = bn_params(keys[3], hidden)
    p["w3"] = 0.1 * jax.random.normal(keys[4], (hidden, oup), jnp.float32)
    p["bn3"] = bn_params(keys[5], oup)
    return p


def reference(x_nchw, params, *, inp, oup, stride, expand_ratio):
    use_res = stride == 1 and inp == oup
    x = jnp.transpose(x_nchw, (0, 2, 3, 1)).astype(jnp.float32)
    hdn = x
    if expand_ratio != 1:
        s, b = fold_bn(*params["bn1"])
        hdn = jnp.clip(jnp.einsum("nhwc,cd->nhwd", hdn, params["w1"]) * s + b,
                       0.0, 6.0)
    n, hh, ww, c = hdn.shape
    hp = jnp.pad(hdn, ((0, 0), (1, 1), (1, 1), (0, 0)))
    acc = jnp.zeros_like(hdn)
    for dh in range(3):
        for dw in range(3):
            acc = acc + hp[:, dh:dh + hh, dw:dw + ww, :] * params["wd"][dh * 3 + dw]
    s, b = fold_bn(*params["bn2"])
    d = jnp.clip(acc * s + b, 0.0, 6.0)
    if stride == 2:
        d = d[:, ::2, ::2, :]
    s, b = fold_bn(*params["bn3"])
    out = jnp.einsum("nhwc,cd->nhwd", d, params["w3"]) * s + b
    if use_res:
        out = out + x
    return jnp.transpose(out, (0, 3, 1, 2))


def _check(out, ref, tag):
    err = float(jnp.max(jnp.abs(out - ref)))
    assert jnp.allclose(out, ref, atol=2e-2, rtol=2e-2), (tag, err)


if __name__ == "__main__":
    key = jax.random.PRNGKey(0)
    kx, kp1, kp2, kp3 = jax.random.split(key, 4)

    n, inp, h, w = 2, 8, 16, 16
    x = jax.random.normal(kx, (n, inp, h, w), jnp.float32)

    # Config 1: stride=1, inp==oup, expand_ratio=4 -> expand + residual path.
    oup = 8
    params = init_params(kp1, inp, oup, 4)
    fwd = jax.jit(functools.partial(inverted_residual, inp=inp, oup=oup,
                                    stride=1, expand_ratio=4))
    out = jax.block_until_ready(fwd(x, params))
    ref = reference(x, params, inp=inp, oup=oup, stride=1, expand_ratio=4)
    assert out.shape == (n, oup, h, w), out.shape
    _check(out, ref, "cfg1")

    # Config 2: expand_ratio == 1 branch (no expand conv), still residual.
    params2 = init_params(kp2, inp, oup, 1)
    fwd2 = jax.jit(functools.partial(inverted_residual, inp=inp, oup=oup,
                                     stride=1, expand_ratio=1))
    out2 = jax.block_until_ready(fwd2(x, params2))
    ref2 = reference(x, params2, inp=inp, oup=oup, stride=1, expand_ratio=1)
    _check(out2, ref2, "cfg2")

    # Config 3: stride=2 downsampling block (expand, no residual).
    oup3 = 16
    params3 = init_params(kp3, inp, oup3, 6)
    fwd3 = jax.jit(functools.partial(inverted_residual, inp=inp, oup=oup3,
                                     stride=2, expand_ratio=6))
    out3 = jax.block_until_ready(fwd3(x, params3))
    ref3 = reference(x, params3, inp=inp, oup=oup3, stride=2, expand_ratio=6)
    assert out3.shape == (n, oup3, h // 2, w // 2), out3.shape
    _check(out3, ref3, "cfg3")

    print("KERNEL_OK")
</pallas_src>

<mosaic_0001>
module attributes {stable_mosaic.version = 11 : i64} {
  func.func @_fused_ir_kernel(%arg0: i32, %arg1: i32, %arg2: memref<1x18x24x128xf32, #tpu.memory_space<vmem>>, %arg3: memref<128x128xbf16, #tpu.memory_space<vmem>>, %arg4: memref<1x128xf32, #tpu.memory_space<vmem>>, %arg5: memref<9x128xf32, #tpu.memory_space<vmem>>, %arg6: memref<1x128xf32, #tpu.memory_space<vmem>>, %arg7: memref<128x128xbf16, #tpu.memory_space<vmem>>, %arg8: memref<1x128xf32, #tpu.memory_space<vmem>>, %arg9: memref<1x16x16x128xf32, #tpu.memory_space<vmem>>, %arg10: memref<18x24x128xbf16, #tpu.memory_space<vmem>>) attributes {dimension_semantics = [#tpu.dimension_semantics<parallel>, #tpu.dimension_semantics<parallel>], iteration_bounds = array<i64: 2, 1>, scalar_prefetch = 0 : i64, scratch_operands = 1 : i64, tpu.core_type = #tpu.core_type<tc>, window_params = [{transform_indices = @transform_0, window_bounds = array<i64: 1, 18, 24, 128>}, {pipeline_mode = #tpu.pipeline_mode<synchronous>, transform_indices = @transform_1, window_bounds = array<i64: 128, 128>}, {pipeline_mode = #tpu.pipeline_mode<synchronous>, transform_indices = @transform_2, window_bounds = array<i64: 1, 128>}, {pipeline_mode = #tpu.pipeline_mode<synchronous>, transform_indices = @transform_3, window_bounds = array<i64: 9, 128>}, {pipeline_mode = #tpu.pipeline_mode<synchronous>, transform_indices = @transform_4, window_bounds = array<i64: 1, 128>}, {pipeline_mode = #tpu.pipeline_mode<synchronous>, transform_indices = @transform_5, window_bounds = array<i64: 128, 128>}, {pipeline_mode = #tpu.pipeline_mode<synchronous>, transform_indices = @transform_6, window_bounds = array<i64: 1, 128>}, {transform_indices = @transform_7, window_bounds = array<i64: 1, 16, 16, 128>}]} {
    %c16_i32 = arith.constant 16 : i32
    %0 = arith.muli %arg1, %c16_i32 : i32
    %1 = tpu.assume_multiple %0, 16 : i32
    %c0_i32 = arith.constant 0 : i32
    %2 = arith.addi %1, %c0_i32 : i32
    %c0 = arith.constant 0 : index
    %3 = arith.index_cast %2 : i32 to index
    %c0_0 = arith.constant 0 : index
    %c0_1 = arith.constant 0 : index
    %4 = vector.load %arg2[%c0, %3, %c0_0, %c0_1] : memref<1x18x24x128xf32, #tpu.memory_space<vmem>>, vector<1x8x24x128xf32>
    %5 = vector.shape_cast %4 : vector<1x8x24x128xf32> to vector<8x24x128xf32>
    %6 = vector.shape_cast %5 : vector<8x24x128xf32> to vector<192x128xf32>
    %7 = arith.truncf %6 : vector<192x128xf32> to vector<192x128xbf16>
    %c0_2 = arith.constant 0 : index
    %c0_3 = arith.constant 0 : index
    %8 = vector.load %arg3[%c0_2, %c0_3] : memref<128x128xbf16, #tpu.memory_space<vmem>>, vector<128x128xbf16>
    %cst = arith.constant dense<0.000000e+00> : vector<192x128xf32>
    %9 = tpu.matmul %7, %8, %cst {dimension_numbers = #tpu.dot_dimension_numbers<[1], [0], [0], [1], [0, 0, 1, 1], [], []>} : vector<192x128xbf16>, vector<128x128xbf16>, vector<192x128xf32> -> vector<192x128xf32>
    %c0_4 = arith.constant 0 : index
    %c0_5 = arith.constant 0 : index
    %10 = vector.load %arg4[%c0_4, %c0_5] : memref<1x128xf32, #tpu.memory_space<vmem>>, vector<1x128xf32>
    %11 = vector.shape_cast %10 : vector<1x128xf32> to vector<128xf32>
    %12 = vector.shape_cast %11 : vector<128xf32> to vector<1x128xf32>
    %13 = vector.broadcast %12 : vector<1x128xf32> to vector<192x128xf32>
    %14 = arith.addf %9, %13 : vector<192x128xf32>
    %cst_6 = arith.constant 0.000000e+00 : f32
    %cst_7 = arith.constant 6.000000e+00 : f32
    %15 = vector.broadcast %cst_6 : f32 to vector<192x128xf32>
    %16 = arith.maximumf %15, %14 : vector<192x128xf32>
    %17 = vector.broadcast %cst_7 : f32 to vector<192x128xf32>
    %18 = arith.minimumf %17, %16 : vector<192x128xf32>
    %19 = vector.shape_cast %18 : vector<192x128xf32> to vector<8x24x128xf32>
    %20 = arith.truncf %19 : vector<8x24x128xf32> to vector<8x24x128xbf16>
    %c0_8 = arith.constant 0 : index
    %c0_9 = arith.constant 0 : index
    %c0_10 = arith.constant 0 : index
    %21 = vector.load %arg10[%c0_8, %c0_9, %c0_10] : memref<18x24x128xbf16, #tpu.memory_space<vmem>>, vector<8x24x128xbf16>
    tpu.vector_store %arg10[%c0_8, %c0_9, %c0_10], %20 {strides = array<i32>} : memref<18x24x128xbf16, #tpu.memory_space<vmem>>, vector<8x24x128xbf16>,
    %c8_i32 = arith.constant 8 : i32
    %22 = arith.addi %1, %c8_i32 : i32
    %c0_11 = arith.constant 0 : index
    %23 = arith.index_cast %22 : i32 to index
    %c0_12 = arith.constant 0 : index
    %c0_13 = arith.constant 0 : index
    %24 = vector.load %arg2[%c0_11, %23, %c0_12, %c0_13] : memref<1x18x24x128xf32, #tpu.memory_space<vmem>>, vector<1x8x24x128xf32>
    %25 = vector.shape_cast %24 : vector<1x8x24x128xf32> to vector<8x24x128xf32>
    %26 = vector.shape_cast %25 : vector<8x24x128xf32> to vector<192x128xf32>
    %27 = arith.truncf %26 : vector<192x128xf32> to vector<192x128xbf16>
    %c0_14 = arith.constant 0 : index
    %c0_15 = arith.constant 0 : index
    %28 = vector.load %arg3[%c0_14, %c0_15] : memref<128x128xbf16, #tpu.memory_space<vmem>>, vector<128x128xbf16>
    %cst_16 = arith.constant dense<0.000000e+00> : vector<192x128xf32>
    %29 = tpu.matmul %27, %28, %cst_16 {dimension_numbers = #tpu.dot_dimension_numbers<[1], [0], [0], [1], [0, 0, 1, 1], [], []>} : vector<192x128xbf16>, vector<128x128xbf16>, vector<192x128xf32> -> vector<192x128xf32>
    %c0_17 = arith.constant 0 : index
    %c0_18 = arith.constant 0 : index
    %30 = vector.load %arg4[%c0_17, %c0_18] : memref<1x128xf32, #tpu.memory_space<vmem>>, vector<1x128xf32>
    %31 = vector.shape_cast %30 : vector<1x128xf32> to vector<128xf32>
    %32 = vector.shape_cast %31 : vector<128xf32> to vector<1x128xf32>
    %33 = vector.broadcast %32 : vector<1x128xf32> to vector<192x128xf32>
    %34 = arith.addf %29, %33 : vector<192x128xf32>
    %cst_19 = arith.constant 0.000000e+00 : f32
    %cst_20 = arith.constant 6.000000e+00 : f32
    %35 = vector.broadcast %cst_19 : f32 to vector<192x128xf32>
    %36 = arith.maximumf %35, %34 : vector<192x128xf32>
    %37 = vector.broadcast %cst_20 : f32 to vector<192x128xf32>
    %38 = arith.minimumf %37, %36 : vector<192x128xf32>
    %39 = vector.shape_cast %38 : vector<192x128xf32> to vector<8x24x128xf32>
    %40 = arith.truncf %39 : vector<8x24x128xf32> to vector<8x24x128xbf16>
    %c8 = arith.constant 8 : index
    %c0_21 = arith.constant 0 : index
    %c0_22 = arith.constant 0 : index
    %41 = vector.load %arg10[%c8, %c0_21, %c0_22] : memref<18x24x128xbf16, #tpu.memory_space<vmem>>, vector<8x24x128xbf16>
    tpu.vector_store %arg10[%c8, %c0_21, %c0_22], %40 {strides = array<i32>} : memref<18x24x128xbf16, #tpu.memory_space<vmem>>, vector<8x24x128xbf16>,
    %c16_i32_23 = arith.constant 16 : i32
    %42 = arith.addi %1, %c16_i32_23 : i32
    %c0_24 = arith.constant 0 : index
    %43 = arith.index_cast %42 : i32 to index
    %c0_25 = arith.constant 0 : index
    %c0_26 = arith.constant 0 : index
    %44 = vector.load %arg2[%c0_24, %43, %c0_25, %c0_26] : memref<1x18x24x128xf32, #tpu.memory_space<vmem>>, vector<1x2x24x128xf32>
    %45 = vector.shape_cast %44 : vector<1x2x24x128xf32> to vector<2x24x128xf32>
    %46 = vector.shape_cast %45 : vector<2x24x128xf32> to vector<48x128xf32>
    %47 = arith.truncf %46 : vector<48x128xf32> to vector<48x128xbf16>
    %c0_27 = arith.constant 0 : index
    %c0_28 = arith.constant 0 : index
    %48 = vector.load %arg3[%c0_27, %c0_28] : memref<128x128xbf16, #tpu.memory_space<vmem>>, vector<128x128xbf16>
    %cst_29 = arith.constant dense<0.000000e+00> : vector<48x128xf32>
    %49 = tpu.matmul %47, %48, %cst_29 {dimension_numbers = #tpu.dot_dimension_numbers<[1], [0], [0], [1], [0, 0, 1, 1], [], []>} : vector<48x128xbf16>, vector<128x128xbf16>, vector<48x128xf32> -> vector<48x128xf32>
    %c0_30 = arith.constant 0 : index
    %c0_31 = arith.constant 0 : index
    %50 = vector.load %arg4[%c0_30, %c0_31] : memref<1x128xf32, #tpu.memory_space<vmem>>, vector<1x128xf32>
    %51 = vector.shape_cast %50 : vector<1x128xf32> to vector<128xf32>
    %52 = vector.shape_cast %51 : vector<128xf32> to vector<1x128xf32>
    %53 = vector.broadcast %52 : vector<1x128xf32> to vector<48x128xf32>
    %54 = arith.addf %49, %53 : vector<48x128xf32>
    %cst_32 = arith.constant 0.000000e+00 : f32
    %cst_33 = arith.constant 6.000000e+00 : f32
    %55 = vector.broadcast %cst_32 : f32 to vector<48x128xf32>
    %56 = arith.maximumf %55, %54 : vector<48x128xf32>
    %57 = vector.broadcast %cst_33 : f32 to vector<48x128xf32>
    %58 = arith.minimumf %57, %56 : vector<48x128xf32>
    %59 = vector.shape_cast %58 : vector<48x128xf32> to vector<2x24x128xf32>
    %60 = arith.truncf %59 : vector<2x24x128xf32> to vector<2x24x128xbf16>
    %c16 = arith.constant 16 : index
    %c0_34 = arith.constant 0 : index
    %c0_35 = arith.constant 0 : index
    %61 = vector.load %arg10[%c16, %c0_34, %c0_35] : memref<18x24x128xbf16, #tpu.memory_space<vmem>>, vector<2x24x128xbf16>
    tpu.vector_store %arg10[%c16, %c0_34, %c0_35], %60 {strides = array<i32>} : memref<18x24x128xbf16, #tpu.memory_space<vmem>>, vector<2x24x128xbf16>,
    %cst_36 = arith.constant 0.000000e+00 : bf16
    %62 = vector.broadcast %cst_36 : bf16 to vector<18x1x128xbf16>
    %cst_37 = arith.constant 0.000000e+00 : bf16
    %63 = vector.broadcast %cst_37 : bf16 to vector<1x24x128xbf16>
    %c0_38 = arith.constant 0 : index
    %c0_39 = arith.constant 0 : index
    %c0_40 = arith.constant 0 : index
    %64 = vector.load %arg10[%c0_38, %c0_39, %c0_40] : memref<18x24x128xbf16, #tpu.memory_space<vmem>>, vector<18x1x128xbf16>
    tpu.vector_store %arg10[%c0_38, %c0_39, %c0_40], %62 {strides = array<i32>} : memref<18x24x128xbf16, #tpu.memory_space<vmem>>, vector<18x1x128xbf16>,
    %c0_41 = arith.constant 0 : index
    %c17 = arith.constant 17 : index
    %c0_42 = arith.constant 0 : index
    %65 = vector.load %arg10[%c0_41, %c17, %c0_42] : memref<18x24x128xbf16, #tpu.memory_space<vmem>>, vector<18x1x128xbf16>
    tpu.vector_store %arg10[%c0_41, %c17, %c0_42], %62 {strides = array<i32>} : memref<18x24x128xbf16, #tpu.memory_space<vmem>>, vector<18x1x128xbf16>,
    %c0_i32_43 = arith.constant 0 : i32
    %66 = arith.cmpi eq, %arg1, %c0_i32_43 : i32
    %67 = arith.extui %66 : i1 to i32
    %c0_i32_44 = arith.constant 0 : i32
    %68 = arith.cmpi ne, %67, %c0_i32_44 : i32
    scf.if %68 {
      %c0_100 = arith.constant 0 : index
      %c0_101 = arith.constant 0 : index
      %c0_102 = arith.constant 0 : index
      %271 = vector.load %arg10[%c0_100, %c0_101, %c0_102] : memref<18x24x128xbf16, #tpu.memory_space<vmem>>, vector<1x24x128xbf16>
      tpu.vector_store %arg10[%c0_100, %c0_101, %c0_102], %63 {strides = array<i32>} : memref<18x24x128xbf16, #tpu.memory_space<vmem>>, vector<1x24x128xbf16>,
    } else {
    }
    %c0_i32_45 = arith.constant 0 : i32
    %69 = arith.cmpi eq, %arg1, %c0_i32_45 : i32
    %70 = arith.extui %69 : i1 to i32
    %c0_i32_46 = arith.constant 0 : i32
    %71 = arith.cmpi ne, %70, %c0_i32_46 : i32
    scf.if %71 {
      %c17_100 = arith.constant 17 : index
      %c0_101 = arith.constant 0 : index
      %c0_102 = arith.constant 0 : index
      %271 = vector.load %arg10[%c17_100, %c0_101, %c0_102] : memref<18x24x128xbf16, #tpu.memory_space<vmem>>, vector<1x24x128xbf16>
      tpu.vector_store %arg10[%c17_100, %c0_101, %c0_102], %63 {strides = array<i32>} : memref<18x24x128xbf16, #tpu.memory_space<vmem>>, vector<1x24x128xbf16>,
    } else {
    }
    %c0_47 = arith.constant 0 : index
    %c0_48 = arith.constant 0 : index
    %72 = vector.load %arg5[%c0_47, %c0_48] : memref<9x128xf32, #tpu.memory_space<vmem>>, vector<9x128xf32>
    %cst_49 = arith.constant 0.000000e+00 : f32
    %73 = vector.broadcast %cst_49 : f32 to vector<8x16x128xf32>
    %c0_50 = arith.constant 0 : index
    %c0_51 = arith.constant 0 : index
    %c0_52 = arith.constant 0 : index
    %74 = vector.load %arg10[%c0_50, %c0_51, %c0_52] : memref<18x24x128xbf16, #tpu.memory_space<vmem>>, vector<8x24x128xbf16>
    %75 = arith.extf %74 : vector<8x24x128xbf16> to vector<8x24x128xf32>
    %76 = vector.extract_strided_slice %75 {offsets = [0, 0, 0], sizes = [8, 16, 128], strides = [1, 1, 1]} : vector<8x24x128xf32> to vector<8x16x128xf32>
    %77 = vector.extract_strided_slice %75 {offsets = [0, 1, 0], sizes = [8, 16, 128], strides = [1, 1, 1]} : vector<8x24x128xf32> to vector<8x16x128xf32>
    %78 = vector.extract_strided_slice %75 {offsets = [0, 2, 0], sizes = [8, 16, 128], strides = [1, 1, 1]} : vector<8x24x128xf32> to vector<8x16x128xf32>
    %79 = vector.extract_strided_slice %72 {offsets = [0, 0], sizes = [1, 128], strides = [1, 1]} : vector<9x128xf32> to vector<1x128xf32>
    %80 = vector.shape_cast %79 : vector<1x128xf32> to vector<128xf32>
    %81 = vector.shape_cast %80 : vector<128xf32> to vector<1x1x128xf32>
    %82 = vector.broadcast %81 : vector<1x1x128xf32> to vector<8x16x128xf32>
    %83 = arith.mulf %76, %82 : vector<8x16x128xf32>
    %84 = arith.addf %73, %83 : vector<8x16x128xf32>
    %85 = vector.extract_strided_slice %72 {offsets = [1, 0], sizes = [1, 128], strides = [1, 1]} : vector<9x128xf32> to vector<1x128xf32>
    %86 = vector.shape_cast %85 : vector<1x128xf32> to vector<128xf32>
    %87 = vector.shape_cast %86 : vector<128xf32> to vector<1x1x128xf32>
    %88 = vector.broadcast %87 : vector<1x1x128xf32> to vector<8x16x128xf32>
    %89 = arith.mulf %77, %88 : vector<8x16x128xf32>
    %90 = arith.addf %84, %89 : vector<8x16x128xf32>
    %91 = vector.extract_strided_slice %72 {offsets = [2, 0], sizes = [1, 128], strides = [1, 1]} : vector<9x128xf32> to vector<1x128xf32>
    %92 = vector.shape_cast %91 : vector<1x128xf32> to vector<128xf32>
    %93 = vector.shape_cast %92 : vector<128xf32> to vector<1x1x128xf32>
    %94 = vector.broadcast %93 : vector<1x1x128xf32> to vector<8x16x128xf32>
    %95 = arith.mulf %78, %94 : vector<8x16x128xf32>
    %96 = arith.addf %90, %95 : vector<8x16x128xf32>
    %c1 = arith.constant 1 : index
    %c0_53 = arith.constant 0 : index
    %c0_54 = arith.constant 0 : index
    %97 = vector.load %arg10[%c1, %c0_53, %c0_54] : memref<18x24x128xbf16, #tpu.memory_space<vmem>>, vector<8x24x128xbf16>
    %98 = arith.extf %97 : vector<8x24x128xbf16> to vector<8x24x128xf32>
    %99 = vector.extract_strided_slice %98 {offsets = [0, 0, 0], sizes = [8, 16, 128], strides = [1, 1, 1]} : vector<8x24x128xf32> to vector<8x16x128xf32>
    %100 = vector.extract_strided_slice %98 {offsets = [0, 1, 0], sizes = [8, 16, 128], strides = [1, 1, 1]} : vector<8x24x128xf32> to vector<8x16x128xf32>
    %101 = vector.extract_strided_slice %98 {offsets = [0, 2, 0], sizes = [8, 16, 128], strides = [1, 1, 1]} : vector<8x24x128xf32> to vector<8x16x128xf32>
    %102 = vector.extract_strided_slice %72 {offsets = [3, 0], sizes = [1, 128], strides = [1, 1]} : vector<9x128xf32> to vector<1x128xf32>
    %103 = vector.shape_cast %102 : vector<1x128xf32> to vector<128xf32>
    %104 = vector.shape_cast %103 : vector<128xf32> to vector<1x1x128xf32>
    %105 = vector.broadcast %104 : vector<1x1x128xf32> to vector<8x16x128xf32>
    %106 = arith.mulf %99, %105 : vector<8x16x128xf32>
    %107 = arith.addf %96, %106 : vector<8x16x128xf32>
    %108 = vector.extract_strided_slice %72 {offsets = [4, 0], sizes = [1, 128], strides = [1, 1]} : vector<9x128xf32> to vector<1x128xf32>
    %109 = vector.shape_cast %108 : vector<1x128xf32> to vector<128xf32>
    %110 = vector.shape_cast %109 : vector<128xf32> to vector<1x1x128xf32>
    %111 = vector.broadcast %110 : vector<1x1x128xf32> to vector<8x16x128xf32>
    %112 = arith.mulf %100, %111 : vector<8x16x128xf32>
    %113 = arith.addf %107, %112 : vector<8x16x128xf32>
    %114 = vector.extract_strided_slice %72 {offsets = [5, 0], sizes = [1, 128], strides = [1, 1]} : vector<9x128xf32> to vector<1x128xf32>
    %115 = vector.shape_cast %114 : vector<1x128xf32> to vector<128xf32>
    %116 = vector.shape_cast %115 : vector<128xf32> to vector<1x1x128xf32>
    %117 = vector.broadcast %116 : vector<1x1x128xf32> to vector<8x16x128xf32>
    %118 = arith.mulf %101, %117 : vector<8x16x128xf32>
    %119 = arith.addf %113, %118 : vector<8x16x128xf32>
    %c2 = arith.constant 2 : index
    %c0_55 = arith.constant 0 : index
    %c0_56 = arith.constant 0 : index
    %120 = vector.load %arg10[%c2, %c0_55, %c0_56] : memref<18x24x128xbf16, #tpu.memory_space<vmem>>, vector<8x24x128xbf16>
    %121 = arith.extf %120 : vector<8x24x128xbf16> to vector<8x24x128xf32>
    %122 = vector.extract_strided_slice %121 {offsets = [0, 0, 0], sizes = [8, 16, 128], strides = [1, 1, 1]} : vector<8x24x128xf32> to vector<8x16x128xf32>
    %123 = vector.extract_strided_slice %121 {offsets = [0, 1, 0], sizes = [8, 16, 128], strides = [1, 1, 1]} : vector<8x24x128xf32> to vector<8x16x128xf32>
    %124 = vector.extract_strided_slice %121 {offsets = [0, 2, 0], sizes = [8, 16, 128], strides = [1, 1, 1]} : vector<8x24x128xf32> to vector<8x16x128xf32>
    %125 = vector.extract_strided_slice %72 {offsets = [6, 0], sizes = [1, 128], strides = [1, 1]} : vector<9x128xf32> to vector<1x128xf32>
    %126 = vector.shape_cast %125 : vector<1x128xf32> to vector<128xf32>
    %127 = vector.shape_cast %126 : vector<128xf32> to vector<1x1x128xf32>
    %128 = vector.broadcast %127 : vector<1x1x128xf32> to vector<8x16x128xf32>
    %129 = arith.mulf %122, %128 : vector<8x16x128xf32>
    %130 = arith.addf %119, %129 : vector<8x16x128xf32>
    %131 = vector.extract_strided_slice %72 {offsets = [7, 0], sizes = [1, 128], strides = [1, 1]} : vector<9x128xf32> to vector<1x128xf32>
    %132 = vector.shape_cast %131 : vector<1x128xf32> to vector<128xf32>
    %133 = vector.shape_cast %132 : vector<128xf32> to vector<1x1x128xf32>
    %134 = vector.broadcast %133 : vector<1x1x128xf32> to vector<8x16x128xf32>
    %135 = arith.mulf %123, %134 : vector<8x16x128xf32>
    %136 = arith.addf %130, %135 : vector<8x16x128xf32>
    %137 = vector.extract_strided_slice %72 {offsets = [8, 0], sizes = [1, 128], strides = [1, 1]} : vector<9x128xf32> to vector<1x128xf32>
    %138 = vector.shape_cast %137 : vector<1x128xf32> to vector<128xf32>
    %139 = vector.shape_cast %138 : vector<128xf32> to vector<1x1x128xf32>
    %140 = vector.broadcast %139 : vector<1x1x128xf32> to vector<8x16x128xf32>
    %141 = arith.mulf %124, %140 : vector<8x16x128xf32>
    %142 = arith.addf %136, %141 : vector<8x16x128xf32>
    %c0_57 = arith.constant 0 : index
    %c0_58 = arith.constant 0 : index
    %143 = vector.load %arg6[%c0_57, %c0_58] : memref<1x128xf32, #tpu.memory_space<vmem>>, vector<1x128xf32>
    %144 = vector.shape_cast %143 : vector<1x128xf32> to vector<128xf32>
    %145 = vector.shape_cast %144 : vector<128xf32> to vector<1x1x128xf32>
    %146 = vector.broadcast %145 : vector<1x1x128xf32> to vector<8x16x128xf32>
    %147 = arith.addf %142, %146 : vector<8x16x128xf32>
    %cst_59 = arith.constant 0.000000e+00 : f32
    %cst_60 = arith.constant 6.000000e+00 : f32
    %148 = vector.broadcast %cst_59 : f32 to vector<8x16x128xf32>
    %149 = arith.maximumf %148, %147 : vector<8x16x128xf32>
    %150 = vector.broadcast %cst_60 : f32 to vector<8x16x128xf32>
    %151 = arith.minimumf %150, %149 : vector<8x16x128xf32>
    %152 = vector.shape_cast %151 : vector<8x16x128xf32> to vector<128x128xf32>
    %153 = arith.truncf %152 : vector<128x128xf32> to vector<128x128xbf16>
    %c0_61 = arith.constant 0 : index
    %c0_62 = arith.constant 0 : index
    %154 = vector.load %arg7[%c0_61, %c0_62] : memref<128x128xbf16, #tpu.memory_space<vmem>>, vector<128x128xbf16>
    %cst_63 = arith.constant dense<0.000000e+00> : vector<128x128xf32>
    %155 = tpu.matmul %153, %154, %cst_63 {dimension_numbers = #tpu.dot_dimension_numbers<[1], [0], [0], [1], [0, 0, 1, 1], [], []>} : vector<128x128xbf16>, vector<128x128xbf16>, vector<128x128xf32> -> vector<128x128xf32>
    %c0_64 = arith.constant 0 : index
    %c0_65 = arith.constant 0 : index
    %156 = vector.load %arg8[%c0_64, %c0_65] : memref<1x128xf32, #tpu.memory_space<vmem>>, vector<1x128xf32>
    %157 = vector.shape_cast %156 : vector<1x128xf32> to vector<128xf32>
    %158 = vector.shape_cast %157 : vector<128xf32> to vector<1x128xf32>
    %159 = vector.broadcast %158 : vector<1x128xf32> to vector<128x128xf32>
    %160 = arith.addf %155, %159 : vector<128x128xf32>
    %161 = vector.shape_cast %160 : vector<128x128xf32> to vector<8x16x128xf32>
    %c1_i32 = arith.constant 1 : i32
    %162 = arith.addi %1, %c1_i32 : i32
    %c0_i32_66 = arith.constant 0 : i32
    %163 = arith.addi %162, %c0_i32_66 : i32
    %c0_67 = arith.constant 0 : index
    %164 = arith.index_cast %163 : i32 to index
    %c0_68 = arith.constant 0 : index
    %c0_69 = arith.constant 0 : index
    %165 = vector.load %arg2[%c0_67, %164, %c0_68, %c0_69] : memref<1x18x24x128xf32, #tpu.memory_space<vmem>>, vector<1x8x24x128xf32>
    %166 = vector.shape_cast %165 : vector<1x8x24x128xf32> to vector<8x24x128xf32>
    %167 = vector.extract_strided_slice %166 {offsets = [0, 1, 0], sizes = [8, 16, 128], strides = [1, 1, 1]} : vector<8x24x128xf32> to vector<8x16x128xf32>
    %168 = arith.addf %161, %167 : vector<8x16x128xf32>
    %c0_70 = arith.constant 0 : index
    %c0_71 = arith.constant 0 : index
    %c0_72 = arith.constant 0 : index
    %c0_73 = arith.constant 0 : index
    %169 = vector.load %arg9[%c0_70, %c0_71, %c0_72, %c0_73] : memref<1x16x16x128xf32, #tpu.memory_space<vmem>>, vector<1x8x16x128xf32>
    %170 = vector.shape_cast %169 : vector<1x8x16x128xf32> to vector<8x16x128xf32>
    %171 = vector.shape_cast %168 : vector<8x16x128xf32> to vector<1x8x16x128xf32>
    tpu.vector_store %arg9[%c0_70, %c0_71, %c0_72, %c0_73], %171 {strides = array<i32>} : memref<1x16x16x128xf32, #tpu.memory_space<vmem>>, vector<1x8x16x128xf32>,
    %cst_74 = arith.constant 0.000000e+00 : f32
    %172 = vector.broadcast %cst_74 : f32 to vector<8x16x128xf32>
    %c8_75 = arith.constant 8 : index
    %c0_76 = arith.constant 0 : index
    %c0_77 = arith.constant 0 : index
    %173 = vector.load %arg10[%c8_75, %c0_76, %c0_77] : memref<18x24x128xbf16, #tpu.memory_space<vmem>>, vector<8x24x128xbf16>
    %174 = arith.extf %173 : vector<8x24x128xbf16> to vector<8x24x128xf32>
    %175 = vector.extract_strided_slice %174 {offsets = [0, 0, 0], sizes = [8, 16, 128], strides = [1, 1, 1]} : vector<8x24x128xf32> to vector<8x16x128xf32>
    %176 = vector.extract_strided_slice %174 {offsets = [0, 1, 0], sizes = [8, 16, 128], strides = [1, 1, 1]} : vector<8x24x128xf32> to vector<8x16x128xf32>
    %177 = vector.extract_strided_slice %174 {offsets = [0, 2, 0], sizes = [8, 16, 128], strides = [1, 1, 1]} : vector<8x24x128xf32> to vector<8x16x128xf32>
    %178 = vector.extract_strided_slice %72 {offsets = [0, 0], sizes = [1, 128], strides = [1, 1]} : vector<9x128xf32> to vector<1x128xf32>
    %179 = vector.shape_cast %178 : vector<1x128xf32> to vector<128xf32>
    %180 = vector.shape_cast %179 : vector<128xf32> to vector<1x1x128xf32>
    %181 = vector.broadcast %180 : vector<1x1x128xf32> to vector<8x16x128xf32>
    %182 = arith.mulf %175, %181 : vector<8x16x128xf32>
    %183 = arith.addf %172, %182 : vector<8x16x128xf32>
    %184 = vector.extract_strided_slice %72 {offsets = [1, 0], sizes = [1, 128], strides = [1, 1]} : vector<9x128xf32> to vector<1x128xf32>
    %185 = vector.shape_cast %184 : vector<1x128xf32> to vector<128xf32>
    %186 = vector.shape_cast %185 : vector<128xf32> to vector<1x1x128xf32>
    %187 = vector.broadcast %186 : vector<1x1x128xf32> to vector<8x16x128xf32>
    %188 = arith.mulf %176, %187 : vector<8x16x128xf32>
    %189 = arith.addf %183, %188 : vector<8x16x128xf32>
    %190 = vector.extract_strided_slice %72 {offsets = [2, 0], sizes = [1, 128], strides = [1, 1]} : vector<9x128xf32> to vector<1x128xf32>
    %191 = vector.shape_cast %190 : vector<1x128xf32> to vector<128xf32>
    %192 = vector.shape_cast %191 : vector<128xf32> to vector<1x1x128xf32>
    %193 = vector.broadcast %192 : vector<1x1x128xf32> to vector<8x16x128xf32>
    %194 = arith.mulf %177, %193 : vector<8x16x128xf32>
    %195 = arith.addf %189, %194 : vector<8x16x128xf32>
    %c9 = arith.constant 9 : index
    %c0_78 = arith.constant 0 : index
    %c0_79 = arith.constant 0 : index
    %196 = vector.load %arg10[%c9, %c0_78, %c0_79] : memref<18x24x128xbf16, #tpu.memory_space<vmem>>, vector<8x24x128xbf16>
    %197 = arith.extf %196 : vector<8x24x128xbf16> to vector<8x24x128xf32>
    %198 = vector.extract_strided_slice %197 {offsets = [0, 0, 0], sizes = [8, 16, 128], strides = [1, 1, 1]} : vector<8x24x128xf32> to vector<8x16x128xf32>
    %199 = vector.extract_strided_slice %197 {offsets = [0, 1, 0], sizes = [8, 16, 128], strides = [1, 1, 1]} : vector<8x24x128xf32> to vector<8x16x128xf32>
    %200 = vector.extract_strided_slice %197 {offsets = [0, 2, 0], sizes = [8, 16, 128], strides = [1, 1, 1]} : vector<8x24x128xf32> to vector<8x16x128xf32>
    %201 = vector.extract_strided_slice %72 {offsets = [3, 0], sizes = [1, 128], strides = [1, 1]} : vector<9x128xf32> to vector<1x128xf32>
    %202 = vector.shape_cast %201 : vector<1x128xf32> to vector<128xf32>
    %203 = vector.shape_cast %202 : vector<128xf32> to vector<1x1x128xf32>
    %204 = vector.broadcast %203 : vector<1x1x128xf32> to vector<8x16x128xf32>
    %205 = arith.mulf %198, %204 : vector<8x16x128xf32>
    %206 = arith.addf %195, %205 : vector<8x16x128xf32>
    %207 = vector.extract_strided_slice %72 {offsets = [4, 0], sizes = [1, 128], strides = [1, 1]} : vector<9x128xf32> to vector<1x128xf32>
    %208 = vector.shape_cast %207 : vector<1x128xf32> to vector<128xf32>
    %209 = vector.shape_cast %208 : vector<128xf32> to vector<1x1x128xf32>
    %210 = vector.broadcast %209 : vector<1x1x128xf32> to vector<8x16x128xf32>
    %211 = arith.mulf %199, %210 : vector<8x16x128xf32>
    %212 = arith.addf %206, %211 : vector<8x16x128xf32>
    %213 = vector.extract_strided_slice %72 {offsets = [5, 0], sizes = [1, 128], strides = [1, 1]} : vector<9x128xf32> to vector<1x128xf32>
    %214 = vector.shape_cast %213 : vector<1x128xf32> to vector<128xf32>
    %215 = vector.shape_cast %214 : vector<128xf32> to vector<1x1x128xf32>
    %216 = vector.broadcast %215 : vector<1x1x128xf32> to vector<8x16x128xf32>
    %217 = arith.mulf %200, %216 : vector<8x16x128xf32>
    %218 = arith.addf %212, %217 : vector<8x16x128xf32>
    %c10 = arith.constant 10 : index
    %c0_80 = arith.constant 0 : index
    %c0_81 = arith.constant 0 : index
    %219 = vector.load %arg10[%c10, %c0_80, %c0_81] : memref<18x24x128xbf16, #tpu.memory_space<vmem>>, vector<8x24x128xbf16>
    %220 = arith.extf %219 : vector<8x24x128xbf16> to vector<8x24x128xf32>
    %221 = vector.extract_strided_slice %220 {offsets = [0, 0, 0], sizes = [8, 16, 128], strides = [1, 1, 1]} : vector<8x24x128xf32> to vector<8x16x128xf32>
    %222 = vector.extract_strided_slice %220 {offsets = [0, 1, 0], sizes = [8, 16, 128], strides = [1, 1, 1]} : vector<8x24x128xf32> to vector<8x16x128xf32>
    %223 = vector.extract_strided_slice %220 {offsets = [0, 2, 0], sizes = [8, 16, 128], strides = [1, 1, 1]} : vector<8x24x128xf32> to vector<8x16x128xf32>
    %224 = vector.extract_strided_slice %72 {offsets = [6, 0], sizes = [1, 128], strides = [1, 1]} : vector<9x128xf32> to vector<1x128xf32>
    %225 = vector.shape_cast %224 : vector<1x128xf32> to vector<128xf32>
    %226 = vector.shape_cast %225 : vector<128xf32> to vector<1x1x128xf32>
    %227 = vector.broadcast %226 : vector<1x1x128xf32> to vector<8x16x128xf32>
    %228 = arith.mulf %221, %227 : vector<8x16x128xf32>
    %229 = arith.addf %218, %228 : vector<8x16x128xf32>
    %230 = vector.extract_strided_slice %72 {offsets = [7, 0], sizes = [1, 128], strides = [1, 1]} : vector<9x128xf32> to vector<1x128xf32>
    %231 = vector.shape_cast %230 : vector<1x128xf32> to vector<128xf32>
    %232 = vector.shape_cast %231 : vector<128xf32> to vector<1x1x128xf32>
    %233 = vector.broadcast %232 : vector<1x1x128xf32> to vector<8x16x128xf32>
    %234 = arith.mulf %222, %233 : vector<8x16x128xf32>
    %235 = arith.addf %229, %234 : vector<8x16x128xf32>
    %236 = vector.extract_strided_slice %72 {offsets = [8, 0], sizes = [1, 128], strides = [1, 1]} : vector<9x128xf32> to vector<1x128xf32>
    %237 = vector.shape_cast %236 : vector<1x128xf32> to vector<128xf32>
    %238 = vector.shape_cast %237 : vector<128xf32> to vector<1x1x128xf32>
    %239 = vector.broadcast %238 : vector<1x1x128xf32> to vector<8x16x128xf32>
    %240 = arith.mulf %223, %239 : vector<8x16x128xf32>
    %241 = arith.addf %235, %240 : vector<8x16x128xf32>
    %c0_82 = arith.constant 0 : index
    %c0_83 = arith.constant 0 : index
    %242 = vector.load %arg6[%c0_82, %c0_83] : memref<1x128xf32, #tpu.memory_space<vmem>>, vector<1x128xf32>
    %243 = vector.shape_cast %242 : vector<1x128xf32> to vector<128xf32>
    %244 = vector.shape_cast %243 : vector<128xf32> to vector<1x1x128xf32>
    %245 = vector.broadcast %244 : vector<1x1x128xf32> to vector<8x16x128xf32>
    %246 = arith.addf %241, %245 : vector<8x16x128xf32>
    %cst_84 = arith.constant 0.000000e+00 : f32
    %cst_85 = arith.constant 6.000000e+00 : f32
    %247 = vector.broadcast %cst_84 : f32 to vector<8x16x128xf32>
    %248 = arith.maximumf %247, %246 : vector<8x16x128xf32>
    %249 = vector.broadcast %cst_85 : f32 to vector<8x16x128xf32>
    %250 = arith.minimumf %249, %248 : vector<8x16x128xf32>
    %251 = vector.shape_cast %250 : vector<8x16x128xf32> to vector<128x128xf32>
    %252 = arith.truncf %251 : vector<128x128xf32> to vector<128x128xbf16>
    %c0_86 = arith.constant 0 : index
    %c0_87 = arith.constant 0 : index
    %253 = vector.load %arg7[%c0_86, %c0_87] : memref<128x128xbf16, #tpu.memory_space<vmem>>, vector<128x128xbf16>
    %cst_88 = arith.constant dense<0.000000e+00> : vector<128x128xf32>
    %254 = tpu.matmul %252, %253, %cst_88 {dimension_numbers = #tpu.dot_dimension_numbers<[1], [0], [0], [1], [0, 0, 1, 1], [], []>} : vector<128x128xbf16>, vector<128x128xbf16>, vector<128x128xf32> -> vector<128x128xf32>
    %c0_89 = arith.constant 0 : index
    %c0_90 = arith.constant 0 : index
    %255 = vector.load %arg8[%c0_89, %c0_90] : memref<1x128xf32, #tpu.memory_space<vmem>>, vector<1x128xf32>
    %256 = vector.shape_cast %255 : vector<1x128xf32> to vector<128xf32>
    %257 = vector.shape_cast %256 : vector<128xf32> to vector<1x128xf32>
    %258 = vector.broadcast %257 : vector<1x128xf32> to vector<128x128xf32>
    %259 = arith.addf %254, %258 : vector<128x128xf32>
    %260 = vector.shape_cast %259 : vector<128x128xf32> to vector<8x16x128xf32>
    %c1_i32_91 = arith.constant 1 : i32
    %261 = arith.addi %1, %c1_i32_91 : i32
    %c8_i32_92 = arith.constant 8 : i32
    %262 = arith.addi %261, %c8_i32_92 : i32
    %c0_93 = arith.constant 0 : index
    %263 = arith.index_cast %262 : i32 to index
    %c0_94 = arith.constant 0 : index
    %c0_95 = arith.constant 0 : index
    %264 = vector.load %arg2[%c0_93, %263, %c0_94, %c0_95] : memref<1x18x24x128xf32, #tpu.memory_space<vmem>>, vector<1x8x24x128xf32>
    %265 = vector.shape_cast %264 : vector<1x8x24x128xf32> to vector<8x24x128xf32>
    %266 = vector.extract_strided_slice %265 {offsets = [0, 1, 0], sizes = [8, 16, 128], strides = [1, 1, 1]} : vector<8x24x128xf32> to vector<8x16x128xf32>
    %267 = arith.addf %260, %266 : vector<8x16x128xf32>
    %c0_96 = arith.constant 0 : index
    %c8_97 = arith.constant 8 : index
    %c0_98 = arith.constant 0 : index
    %c0_99 = arith.constant 0 : index
    %268 = vector.load %arg9[%c0_96, %c8_97, %c0_98, %c0_99] : memref<1x16x16x128xf32, #tpu.memory_space<vmem>>, vector<1x8x16x128xf32>
    %269 = vector.shape_cast %268 : vector<1x8x16x128xf32> to vector<8x16x128xf32>
    %270 = vector.shape_cast %267 : vector<8x16x128xf32> to vector<1x8x16x128xf32>
    tpu.vector_store %arg9[%c0_96, %c8_97, %c0_98, %c0_99], %270 {strides = array<i32>} : memref<1x16x16x128xf32, #tpu.memory_space<vmem>>, vector<1x8x16x128xf32>,
    return
  }
  func.func @transform_0(%arg0: i32, %arg1: i32) -> (i32, i32, i32, i32) {
    %c0_i32 = arith.constant 0 : i32
    %c0_i32_0 = arith.constant 0 : i32
    %c0_i32_1 = arith.constant 0 : i32
    %c0_i32_2 = arith.constant 0 : i32
    return %arg0, %c0_i32, %c0_i32_0, %c0_i32_1 : i32, i32, i32, i32
  }
  func.func @transform_1(%arg0: i32, %arg1: i32) -> (i32, i32) {
    %c0_i32 = arith.constant 0 : i32
    %c0_i32_0 = arith.constant 0 : i32
    %c0_i32_1 = arith.constant 0 : i32
    return %c0_i32, %c0_i32_0 : i32, i32
  }
  func.func @transform_2(%arg0: i32, %arg1: i32) -> (i32, i32) {
    %c0_i32 = arith.constant 0 : i32
    %c0_i32_0 = arith.constant 0 : i32
    %c0_i32_1 = arith.constant 0 : i32
    return %c0_i32, %c0_i32_0 : i32, i32
  }
  func.func @transform_3(%arg0: i32, %arg1: i32) -> (i32, i32) {
    %c0_i32 = arith.constant 0 : i32
    %c0_i32_0 = arith.constant 0 : i32
    %c0_i32_1 = arith.constant 0 : i32
    return %c0_i32, %c0_i32_0 : i32, i32
  }
  func.func @transform_4(%arg0: i32, %arg1: i32) -> (i32, i32) {
    %c0_i32 = arith.constant 0 : i32
    %c0_i32_0 = arith.constant 0 : i32
    %c0_i32_1 = arith.constant 0 : i32
    return %c0_i32, %c0_i32_0 : i32, i32
  }
  func.func @transform_5(%arg0: i32, %arg1: i32) -> (i32, i32) {
    %c0_i32 = arith.constant 0 : i32
    %c0_i32_0 = arith.constant 0 : i32
    %c0_i32_1 = arith.constant 0 : i32
    return %c0_i32, %c0_i32_0 : i32, i32
  }
  func.func @transform_6(%arg0: i32, %arg1: i32) -> (i32, i32) {
    %c0_i32 = arith.constant 0 : i32
    %c0_i32_0 = arith.constant 0 : i32
    %c0_i32_1 = arith.constant 0 : i32
    return %c0_i32, %c0_i32_0 : i32, i32
  }
  func.func @transform_7(%arg0: i32, %arg1: i32) -> (i32, i32, i32, i32) {
    %c0_i32 = arith.constant 0 : i32
    %c0_i32_0 = arith.constant 0 : i32
    %c0_i32_1 = arith.constant 0 : i32
    return %arg0, %arg1, %c0_i32, %c0_i32_0 : i32, i32, i32, i32
  }
}

</mosaic_0001>

<llo_original>
// kernel: inverted_residual.1
$region0: #{inverted_residual.1}
  #allocation0 [shape = 'u32[]', space=smem, size = 0x4, offset = 0x4, fixed_abs, tag = 'smem constant byte address 0x4 - core index']
  #allocation1 [shape = 'u32[72,128]{1,0:T(1,128)}', space=vmem, size = 0x9000, scoped, tag = 'internal scratch']
  #allocation2 [shape = 'bf16[18,24,128]{2,1,0:T(8,128)(2,1)}', space=vmem, size = 0x1b000, scoped, tag = 'scratch operand']
  %s0 = inlined_call_operand.vmem [shape: f32[2,18,24,128], index: 0, kind: input, shape index: {}]
  %s1 = inlined_call_operand.vmem [shape: bf16[128,128], index: 1, kind: input, shape index: {}]
  %s2 = inlined_call_operand.vmem [shape: f32[1,128], index: 2, kind: input, shape index: {}]
  %s3 = inlined_call_operand.vmem [shape: f32[9,128], index: 3, kind: input, shape index: {}]
  %s4 = inlined_call_operand.vmem [shape: f32[1,128], index: 4, kind: input, shape index: {}]
  %s5 = inlined_call_operand.vmem [shape: bf16[128,128], index: 5, kind: input, shape index: {}]
  %s6 = inlined_call_operand.vmem [shape: f32[1,128], index: 6, kind: input, shape index: {}]
  %s7 = inlined_call_operand.vmem [shape: f32[2,16,16,128], index: 7, kind: output, shape index: {}]
  %s8 = sld [smem:[#allocation0]]
  $region65: #{inverted_residual.1} parent=0
    _
  %s10 = ssub.s32 1, %s8
  %s11 = scalar_select 0, %s10, %s8
  loop: start=0, step=1, limit=4
  $region2: #{inverted_residual.1} parent=0 // loop_pre_header
    _
  $region3: #{inverted_residual.1} parent=0 // loop_header
    %s13 = sphi 0, %s17
    %p14 = scmp.ge.s32.totalorder %s13, 4
    %s20 = sphi 0, %s32
    %s21 = sphi 0, %s28
    %s22 = sphi 0, %s20
    %s23 = sphi 0, %s21
    %s24 = sphi 0, %s22
    %s25 = sphi 0, %s23
    %s35 = sphi 0, %s37
    %s38 = sphi 0, %s35
    %s39 = sphi 0, %s38
    %s55 = sphi 0, %s39
    %s59 = sphi 0, %s59
    %s61 = sphi 0, %s59
    %s62 = sphi 0, %s61
    %s76 = sphi 0, %s62
    %s80 = sphi 0, %s80
    %s82 = sphi 0, %s80
    %s83 = sphi 0, %s82
    %s97 = sphi 0, %s83
    %s101 = sphi 0, %s101
    %s103 = sphi 0, %s101
    %s104 = sphi 0, %s103
    %s118 = sphi 0, %s104
    %s122 = sphi 0, %s122
    %s124 = sphi 0, %s122
    %s125 = sphi 0, %s124
    %s139 = sphi 0, %s125
    %s143 = sphi 0, %s143
    %s145 = sphi 0, %s143
    %s146 = sphi 0, %s145
    %s160 = sphi 0, %s146
    %s164 = sphi 0, %s164
    %s166 = sphi 0, %s164
    %s167 = sphi 0, %s166
    %s181 = sphi 0, %s167
    %s189 = sphi 0, %s191
    %s192 = sphi 0, %s189
    %s193 = sphi 0, %s192
    %s209 = sphi 0, %s193
  $region4: #{inverted_residual.1} parent=0 // loop_header_branch
    %16 = sbr.rel (%p14) target = $region8
  $region5: #{inverted_residual.1} parent=0 // loop_body
    %s18 = ssub.s32 %s13, 1
    %s19 = ssub.s32 %s13, 2
    %s26 = sadd.s32 1, %s21
    %p27 = scmp.ge.s32.totalorder %s26, 1
    %s28 = scalar_select %p27, 0, %s26
    %s29 = sadd.s32 1, %s20
    %s30 = scalar_select %p27, %s29, %s20
    %p31 = scmp.ge.s32.totalorder %s30, 2
    %s32 = scalar_select %p31, 0, %s30
    %s33 = ssub.s32 %s20, %s32
    %p34 = scmp.eq.s32.totalorder %s33, 0
    %s36 = sadd.s32 %s35, 1
    %s37 = scalar_select %p34, %s35, %s36
    %p40 = pneg %p34
    %p41 = scmp.eq.s32.totalorder %s13, 1
    %p42 = por %p40, %p41
    %p43 = scmp.ne.s32.totalorder %s35, %s38
    %p44 = scmp.eq.s32.totalorder %s13, 0
    %p45 = por %p43, %p44
    %p46 = scmp.ne.s32.totalorder %s35, %s38
    %p47 = scmp.eq.s32.totalorder %s18, 1
    %p48 = por %p46, %p47
    %p49 = scmp.ne.s32.totalorder %s38, %s39
    %p50 = scmp.eq.s32.totalorder %s18, 0
    %p51 = por %p49, %p50
    %p52 = scmp.ne.s32.totalorder %s38, %s39
    %p53 = scmp.eq.s32.totalorder %s19, 1
    %p54 = por %p52, %p53
    %p56 = scmp.ne.s32.totalorder %s39, %s55
    %p57 = scmp.eq.s32.totalorder %s19, 0
    %p58 = por %p56, %p57
    %s60 = sadd.s32 %s59, 1
    %p63 = scmp.eq.s32.totalorder %s13, 1
    %p64 = scmp.ne.s32.totalorder %s59, %s61
    %p65 = scmp.eq.s32.totalorder %s13, 0
    %p66 = por %p64, %p65
    %p67 = scmp.ne.s32.totalorder %s59, %s61
    %p68 = scmp.eq.s32.totalorder %s18, 1
    %p69 = por %p67, %p68
    %p70 = scmp.ne.s32.totalorder %s61, %s62
    %p71 = scmp.eq.s32.totalorder %s18, 0
    %p72 = por %p70, %p71
    %p73 = scmp.ne.s32.totalorder %s61, %s62
    %p74 = scmp.eq.s32.totalorder %s19, 1
    %p75 = por %p73, %p74
    %p77 = scmp.ne.s32.totalorder %s62, %s76
    %p78 = scmp.eq.s32.totalorder %s19, 0
    %p79 = por %p77, %p78
    %s81 = sadd.s32 %s80, 1
    %p84 = scmp.eq.s32.totalorder %s13, 1
    %p85 = scmp.ne.s32.totalorder %s80, %s82
    %p86 = scmp.eq.s32.totalorder %s13, 0
    %p87 = por %p85, %p86
    %p88 = scmp.ne.s32.totalorder %s80, %s82
    %p89 = scmp.eq.s32.totalorder %s18, 1
    %p90 = por %p88, %p89
    %p91 = scmp.ne.s32.totalorder %s82, %s83
    %p92 = scmp.eq.s32.totalorder %s18, 0
    %p93 = por %p91, %p92
    %p94 = scmp.ne.s32.totalorder %s82, %s83
    %p95 = scmp.eq.s32.totalorder %s19, 1
    %p96 = por %p94, %p95
    %p98 = scmp.ne.s32.totalorder %s83, %s97
    %p99 = scmp.eq.s32.totalorder %s19, 0
    %p100 = por %p98, %p99
    %s102 = sadd.s32 %s101, 1
    %p105 = scmp.eq.s32.totalorder %s13, 1
    %p106 = scmp.ne.s32.totalorder %s101, %s103
    %p107 = scmp.eq.s32.totalorder %s13, 0
    %p108 = por %p106, %p107
    %p109 = scmp.ne.s32.totalorder %s101, %s103
    %p110 = scmp.eq.s32.totalorder %s18, 1
    %p111 = por %p109, %p110
    %p112 = scmp.ne.s32.totalorder %s103, %s104
    %p113 = scmp.eq.s32.totalorder %s18, 0
    %p114 = por %p112, %p113
    %p115 = scmp.ne.s32.totalorder %s103, %s104
    %p116 = scmp.eq.s32.totalorder %s19, 1
    %p117 = por %p115, %p116
    %p119 = scmp.ne.s32.totalorder %s104, %s118
    %p120 = scmp.eq.s32.totalorder %s19, 0
    %p121 = por %p119, %p120
    %s123 = sadd.s32 %s122, 1
    %p126 = scmp.eq.s32.totalorder %s13, 1
    %p127 = scmp.ne.s32.totalorder %s122, %s124
    %p128 = scmp.eq.s32.totalorder %s13, 0
    %p129 = por %p127, %p128
    %p130 = scmp.ne.s32.totalorder %s122, %s124
    %p131 = scmp.eq.s32.totalorder %s18, 1
    %p132 = por %p130, %p131
    %p133 = scmp.ne.s32.totalorder %s124, %s125
    %p134 = scmp.eq.s32.totalorder %s18, 0
    %p135 = por %p133, %p134
    %p136 = scmp.ne.s32.totalorder %s124, %s125
    %p137 = scmp.eq.s32.totalorder %s19, 1
    %p138 = por %p136, %p137
    %p140 = scmp.ne.s32.totalorder %s125, %s139
    %p141 = scmp.eq.s32.totalorder %s19, 0
    %p142 = por %p140, %p141
    %s144 = sadd.s32 %s143, 1
    %p147 = scmp.eq.s32.totalorder %s13, 1
    %p148 = scmp.ne.s32.totalorder %s143, %s145
    %p149 = scmp.eq.s32.totalorder %s13, 0
    %p150 = por %p148, %p149
    %p151 = scmp.ne.s32.totalorder %s143, %s145
    %p152 = scmp.eq.s32.totalorder %s18, 1
    %p153 = por %p151, %p152
    %p154 = scmp.ne.s32.totalorder %s145, %s146
    %p155 = scmp.eq.s32.totalorder %s18, 0
    %p156 = por %p154, %p155
    %p157 = scmp.ne.s32.totalorder %s145, %s146
    %p158 = scmp.eq.s32.totalorder %s19, 1
    %p159 = por %p157, %p158
    %p161 = scmp.ne.s32.totalorder %s146, %s160
    %p162 = scmp.eq.s32.totalorder %s19, 0
    %p163 = por %p161, %p162
    %s165 = sadd.s32 %s164, 1
    %p168 = scmp.eq.s32.totalorder %s13, 1
    %p169 = scmp.ne.s32.totalorder %s164, %s166
    %p170 = scmp.eq.s32.totalorder %s13, 0
    %p171 = por %p169, %p170
    %p172 = scmp.ne.s32.totalorder %s164, %s166
    %p173 = scmp.eq.s32.totalorder %s18, 1
    %p174 = por %p172, %p173
    %p175 = scmp.ne.s32.totalorder %s166, %s167
    %p176 = scmp.eq.s32.totalorder %s18, 0
    %p177 = por %p175, %p176
    %p178 = scmp.ne.s32.totalorder %s166, %s167
    %p179 = scmp.eq.s32.totalorder %s19, 1
    %p180 = por %p178, %p179
    %p182 = scmp.ne.s32.totalorder %s167, %s181
    %p183 = scmp.eq.s32.totalorder %s19, 0
    %p184 = por %p182, %p183
    %s185 = ssub.s32 %s20, %s32
    %s186 = ssub.s32 %s21, %s28
    %s187 = sor.u32 %s185, %s186
    %p188 = scmp.eq.s32.totalorder %s187, 0
    %s190 = sadd.s32 %s189, 1
    %s191 = scalar_select %p188, %s189, %s190
    %p194 = pneg %p188
    %p195 = scmp.eq.s32.totalorder %s13, 1
    %p196 = por %p194, %p195
    %p197 = scmp.ne.s32.totalorder %s189, %s192
    %p198 = scmp.eq.s32.totalorder %s13, 0
    %p199 = por %p197, %p198
    %p200 = scmp.ne.s32.totalorder %s189, %s192
    %p201 = scmp.eq.s32.totalorder %s18, 1
    %p202 = por %p200, %p201
    %p203 = scmp.ne.s32.totalorder %s192, %s193
    %p204 = scmp.eq.s32.totalorder %s18, 0
    %p205 = por %p203, %p204
    %p206 = scmp.ne.s32.totalorder %s192, %s193
    %p207 = scmp.eq.s32.totalorder %s19, 1
    %p208 = por %p206, %p207
    %p210 = scmp.ne.s32.totalorder %s193, %s209
    %p211 = scmp.eq.s32.totalorder %s19, 0
    %p212 = por %p210, %p211
    %p213 = scmp.le.s32.totalorder 1, %s13
    %p214 = scmp.lt.s32.totalorder %s13, 3
    %p215 = pnand %p213, %p214
    %p216 = pneg %p215
    // Predicated region
    $region9: #{inverted_residual.1} parent=5 // pred_check
      _
    $region10: #{inverted_residual.1} parent=5 // pred_check_branch
      %218 = sbr.rel (%p215) target = $region12
    $region11: #{inverted_residual.1} parent=5 // pred_region
      %s219 = ssub.s32 %s13, 1
      // Predicated region
      $region13: #{inverted_residual.1} parent=11 // pred_check
        %p220 = pneg %p72
      $region14: #{inverted_residual.1} parent=11 // pred_check_branch
        %222 = sbr.rel (%p220) target = $region16
      $region15: #{inverted_residual.1} parent=11 // pred_region
        _
      $region16: #{inverted_residual.1} parent=11 // pred_fallthru
        _
      // Predicated region
      $region17: #{inverted_residual.1} parent=11 // pred_check
        %p223 = pneg %p93
      $region18: #{inverted_residual.1} parent=11 // pred_check_branch
        %225 = sbr.rel (%p223) target = $region20
      $region19: #{inverted_residual.1} parent=11 // pred_region
        _
      $region20: #{inverted_residual.1} parent=11 // pred_fallthru
        _
      // Predicated region
      $region21: #{inverted_residual.1} parent=11 // pred_check
        %p226 = pneg %p114
      $region22: #{inverted_residual.1} parent=11 // pred_check_branch
        %228 = sbr.rel (%p226) target = $region24
      $region23: #{inverted_residual.1} parent=11 // pred_region
        _
      $region24: #{inverted_residual.1} parent=11 // pred_fallthru
        _
      // Predicated region
      $region25: #{inverted_residual.1} parent=11 // pred_check
        %p229 = pneg %p135
      $region26: #{inverted_residual.1} parent=11 // pred_check_branch
        %231 = sbr.rel (%p229) target = $region28
      $region27: #{inverted_residual.1} parent=11 // pred_region
        _
      $region28: #{inverted_residual.1} parent=11 // pred_fallthru
        _
      // Predicated region
      $region29: #{inverted_residual.1} parent=11 // pred_check
        %p232 = pneg %p156
      $region30: #{inverted_residual.1} parent=11 // pred_check_branch
        %234 = sbr.rel (%p232) target = $region32
      $region31: #{inverted_residual.1} parent=11 // pred_region
        _
      $region32: #{inverted_residual.1} parent=11 // pred_fallthru
        _
      // Predicated region
      $region33: #{inverted_residual.1} parent=11 // pred_check
        %p235 = pneg %p177
      $region34: #{inverted_residual.1} parent=11 // pred_check_branch
        %237 = sbr.rel (%p235) target = $region36
      $region35: #{inverted_residual.1} parent=11 // pred_region
        _
      $region36: #{inverted_residual.1} parent=11 // pred_fallthru
        _
    $region12: #{inverted_residual.1} parent=5 // pred_fallthru
      _
    %p238 = scmp.lt.s32.totalorder %s13, 2
    // Predicated region
    $region37: #{inverted_residual.1} parent=5 // pred_check
      %p239 = pneg %p238
    $region38: #{inverted_residual.1} parent=5 // pred_check_branch
      %241 = sbr.rel (%p239) target = $region40
    $region39: #{inverted_residual.1} parent=5 // pred_region
      // Predicated region
      $region41: #{inverted_residual.1} parent=39 // pred_check
        %p242 = pneg %p45
      $region42: #{inverted_residual.1} parent=39 // pred_check_branch
        %244 = sbr.rel (%p242) target = $region44
      $region43: #{inverted_residual.1} parent=39 // pred_region
        %p245 = scmp.lt.s32.totalorder %s20, 1
        %s246 = scalar_select %p245, %s20, 1
        %s247 = smul.addr %s246, 54
        %s248 = smul.addr %s247, 8
        %s249 = scalar_lea.vmem %s0, %s248
      $region44: #{inverted_residual.1} parent=39 // pred_fallthru
        _
    $region40: #{inverted_residual.1} parent=5 // pred_fallthru
      _
    %p250 = scmp.le.s32.totalorder 1, %s13
    %p251 = scmp.lt.s32.totalorder %s13, 3
    %p252 = pnand %p250, %p251
    %p253 = pneg %p252
    // Predicated region
    $region45: #{inverted_residual.1} parent=5 // pred_check
      _
    $region46: #{inverted_residual.1} parent=5 // pred_check_branch
      %255 = sbr.rel (%p252) target = $region48
    $region47: #{inverted_residual.1} parent=5 // pred_region
      %s256 = ssub.s32 %s13, 1
      %p257 = scmp.lt.s32.totalorder %s22, 1
      %s258 = scalar_select %p257, %s22, 1
      %s259 = smul.addr %s258, 54
      %s260 = smul.addr %s259, 8
      %s261 = scalar_lea.vmem %s0, %s260
      %p262 = pneg %p51
      %p263 = pneg %p48
      %p264 = pneg %p72
      %p265 = pneg %p69
      %p266 = pneg %p93
      %p267 = pneg %p90
      %p268 = pneg %p114
      %p269 = pneg %p111
      %p270 = pneg %p135
      %p271 = pneg %p132
      %p272 = pneg %p156
      %p273 = pneg %p153
      %p274 = pneg %p177
      %p275 = pneg %p174
      %p276 = pneg %p205
      %p277 = pneg %p202
      %s278 = smul.u32 16, %s23
      %p279 = scmp.lt.s32.totalorder %s22, 1
      %s280 = scalar_select %p279, %s22, 1
      %p281 = scmp.lt.s32.totalorder %s278, 15
      %s282 = scalar_select %p281, %s278, 15
      %s283 = smul.addr %s282, 2
      %s284 = smul.addr %s280, 32
      %s285 = sadd.s32 %s283, %s284
      %s286 = smul.addr %s285, 8
      %s287 = scalar_lea.vmem %s7, %s286
      %p288 = scmp.lt.s32.totalorder %s22, 1
      %s289 = scalar_select %p288, %s22, 1
      %s290 = smul.addr %s289, 54
      %s291 = smul.addr %s290, 8
      %s292 = scalar_lea.vmem %s0, %s291
      %s293 = smul.u32 16, %s23
      %p294 = scmp.lt.s32.totalorder %s22, 1
      %s295 = scalar_select %p294, %s22, 1
      %p296 = scmp.lt.s32.totalorder %s293, 15
      %s297 = scalar_select %p296, %s293, 15
      %s298 = smul.addr %s297, 2
      %s299 = smul.addr %s295, 32
      %s300 = sadd.s32 %s298, %s299
      %s301 = smul.addr %s300, 8
      %s302 = scalar_lea.vmem %s7, %s301
      %s303 = smul.u32 16, %s23
      %s305 = smul.u32 %s23, 16
      %s306 = smul.u32 %s305, 24
      %s307 = scalar_lea.vmem %s292, %s306
      %v308 = vld [vmem:[%s307] sm:$0xff]
      %v309 = vld [vmem:[%s307 + $0x8] sm:$0xff]
      %v310 = vld [vmem:[%s307 + $0x10] sm:$0xff]
      %v311 = vld [vmem:[%s307 + $0x18] sm:$0xff]
      %v312 = vld [vmem:[%s307 + $0x20] sm:$0xff]
      %v313 = vld [vmem:[%s307 + $0x28] sm:$0xff]
      %v314 = vld [vmem:[%s307 + $0x30] sm:$0xff]
      %v315 = vld [vmem:[%s307 + $0x38] sm:$0xff]
      %v316 = vld [vmem:[%s307 + $0x40] sm:$0xff]
      %v317 = vld [vmem:[%s307 + $0x48] sm:$0xff]
      %v318 = vld [vmem:[%s307 + $0x50] sm:$0xff]
      %v319 = vld [vmem:[%s307 + $0x58] sm:$0xff]
      %v320 = vld [vmem:[%s307 + $0x60] sm:$0xff]
      %v321 = vld [vmem:[%s307 + $0x68] sm:$0xff]
      %v322 = vld [vmem:[%s307 + $0x70] sm:$0xff]
      %v323 = vld [vmem:[%s307 + $0x78] sm:$0xff]
      %v324 = vld [vmem:[%s307 + $0x80] sm:$0xff]
      %v325 = vld [vmem:[%s307 + $0x88] sm:$0xff]
      %v326 = vld [vmem:[%s307 + $0x90] sm:$0xff]
      %v327 = vld [vmem:[%s307 + $0x98] sm:$0xff]
      %v328 = vld [vmem:[%s307 + $0xa0] sm:$0xff]
      %v329 = vld [vmem:[%s307 + $0xa8] sm:$0xff]
      %v330 = vld [vmem:[%s307 + $0xb0] sm:$0xff]
      %v331 = vld [vmem:[%s307 + $0xb8] sm:$0xff]
      %v332 = vpack.c.bf16 %v309, %v308
      %v333 = vpack.c.bf16 %v311, %v310
      %v334 = vpack.c.bf16 %v313, %v312
      %v335 = vpack.c.bf16 %v315, %v314
      %v336 = vpack.c.bf16 %v317, %v316
      %v337 = vpack.c.bf16 %v319, %v318
      %v338 = vpack.c.bf16 %v321, %v320
      %v339 = vpack.c.bf16 %v323, %v322
      %v340 = vpack.c.bf16 %v325, %v324
      %v341 = vpack.c.bf16 %v327, %v326
      %v342 = vpack.c.bf16 %v329, %v328
      %v343 = vpack.c.bf16 %v331, %v330
      %v344 = vld [vmem:[%s1] sm:$0xf]
      %v345 = vld [vmem:[%s1 + $0x4] sm:$0xf]
      %v346 = vld [vmem:[%s1 + $0x8] sm:$0xf]
      %v347 = vld [vmem:[%s1 + $0xc] sm:$0xf]
      %v348 = vld [vmem:[%s1 + $0x10] sm:$0xf]
      %v349 = vld [vmem:[%s1 + $0x14] sm:$0xf]
      %v350 = vld [vmem:[%s1 + $0x18] sm:$0xf]
      %v351 = vld [vmem:[%s1 + $0x1c] sm:$0xf]
      %v352 = vld [vmem:[%s1 + $0x20] sm:$0xf]
      %v353 = vld [vmem:[%s1 + $0x24] sm:$0xf]
      %v354 = vld [vmem:[%s1 + $0x28] sm:$0xf]
      %v355 = vld [vmem:[%s1 + $0x2c] sm:$0xf]
      %v356 = vld [vmem:[%s1 + $0x30] sm:$0xf]
      %v357 = vld [vmem:[%s1 + $0x34] sm:$0xf]
      %v358 = vld [vmem:[%s1 + $0x38] sm:$0xf]
      %v359 = vld [vmem:[%s1 + $0x3c] sm:$0xf]
      %v360 = vld [vmem:[%s2] sm:$0x1]
      %v362 = vperm.slane %v360, 0
      %v380 = vunpack.c.l.b16 %v344
      %v381 = vunpack.c.l.b16 %v345
      %v382 = vunpack.c.l.b16 %v346
      %v383 = vunpack.c.l.b16 %v347
      %v384 = vunpack.c.l.b16 %v348
      %v385 = vunpack.c.l.b16 %v349
      %v386 = vunpack.c.l.b16 %v350
      %v387 = vunpack.c.l.b16 %v351
      %v388 = vunpack.c.l.b16 %v352
      %v389 = vunpack.c.l.b16 %v353
      %v390 = vunpack.c.l.b16 %v354
      %v391 = vunpack.c.l.b16 %v355
      %v392 = vunpack.c.l.b16 %v356
      %v393 = vunpack.c.l.b16 %v357
      %v394 = vunpack.c.l.b16 %v358
      %v395 = vunpack.c.l.b16 %v359
      %v396 = vpack.c.b16 %v381, %v380
      %v397 = vpack.c.b16 %v383, %v382
      %v398 = vpack.c.b16 %v385, %v384
      %v399 = vpack.c.b16 %v387, %v386
      %v400 = vpack.c.b16 %v389, %v388
      %v401 = vpack.c.b16 %v391, %v390
      %v402 = vpack.c.b16 %v393, %v392
      %v403 = vpack.c.b16 %v395, %v394
      %412 = vmatpush.bf16.msra.mxu0 %v403
      %413 = vmatpush.bf16.msra.mxu0 %v402
      %414 = vmatpush.bf16.msra.mxu0 %v401
      %415 = vmatpush.bf16.msra.mxu0 %v400
      %416 = vmatpush.bf16.msra.mxu0 %v399
      %417 = vmatpush.bf16.msra.mxu0 %v398
      %418 = vmatpush.bf16.msra.mxu0 %v397
      %419 = vmatpush.bf16.msra.mxu0 %v396
      %420 = vmatmul.bf16.gmra.mxu0 %v332
      %v421 = vpop.f32.mrf.mxu0
      %v422 = vadd.f32 %v362, %v421
      %v423 = vpop.f32.mrf.mxu0
      %v424 = vadd.f32 %v362, %v423
      %425 = vmatmul.bf16.gmra.mxu0 %v333
      %v426 = vpop.f32.mrf.mxu0
      %v427 = vadd.f32 %v362, %v426
      %v428 = vpop.f32.mrf.mxu0
      %v429 = vadd.f32 %v362, %v428
      %430 = vmatmul.bf16.gmra.mxu0 %v334
      %v431 = vpop.f32.mrf.mxu0
      %v432 = vadd.f32 %v362, %v431
      %v433 = vpop.f32.mrf.mxu0
      %v434 = vadd.f32 %v362, %v433
      %435 = vmatmul.bf16.gmra.mxu0 %v335
      %v436 = vpop.f32.mrf.mxu0
      %v437 = vadd.f32 %v362, %v436
      %v438 = vpop.f32.mrf.mxu0
      %v439 = vadd.f32 %v362, %v438
      %440 = vmatmul.bf16.gmra.mxu0 %v336
      %v441 = vpop.f32.mrf.mxu0
      %v442 = vadd.f32 %v362, %v441
      %v443 = vpop.f32.mrf.mxu0
      %v444 = vadd.f32 %v362, %v443
      %445 = vmatmul.bf16.gmra.mxu0 %v337
      %v446 = vpop.f32.mrf.mxu0
      %v447 = vadd.f32 %v362, %v446
      %v448 = vpop.f32.mrf.mxu0
      %v449 = vadd.f32 %v362, %v448
      %450 = vmatmul.bf16.gmra.mxu0 %v338
      %v451 = vpop.f32.mrf.mxu0
      %v452 = vadd.f32 %v362, %v451
      %v453 = vpop.f32.mrf.mxu0
      %v454 = vadd.f32 %v362, %v453
      %455 = vmatmul.bf16.gmra.mxu0 %v339
      %v456 = vpop.f32.mrf.mxu0
      %v457 = vadd.f32 %v362, %v456
      %v458 = vpop.f32.mrf.mxu0
      %v459 = vadd.f32 %v362, %v458
      %460 = vmatmul.bf16.gmra.mxu0 %v340
      %v461 = vpop.f32.mrf.mxu0
      %v462 = vadd.f32 %v362, %v461
      %v463 = vpop.f32.mrf.mxu0
      %v464 = vadd.f32 %v362, %v463
      %465 = vmatmul.bf16.gmra.mxu0 %v341
      %v466 = vpop.f32.mrf.mxu0
      %v467 = vadd.f32 %v362, %v466
      %v468 = vpop.f32.mrf.mxu0
      %v469 = vadd.f32 %v362, %v468
      %470 = vmatmul.bf16.gmra.mxu0 %v342
      %v471 = vpop.f32.mrf.mxu0
      %v472 = vadd.f32 %v362, %v471
      %v473 = vpop.f32.mrf.mxu0
      %v474 = vadd.f32 %v362, %v473
      %475 = vmatmul.bf16.gmra.mxu0 %v343
      %v476 = vpop.f32.mrf.mxu0
      %v477 = vadd.f32 %v362, %v476
      %v478 = vpop.f32.mrf.mxu0
      %v479 = vadd.f32 %v362, %v478
      %480 = vdwg.mxu0
      %v481 = vmax.f32 %v422, 0.0
      %v482 = vmax.f32 %v424, 0.0
      %v483 = vmax.f32 %v427, 0.0
      %v484 = vmax.f32 %v429, 0.0
      %v485 = vmax.f32 %v432, 0.0
      %v486 = vmax.f32 %v434, 0.0
      %v487 = vmax.f32 %v437, 0.0
      %v488 = vmax.f32 %v439, 0.0
      %v489 = vmax.f32 %v442, 0.0
      %v490 = vmax.f32 %v444, 0.0
      %v491 = vmax.f32 %v447, 0.0
      %v492 = vmax.f32 %v449, 0.0
      %v493 = vmax.f32 %v452, 0.0
      %v494 = vmax.f32 %v454, 0.0
      %v495 = vmax.f32 %v457, 0.0
      %v496 = vmax.f32 %v459, 0.0
      %v497 = vmax.f32 %v462, 0.0
      %v498 = vmax.f32 %v464, 0.0
      %v499 = vmax.f32 %v467, 0.0
      %v500 = vmax.f32 %v469, 0.0
      %v501 = vmax.f32 %v472, 0.0
      %v502 = vmax.f32 %v474, 0.0
      %v503 = vmax.f32 %v477, 0.0
      %v504 = vmax.f32 %v479, 0.0
      %v505 = vmin.f32 %v481, 6.0
      %v506 = vmin.f32 %v482, 6.0
      %v507 = vmin.f32 %v483, 6.0
      %v508 = vmin.f32 %v484, 6.0
      %v509 = vmin.f32 %v485, 6.0
      %v510 = vmin.f32 %v486, 6.0
      %v511 = vmin.f32 %v487, 6.0
      %v512 = vmin.f32 %v488, 6.0
      %v513 = vmin.f32 %v489, 6.0
      %v514 = vmin.f32 %v490, 6.0
      %v515 = vmin.f32 %v491, 6.0
      %v516 = vmin.f32 %v492, 6.0
      %v517 = vmin.f32 %v493, 6.0
      %v518 = vmin.f32 %v494, 6.0
      %v519 = vmin.f32 %v495, 6.0
      %v520 = vmin.f32 %v496, 6.0
      %v521 = vmin.f32 %v497, 6.0
      %v522 = vmin.f32 %v498, 6.0
      %v523 = vmin.f32 %v499, 6.0
      %v524 = vmin.f32 %v500, 6.0
      %v525 = vmin.f32 %v501, 6.0
      %v526 = vmin.f32 %v502, 6.0
      %v527 = vmin.f32 %v503, 6.0
      %v528 = vmin.f32 %v504, 6.0
      %v529 = vpack.c.bf16 %v505, %v505
      %v530 = vpack.c.bf16 %v506, %v506
      %v531 = vpack.c.bf16 %v507, %v507
      %v532 = vpack.c.bf16 %v508, %v508
      %v533 = vpack.c.bf16 %v509, %v509
      %v534 = vpack.c.bf16 %v510, %v510
      %v535 = vpack.c.bf16 %v511, %v511
      %v536 = vpack.c.bf16 %v512, %v512
      %v537 = vpack.c.bf16 %v513, %v513
      %v538 = vpack.c.bf16 %v514, %v514
      %v539 = vpack.c.bf16 %v515, %v515
      %v540 = vpack.c.bf16 %v516, %v516
      %v541 = vpack.c.bf16 %v517, %v517
      %v542 = vpack.c.bf16 %v518, %v518
      %v543 = vpack.c.bf16 %v519, %v519
      %v544 = vpack.c.bf16 %v520, %v520
      %v545 = vpack.c.bf16 %v521, %v521
      %v546 = vpack.c.bf16 %v522, %v522
      %v547 = vpack.c.bf16 %v523, %v523
      %v548 = vpack.c.bf16 %v524, %v524
      %v549 = vpack.c.bf16 %v525, %v525
      %v550 = vpack.c.bf16 %v526, %v526
      %v551 = vpack.c.bf16 %v527, %v527
      %v552 = vpack.c.bf16 %v528, %v528
      %553 = vst [vmem:[#allocation2] sm:$0xf] %v529
      %554 = vst [vmem:[#allocation2 + $0x4] sm:$0xf] %v530
      %555 = vst [vmem:[#allocation2 + $0x8] sm:$0xf] %v531
      %556 = vst [vmem:[#allocation2 + $0xc] sm:$0xf] %v532
      %557 = vst [vmem:[#allocation2 + $0x10] sm:$0xf] %v533
      %558 = vst [vmem:[#allocation2 + $0x14] sm:$0xf] %v534
      %559 = vst [vmem:[#allocation2 + $0x18] sm:$0xf] %v535
      %560 = vst [vmem:[#allocation2 + $0x1c] sm:$0xf] %v536
      %561 = vst [vmem:[#allocation2 + $0x20] sm:$0xf] %v537
      %562 = vst [vmem:[#allocation2 + $0x24] sm:$0xf] %v538
      %563 = vst [vmem:[#allocation2 + $0x28] sm:$0xf] %v539
      %564 = vst [vmem:[#allocation2 + $0x2c] sm:$0xf] %v540
      %565 = vst [vmem:[#allocation2 + $0x30] sm:$0xf] %v541
      %566 = vst [vmem:[#allocation2 + $0x34] sm:$0xf] %v542
      %567 = vst [vmem:[#allocation2 + $0x38] sm:$0xf] %v543
      %568 = vst [vmem:[#allocation2 + $0x3c] sm:$0xf] %v544
      %569 = vst [vmem:[#allocation2 + $0x40] sm:$0xf] %v545
      %570 = vst [vmem:[#allocation2 + $0x44] sm:$0xf] %v546
      %571 = vst [vmem:[#allocation2 + $0x48] sm:$0xf] %v547
      %572 = vst [vmem:[#allocation2 + $0x4c] sm:$0xf] %v548
      %573 = vst [vmem:[#allocation2 + $0x50] sm:$0xf] %v549
      %574 = vst [vmem:[#allocation2 + $0x54] sm:$0xf] %v550
      %575 = vst [vmem:[#allocation2 + $0x58] sm:$0xf] %v551
      %576 = vst [vmem:[#allocation2 + $0x5c] sm:$0xf] %v552
      %s577 = sadd.s32 %s305, 8
      %s578 = smul.u32 %s577, 24
      %s579 = scalar_lea.vmem %s292, %s578
      %v580 = vld [vmem:[%s579] sm:$0xff]
      %v581 = vld [vmem:[%s579 + $0x8] sm:$0xff]
      %v582 = vld [vmem:[%s579 + $0x10] sm:$0xff]
      %v583 = vld [vmem:[%s579 + $0x18] sm:$0xff]
      %v584 = vld [vmem:[%s579 + $0x20] sm:$0xff]
      %v585 = vld [vmem:[%s579 + $0x28] sm:$0xff]
      %v586 = vld [vmem:[%s579 + $0x30] sm:$0xff]
      %v587 = vld [vmem:[%s579 + $0x38] sm:$0xff]
      %v588 = vld [vmem:[%s579 + $0x40] sm:$0xff]
      %v589 = vld [vmem:[%s579 + $0x48] sm:$0xff]
      %v590 = vld [vmem:[%s579 + $0x50] sm:$0xff]
      %v591 = vld [vmem:[%s579 + $0x58] sm:$0xff]
      %v592 = vld [vmem:[%s579 + $0x60] sm:$0xff]
      %v593 = vld [vmem:[%s579 + $0x68] sm:$0xff]
      %v594 = vld [vmem:[%s579 + $0x70] sm:$0xff]
      %v595 = vld [vmem:[%s579 + $0x78] sm:$0xff]
      %v596 = vld [vmem:[%s579 + $0x80] sm:$0xff]
      %v597 = vld [vmem:[%s579 + $0x88] sm:$0xff]
      %v598 = vld [vmem:[%s579 + $0x90] sm:$0xff]
      %v599 = vld [vmem:[%s579 + $0x98] sm:$0xff]
      %v600 = vld [vmem:[%s579 + $0xa0] sm:$0xff]
      %v601 = vld [vmem:[%s579 + $0xa8] sm:$0xff]
      %v602 = vld [vmem:[%s579 + $0xb0] sm:$0xff]
      %v603 = vld [vmem:[%s579 + $0xb8] sm:$0xff]
      %v604 = vpack.c.bf16 %v581, %v580
      %v605 = vpack.c.bf16 %v583, %v582
      %v606 = vpack.c.bf16 %v585, %v584
      %v607 = vpack.c.bf16 %v587, %v586
      %v608 = vpack.c.bf16 %v589, %v588
      %v609 = vpack.c.bf16 %v591, %v590
      %v610 = vpack.c.bf16 %v593, %v592
      %v611 = vpack.c.bf16 %v595, %v594
      %v612 = vpack.c.bf16 %v597, %v596
      %v613 = vpack.c.bf16 %v599, %v598
      %v614 = vpack.c.bf16 %v601, %v600
      %v615 = vpack.c.bf16 %v603, %v602
      %v616 = vld [vmem:[%s1] sm:$0xf]
      %v617 = vld [vmem:[%s1 + $0x4] sm:$0xf]
      %v618 = vld [vmem:[%s1 + $0x8] sm:$0xf]
      %v619 = vld [vmem:[%s1 + $0xc] sm:$0xf]
      %v620 = vld [vmem:[%s1 + $0x10] sm:$0xf]
      %v621 = vld [vmem:[%s1 + $0x14] sm:$0xf]
      %v622 = vld [vmem:[%s1 + $0x18] sm:$0xf]
      %v623 = vld [vmem:[%s1 + $0x1c] sm:$0xf]
      %v624 = vld [vmem:[%s1 + $0x20] sm:$0xf]
      %v625 = vld [vmem:[%s1 + $0x24] sm:$0xf]
      %v626 = vld [vmem:[%s1 + $0x28] sm:$0xf]
      %v627 = vld [vmem:[%s1 + $0x2c] sm:$0xf]
      %v628 = vld [vmem:[%s1 + $0x30] sm:$0xf]
      %v629 = vld [vmem:[%s1 + $0x34] sm:$0xf]
      %v630 = vld [vmem:[%s1 + $0x38] sm:$0xf]
      %v631 = vld [vmem:[%s1 + $0x3c] sm:$0xf]
      %v632 = vld [vmem:[%s2] sm:$0x1]
      %v634 = vperm.slane %v632, 0
      %v652 = vunpack.c.l.b16 %v616
      %v653 = vunpack.c.l.b16 %v617
      %v654 = vunpack.c.l.b16 %v618
      %v655 = vunpack.c.l.b16 %v619
      %v656 = vunpack.c.l.b16 %v620
      %v657 = vunpack.c.l.b16 %v621
      %v658 = vunpack.c.l.b16 %v622
      %v659 = vunpack.c.l.b16 %v623
      %v660 = vunpack.c.l.b16 %v624
      %v661 = vunpack.c.l.b16 %v625
      %v662 = vunpack.c.l.b16 %v626
      %v663 = vunpack.c.l.b16 %v627
      %v664 = vunpack.c.l.b16 %v628
      %v665 = vunpack.c.l.b16 %v629
      %v666 = vunpack.c.l.b16 %v630
      %v667 = vunpack.c.l.b16 %v631
      %v668 = vpack.c.b16 %v653, %v652
      %v669 = vpack.c.b16 %v655, %v654
      %v670 = vpack.c.b16 %v657, %v656
      %v671 = vpack.c.b16 %v659, %v658
      %v672 = vpack.c.b16 %v661, %v660
      %v673 = vpack.c.b16 %v663, %v662
      %v674 = vpack.c.b16 %v665, %v664
      %v675 = vpack.c.b16 %v667, %v666
      %684 = vmatpush.bf16.msra.mxu0 %v675
      %685 = vmatpush.bf16.msra.mxu0 %v674
      %686 = vmatpush.bf16.msra.mxu0 %v673
      %687 = vmatpush.bf16.msra.mxu0 %v672
      %688 = vmatpush.bf16.msra.mxu0 %v671
      %689 = vmatpush.bf16.msra.mxu0 %v670
      %690 = vmatpush.bf16.msra.mxu0 %v669
      %691 = vmatpush.bf16.msra.mxu0 %v668
      %692 = vmatmul.bf16.gmra.mxu0 %v604
      %v693 = vpop.f32.mrf.mxu0
      %v694 = vadd.f32 %v634, %v693
      %v695 = vpop.f32.mrf.mxu0
      %v696 = vadd.f32 %v634, %v695
      %697 = vmatmul.bf16.gmra.mxu0 %v605
      %v698 = vpop.f32.mrf.mxu0
      %v699 = vadd.f32 %v634, %v698
      %v700 = vpop.f32.mrf.mxu0
      %v701 = vadd.f32 %v634, %v700
      %702 = vmatmul.bf16.gmra.mxu0 %v606
      %v703 = vpop.f32.mrf.mxu0
      %v704 = vadd.f32 %v634, %v703
      %v705 = vpop.f32.mrf.mxu0
      %v706 = vadd.f32 %v634, %v705
      %707 = vmatmul.bf16.gmra.mxu0 %v607
      %v708 = vpop.f32.mrf.mxu0
      %v709 = vadd.f32 %v634, %v708
      %v710 = vpop.f32.mrf.mxu0
      %v711 = vadd.f32 %v634, %v710
      %712 = vmatmul.bf16.gmra.mxu0 %v608
      %v713 = vpop.f32.mrf.mxu0
      %v714 = vadd.f32 %v634, %v713
      %v715 = vpop.f32.mrf.mxu0
      %v716 = vadd.f32 %v634, %v715
      %717 = vmatmul.bf16.gmra.mxu0 %v609
      %v718 = vpop.f32.mrf.mxu0
      %v719 = vadd.f32 %v634, %v718
      %v720 = vpop.f32.mrf.mxu0
      %v721 = vadd.f32 %v634, %v720
      %722 = vmatmul.bf16.gmra.mxu0 %v610
      %v723 = vpop.f32.mrf.mxu0
      %v724 = vadd.f32 %v634, %v723
      %v725 = vpop.f32.mrf.mxu0
      %v726 = vadd.f32 %v634, %v725
      %727 = vmatmul.bf16.gmra.mxu0 %v611
      %v728 = vpop.f32.mrf.mxu0
      %v729 = vadd.f32 %v634, %v728
      %v730 = vpop.f32.mrf.mxu0
      %v731 = vadd.f32 %v634, %v730
      %732 = vmatmul.bf16.gmra.mxu0 %v612
      %v733 = vpop.f32.mrf.mxu0
      %v734 = vadd.f32 %v634, %v733
      %v735 = vpop.f32.mrf.mxu0
      %v736 = vadd.f32 %v634, %v735
      %737 = vmatmul.bf16.gmra.mxu0 %v613
      %v738 = vpop.f32.mrf.mxu0
      %v739 = vadd.f32 %v634, %v738
      %v740 = vpop.f32.mrf.mxu0
      %v741 = vadd.f32 %v634, %v740
      %742 = vmatmul.bf16.gmra.mxu0 %v614
      %v743 = vpop.f32.mrf.mxu0
      %v744 = vadd.f32 %v634, %v743
      %v745 = vpop.f32.mrf.mxu0
      %v746 = vadd.f32 %v634, %v745
      %747 = vmatmul.bf16.gmra.mxu0 %v615
      %v748 = vpop.f32.mrf.mxu0
      %v749 = vadd.f32 %v634, %v748
      %v750 = vpop.f32.mrf.mxu0
      %v751 = vadd.f32 %v634, %v750
      %752 = vdwg.mxu0
      %v753 = vmax.f32 %v694, 0.0
      %v754 = vmax.f32 %v696, 0.0
      %v755 = vmax.f32 %v699, 0.0
      %v756 = vmax.f32 %v701, 0.0
      %v757 = vmax.f32 %v704, 0.0
      %v758 = vmax.f32 %v706, 0.0
      %v759 = vmax.f32 %v709, 0.0
      %v760 = vmax.f32 %v711, 0.0
      %v761 = vmax.f32 %v714, 0.0
      %v762 = vmax.f32 %v716, 0.0
      %v763 = vmax.f32 %v719, 0.0
      %v764 = vmax.f32 %v721, 0.0
      %v765 = vmax.f32 %v724, 0.0
      %v766 = vmax.f32 %v726, 0.0
      %v767 = vmax.f32 %v729, 0.0
      %v768 = vmax.f32 %v731, 0.0
      %v769 = vmax.f32 %v734, 0.0
      %v770 = vmax.f32 %v736, 0.0
      %v771 = vmax.f32 %v739, 0.0
      %v772 = vmax.f32 %v741, 0.0
      %v773 = vmax.f32 %v744, 0.0
      %v774 = vmax.f32 %v746, 0.0
      %v775 = vmax.f32 %v749, 0.0
      %v776 = vmax.f32 %v751, 0.0
      %v777 = vmin.f32 %v753, 6.0
      %v778 = vmin.f32 %v754, 6.0
      %v779 = vmin.f32 %v755, 6.0
      %v780 = vmin.f32 %v756, 6.0
      %v781 = vmin.f32 %v757, 6.0
      %v782 = vmin.f32 %v758, 6.0
      %v783 = vmin.f32 %v759, 6.0
      %v784 = vmin.f32 %v760, 6.0
      %v785 = vmin.f32 %v761, 6.0
      %v786 = vmin.f32 %v762, 6.0
      %v787 = vmin.f32 %v763, 6.0
      %v788 = vmin.f32 %v764, 6.0
      %v789 = vmin.f32 %v765, 6.0
      %v790 = vmin.f32 %v766, 6.0
      %v791 = vmin.f32 %v767, 6.0
      %v792 = vmin.f32 %v768, 6.0
      %v793 = vmin.f32 %v769, 6.0
      %v794 = vmin.f32 %v770, 6.0
      %v795 = vmin.f32 %v771, 6.0
      %v796 = vmin.f32 %v772, 6.0
      %v797 = vmin.f32 %v773, 6.0
      %v798 = vmin.f32 %v774, 6.0
      %v799 = vmin.f32 %v775, 6.0
      %v800 = vmin.f32 %v776, 6.0
      %v801 = vpack.c.bf16 %v777, %v777
      %v802 = vpack.c.bf16 %v778, %v778
      %v803 = vpack.c.bf16 %v779, %v779
      %v804 = vpack.c.bf16 %v780, %v780
      %v805 = vpack.c.bf16 %v781, %v781
      %v806 = vpack.c.bf16 %v782, %v782
      %v807 = vpack.c.bf16 %v783, %v783
      %v808 = vpack.c.bf16 %v784, %v784
      %v809 = vpack.c.bf16 %v785, %v785
      %v810 = vpack.c.bf16 %v786, %v786
      %v811 = vpack.c.bf16 %v787, %v787
      %v812 = vpack.c.bf16 %v788, %v788
      %v813 = vpack.c.bf16 %v789, %v789
      %v814 = vpack.c.bf16 %v790, %v790
      %v815 = vpack.c.bf16 %v791, %v791
      %v816 = vpack.c.bf16 %v792, %v792
      %v817 = vpack.c.bf16 %v793, %v793
      %v818 = vpack.c.bf16 %v794, %v794
      %v819 = vpack.c.bf16 %v795, %v795
      %v820 = vpack.c.bf16 %v796, %v796
      %v821 = vpack.c.bf16 %v797, %v797
      %v822 = vpack.c.bf16 %v798, %v798
      %v823 = vpack.c.bf16 %v799, %v799
      %v824 = vpack.c.bf16 %v800, %v800
      %s825 = scalar_lea.vmem [#allocation2], 96
      %826 = vst [vmem:[%s825] sm:$0xf] %v801
      %827 = vst [vmem:[%s825 + $0x4] sm:$0xf] %v802
      %828 = vst [vmem:[%s825 + $0x8] sm:$0xf] %v803
      %829 = vst [vmem:[%s825 + $0xc] sm:$0xf] %v804
      %830 = vst [vmem:[%s825 + $0x10] sm:$0xf] %v805
      %831 = vst [vmem:[%s825 + $0x14] sm:$0xf] %v806
      %832 = vst [vmem:[%s825 + $0x18] sm:$0xf] %v807
      %833 = vst [vmem:[%s825 + $0x1c] sm:$0xf] %v808
      %834 = vst [vmem:[%s825 + $0x20] sm:$0xf] %v809
      %835 = vst [vmem:[%s825 + $0x24] sm:$0xf] %v810
      %836 = vst [vmem:[%s825 + $0x28] sm:$0xf] %v811
      %837 = vst [vmem:[%s825 + $0x2c] sm:$0xf] %v812
      %838 = vst [vmem:[%s825 + $0x30] sm:$0xf] %v813
      %839 = vst [vmem:[%s825 + $0x34] sm:$0xf] %v814
      %840 = vst [vmem:[%s825 + $0x38] sm:$0xf] %v815
      %841 = vst [vmem:[%s825 + $0x3c] sm:$0xf] %v816
      %842 = vst [vmem:[%s825 + $0x40] sm:$0xf] %v817
      %843 = vst [vmem:[%s825 + $0x44] sm:$0xf] %v818
      %844 = vst [vmem:[%s825 + $0x48] sm:$0xf] %v819
      %845 = vst [vmem:[%s825 + $0x4c] sm:$0xf] %v820
      %846 = vst [vmem:[%s825 + $0x50] sm:$0xf] %v821
      %847 = vst [vmem:[%s825 + $0x54] sm:$0xf] %v822
      %848 = vst [vmem:[%s825 + $0x58] sm:$0xf] %v823
      %849 = vst [vmem:[%s825 + $0x5c] sm:$0xf] %v824
      %s850 = sadd.s32 %s305, 16
      %s851 = smul.u32 %s850, 24
      %s852 = scalar_lea.vmem %s292, %s851
      %v853 = vld [vmem:[%s852] sm:$0xff]
      %v854 = vld [vmem:[%s852 + $0x8] sm:$0xff]
      %v855 = vld [vmem:[%s852 + $0x10] sm:$0xff]
      %v856 = vld [vmem:[%s852 + $0x18] sm:$0xff]
      %v857 = vld [vmem:[%s852 + $0x20] sm:$0xff]
      %v858 = vld [vmem:[%s852 + $0x28] sm:$0xff]
      %v859 = vpack.c.bf16 %v854, %v853
      %v860 = vpack.c.bf16 %v856, %v855
      %v861 = vpack.c.bf16 %v858, %v857
      %v862 = vld [vmem:[%s1] sm:$0xf]
      %v863 = vld [vmem:[%s1 + $0x4] sm:$0xf]
      %v864 = vld [vmem:[%s1 + $0x8] sm:$0xf]
      %v865 = vld [vmem:[%s1 + $0xc] sm:$0xf]
      %v866 = vld [vmem:[%s1 + $0x10] sm:$0xf]
      %v867 = vld [vmem:[%s1 + $0x14] sm:$0xf]
      %v868 = vld [vmem:[%s1 + $0x18] sm:$0xf]
      %v869 = vld [vmem:[%s1 + $0x1c] sm:$0xf]
      %v870 = vld [vmem:[%s1 + $0x20] sm:$0xf]
      %v871 = vld [vmem:[%s1 + $0x24] sm:$0xf]
      %v872 = vld [vmem:[%s1 + $0x28] sm:$0xf]
      %v873 = vld [vmem:[%s1 + $0x2c] sm:$0xf]
      %v874 = vld [vmem:[%s1 + $0x30] sm:$0xf]
      %v875 = vld [vmem:[%s1 + $0x34] sm:$0xf]
      %v876 = vld [vmem:[%s1 + $0x38] sm:$0xf]
      %v877 = vld [vmem:[%s1 + $0x3c] sm:$0xf]
      %v878 = vld [vmem:[%s2] sm:$0x1]
      %v880 = vperm.slane %v878, 0
      %v898 = vunpack.c.l.b16 %v862
      %v899 = vunpack.c.l.b16 %v863
      %v900 = vunpack.c.l.b16 %v864
      %v901 = vunpack.c.l.b16 %v865
      %v902 = vunpack.c.l.b16 %v866
      %v903 = vunpack.c.l.b16 %v867
      %v904 = vunpack.c.l.b16 %v868
      %v905 = vunpack.c.l.b16 %v869
      %v906 = vunpack.c.l.b16 %v870
      %v907 = vunpack.c.l.b16 %v871
      %v908 = vunpack.c.l.b16 %v872
      %v909 = vunpack.c.l.b16 %v873
      %v910 = vunpack.c.l.b16 %v874
      %v911 = vunpack.c.l.b16 %v875
      %v912 = vunpack.c.l.b16 %v876
      %v913 = vunpack.c.l.b16 %v877
      %v914 = vpack.c.b16 %v899, %v898
      %v915 = vpack.c.b16 %v901, %v900
      %v916 = vpack.c.b16 %v903, %v902
      %v917 = vpack.c.b16 %v905, %v904
      %v918 = vpack.c.b16 %v907, %v906
      %v919 = vpack.c.b16 %v909, %v908
      %v920 = vpack.c.b16 %v911, %v910
      %v921 = vpack.c.b16 %v913, %v912
      %930 = vmatpush.bf16.msra.mxu0 %v921
      %931 = vmatpush.bf16.msra.mxu0 %v920
      %932 = vmatpush.bf16.msra.mxu0 %v919
      %933 = vmatpush.bf16.msra.mxu0 %v918
      %934 = vmatpush.bf16.msra.mxu0 %v917
      %935 = vmatpush.bf16.msra.mxu0 %v916
      %936 = vmatpush.bf16.msra.mxu0 %v915
      %937 = vmatpush.bf16.msra.mxu0 %v914
      %938 = vmatmul.bf16.gmra.mxu0 %v859
      %v939 = vpop.f32.mrf.mxu0
      %v940 = vadd.f32 %v880, %v939
      %v941 = vpop.f32.mrf.mxu0
      %v942 = vadd.f32 %v880, %v941
      %943 = vmatmul.bf16.gmra.mxu0 %v860
      %v944 = vpop.f32.mrf.mxu0
      %v945 = vadd.f32 %v880, %v944
      %v946 = vpop.f32.mrf.mxu0
      %v947 = vadd.f32 %v880, %v946
      %948 = vmatmul.bf16.gmra.mxu0 %v861
      %v949 = vpop.f32.mrf.mxu0
      %v950 = vadd.f32 %v880, %v949
      %v951 = vpop.f32.mrf.mxu0
      %v952 = vadd.f32 %v880, %v951
      %953 = vdwg.mxu0
      %v954 = vmax.f32 %v940, 0.0
      %v955 = vmax.f32 %v942, 0.0
      %v956 = vmax.f32 %v945, 0.0
      %v957 = vmax.f32 %v947, 0.0
      %v958 = vmax.f32 %v950, 0.0
      %v959 = vmax.f32 %v952, 0.0
      %v960 = vmin.f32 %v954, 6.0
      %v961 = vmin.f32 %v955, 6.0
      %v962 = vmin.f32 %v956, 6.0
      %v963 = vmin.f32 %v957, 6.0
      %v964 = vmin.f32 %v958, 6.0
      %v965 = vmin.f32 %v959, 6.0
      %v966 = vpack.c.bf16 %v960, %v960
      %v967 = vpack.c.bf16 %v961, %v961
      %v968 = vpack.c.bf16 %v962, %v962
      %v969 = vpack.c.bf16 %v963, %v963
      %v970 = vpack.c.bf16 %v964, %v964
      %v971 = vpack.c.bf16 %v965, %v965
      %s972 = scalar_lea.vmem [#allocation2], 192
      %973 = vst [vmem:[%s972] sm:$0xf] %v966
      %974 = vst [vmem:[%s972 + $0x4] sm:$0xf] %v967
      %975 = vst [vmem:[%s972 + $0x8] sm:$0xf] %v968
      %976 = vst [vmem:[%s972 + $0xc] sm:$0xf] %v969
      %977 = vst [vmem:[%s972 + $0x10] sm:$0xf] %v970
      %978 = vst [vmem:[%s972 + $0x14] sm:$0xf] %v971
      %vm979 = vcmask 1040384
      %vm980 = vsmask.f32 256
      %vm981 = vmand %vm979, %vm980
      %v982 = vld [vmem:[#allocation2] sm:$0x1]
      %v983 = vsel %vm981, 0, %v982
      %984 = vst [vmem:[#allocation2] sm:$0x1] %v983
      %v985 = vld [vmem:[#allocation2 + $0xc] sm:$0x1]
      %v986 = vsel %vm981, 0, %v985
      %987 = vst [vmem:[#allocation2 + $0xc] sm:$0x1] %v986
      %v988 = vld [vmem:[#allocation2 + $0x18] sm:$0x1]
      %v989 = vsel %vm981, 0, %v988
      %990 = vst [vmem:[#allocation2 + $0x18] sm:$0x1] %v989
      %v991 = vld [vmem:[#allocation2 + $0x24] sm:$0x1]
      %v992 = vsel %vm981, 0, %v991
      %993 = vst [vmem:[#allocation2 + $0x24] sm:$0x1] %v992
      %v994 = vld [vmem:[#allocation2 + $0x30] sm:$0x1]
      %v995 = vsel %vm981, 0, %v994
      %996 = vst [vmem:[#allocation2 + $0x30] sm:$0x1] %v995
      %v997 = vld [vmem:[#allocation2 + $0x3c] sm:$0x1]
      %v998 = vsel %vm981, 0, %v997
      %999 = vst [vmem:[#allocation2 + $0x3c] sm:$0x1] %v998
      %v1000 = vld [vmem:[#allocation2 + $0x48] sm:$0x1]
      %v1001 = vsel %vm981, 0, %v1000
      %1002 = vst [vmem:[#allocation2 + $0x48] sm:$0x1] %v1001
      %v1003 = vld [vmem:[#allocation2 + $0x54] sm:$0x1]
      %v1004 = vsel %vm981, 0, %v1003
      %1005 = vst [vmem:[#allocation2 + $0x54] sm:$0x1] %v1004
      %v1006 = vld [vmem:[#allocation2 + $0x60] sm:$0x1]
      %v1007 = vsel %vm981, 0, %v1006
      %1008 = vst [vmem:[#allocation2 + $0x60] sm:$0x1] %v1007
      %v1009 = vld [vmem:[#allocation2 + $0x6c] sm:$0x1]
      %v1010 = vsel %vm981, 0, %v1009
      %1011 = vst [vmem:[#allocation2 + $0x6c] sm:$0x1] %v1010
      %v1012 = vld [vmem:[#allocation2 + $0x78] sm:$0x1]
      %v1013 = vsel %vm981, 0, %v1012
      %1014 = vst [vmem:[#allocation2 + $0x78] sm:$0x1] %v1013
      %v1015 = vld [vmem:[#allocation2 + $0x84] sm:$0x1]
      %v1016 = vsel %vm981, 0, %v1015
      %1017 = vst [vmem:[#allocation2 + $0x84] sm:$0x1] %v1016
      %v1018 = vld [vmem:[#allocation2 + $0x90] sm:$0x1]
      %v1019 = vsel %vm981, 0, %v1018
      %1020 = vst [vmem:[#allocation2 + $0x90] sm:$0x1] %v1019
      %v1021 = vld [vmem:[#allocation2 + $0x9c] sm:$0x1]
      %v1022 = vsel %vm981, 0, %v1021
      %1023 = vst [vmem:[#allocation2 + $0x9c] sm:$0x1] %v1022
      %v1024 = vld [vmem:[#allocation2 + $0xa8] sm:$0x1]
      %v1025 = vsel %vm981, 0, %v1024
      %1026 = vst [vmem:[#allocation2 + $0xa8] sm:$0x1] %v1025
      %v1027 = vld [vmem:[#allocation2 + $0xb4] sm:$0x1]
      %v1028 = vsel %vm981, 0, %v1027
      %1029 = vst [vmem:[#allocation2 + $0xb4] sm:$0x1] %v1028
      %v1030 = vld [vmem:[#allocation2 + $0xc0] sm:$0x1]
      %v1031 = vsel %vm981, 0, %v1030
      %1032 = vst [vmem:[#allocation2 + $0xc0] sm:$0x1] %v1031
      %v1033 = vld [vmem:[#allocation2 + $0xcc] sm:$0x1]
      %v1034 = vsel %vm981, 0, %v1033
      %1035 = vst [vmem:[#allocation2 + $0xcc] sm:$0x1] %v1034
      %vm1036 = vsmask.f32 7938
      %vm1037 = vmand %vm979, %vm1036
      %v1038 = vld [vmem:[#allocation2 + $0x8] sm:$0x1]
      %v1039 = vsel %vm1037, 0, %v1038
      %1040 = vst [vmem:[#allocation2 + $0x8] sm:$0x1] %v1039
      %v1041 = vld [vmem:[#allocation2 + $0x14] sm:$0x1]
      %v1042 = vsel %vm1037, 0, %v1041
      %1043 = vst [vmem:[#allocation2 + $0x14] sm:$0x1] %v1042
      %v1044 = vld [vmem:[#allocation2 + $0x20] sm:$0x1]
      %v1045 = vsel %vm1037, 0, %v1044
      %1046 = vst [vmem:[#allocation2 + $0x20] sm:$0x1] %v1045
      %v1047 = vld [vmem:[#allocation2 + $0x2c] sm:$0x1]
      %v1048 = vsel %vm1037, 0, %v1047
      %1049 = vst [vmem:[#allocation2 + $0x2c] sm:$0x1] %v1048
      %v1050 = vld [vmem:[#allocation2 + $0x38] sm:$0x1]
      %v1051 = vsel %vm1037, 0, %v1050
      %1052 = vst [vmem:[#allocation2 + $0x38] sm:$0x1] %v1051
      %v1053 = vld [vmem:[#allocation2 + $0x44] sm:$0x1]
      %v1054 = vsel %vm1037, 0, %v1053
      %1055 = vst [vmem:[#allocation2 + $0x44] sm:$0x1] %v1054
      %v1056 = vld [vmem:[#allocation2 + $0x50] sm:$0x1]
      %v1057 = vsel %vm1037, 0, %v1056
      %1058 = vst [vmem:[#allocation2 + $0x50] sm:$0x1] %v1057
      %v1059 = vld [vmem:[#allocation2 + $0x5c] sm:$0x1]
      %v1060 = vsel %vm1037, 0, %v1059
      %1061 = vst [vmem:[#allocation2 + $0x5c] sm:$0x1] %v1060
      %v1062 = vld [vmem:[#allocation2 + $0x68] sm:$0x1]
      %v1063 = vsel %vm1037, 0, %v1062
      %1064 = vst [vmem:[#allocation2 + $0x68] sm:$0x1] %v1063
      %v1065 = vld [vmem:[#allocation2 + $0x74] sm:$0x1]
      %v1066 = vsel %vm1037, 0, %v1065
      %1067 = vst [vmem:[#allocation2 + $0x74] sm:$0x1] %v1066
      %v1068 = vld [vmem:[#allocation2 + $0x80] sm:$0x1]
      %v1069 = vsel %vm1037, 0, %v1068
      %1070 = vst [vmem:[#allocation2 + $0x80] sm:$0x1] %v1069
      %v1071 = vld [vmem:[#allocation2 + $0x8c] sm:$0x1]
      %v1072 = vsel %vm1037, 0, %v1071
      %1073 = vst [vmem:[#allocation2 + $0x8c] sm:$0x1] %v1072
      %v1074 = vld [vmem:[#allocation2 + $0x98] sm:$0x1]
      %v1075 = vsel %vm1037, 0, %v1074
      %1076 = vst [vmem:[#allocation2 + $0x98] sm:$0x1] %v1075
      %v1077 = vld [vmem:[#allocation2 + $0xa4] sm:$0x1]
      %v1078 = vsel %vm1037, 0, %v1077
      %1079 = vst [vmem:[#allocation2 + $0xa4] sm:$0x1] %v1078
      %v1080 = vld [vmem:[#allocation2 + $0xb0] sm:$0x1]
      %v1081 = vsel %vm1037, 0, %v1080
      %1082 = vst [vmem:[#allocation2 + $0xb0] sm:$0x1] %v1081
      %v1083 = vld [vmem:[#allocation2 + $0xbc] sm:$0x1]
      %v1084 = vsel %vm1037, 0, %v1083
      %1085 = vst [vmem:[#allocation2 + $0xbc] sm:$0x1] %v1084
      %v1086 = vld [vmem:[#allocation2 + $0xc8] sm:$0x1]
      %v1087 = vsel %vm1037, 0, %v1086
      %1088 = vst [vmem:[#allocation2 + $0xc8] sm:$0x1] %v1087
      %v1089 = vld [vmem:[#allocation2 + $0xd4] sm:$0x1]
      %v1090 = vsel %vm1037, 0, %v1089
      %1091 = vst [vmem:[#allocation2 + $0xd4] sm:$0x1] %v1090
      %p1092 = scmp.eq.s32.totalorder %s23, 0
      // Predicated region
      $region49: #{inverted_residual.1} parent=47 // pred_check
        %p1093 = pneg %p1092
      $region50: #{inverted_residual.1} parent=47 // pred_check_branch
        %1095 = sbr.rel (%p1093) target = $region52
      $region51: #{inverted_residual.1} parent=47 // pred_region
        %1096 = vst [vmem:[#allocation2] sm:$0xf] 0
        %1097 = vst [vmem:[#allocation2 + $0x4] sm:$0xf] 0
        %1098 = vst [vmem:[#allocation2 + $0x8] sm:$0xf] 0
        %s1099 = scalar_lea.vmem [#allocation2], 204
        %1100 = vst [vmem:[%s1099] sm:$0xf] 0
        %1101 = vst [vmem:[%s1099 + $0x4] sm:$0xf] 0
        %1102 = vst [vmem:[%s1099 + $0x8] sm:$0xf] 0
      $region52: #{inverted_residual.1} parent=47 // pred_fallthru
        _
      %v1103 = vld [vmem:[%s3] sm:$0xff]
      %v1104 = vld [vmem:[%s3 + $0x8] sm:$0x1]
      %v1105 = vld [vmem:[#allocation2] sm:$0xf]
      %v1106 = vld [vmem:[#allocation2 + $0x4] sm:$0xf]
      %v1107 = vld [vmem:[#allocation2 + $0x8] sm:$0xf]
      %v1108 = vld [vmem:[#allocation2 + $0xc] sm:$0xf]
      %v1109 = vld [vmem:[#allocation2 + $0x10] sm:$0xf]
      %v1110 = vld [vmem:[#allocation2 + $0x14] sm:$0xf]
      %v1111 = vld [vmem:[#allocation2 + $0x18] sm:$0xf]
      %v1112 = vld [vmem:[#allocation2 + $0x1c] sm:$0xf]
      %v1113 = vld [vmem:[#allocation2 + $0x20] sm:$0xf]
      %v1114 = vld [vmem:[#allocation2 + $0x24] sm:$0xf]
      %v1115 = vld [vmem:[#allocation2 + $0x28] sm:$0xf]
      %v1116 = vld [vmem:[#allocation2 + $0x2c] sm:$0xf]
      %v1117 = vld [vmem:[#allocation2 + $0x30] sm:$0xf]
      %v1118 = vld [vmem:[#allocation2 + $0x34] sm:$0xf]
      %v1119 = vld [vmem:[#allocation2 + $0x38] sm:$0xf]
      %v1120 = vld [vmem:[#allocation2 + $0x3c] sm:$0xf]
      %v1121 = vld [vmem:[#allocation2 + $0x40] sm:$0xf]
      %v1122 = vld [vmem:[#allocation2 + $0x44] sm:$0xf]
      %v1123 = vld [vmem:[#allocation2 + $0x48] sm:$0xf]
      %v1124 = vld [vmem:[#allocation2 + $0x4c] sm:$0xf]
      %v1125 = vld [vmem:[#allocation2 + $0x50] sm:$0xf]
      %v1126 = vld [vmem:[#allocation2 + $0x54] sm:$0xf]
      %v1127 = vld [vmem:[#allocation2 + $0x58] sm:$0xf]
      %v1128 = vld [vmem:[#allocation2 + $0x5c] sm:$0xf]
      %v1129 = vunpack.c.l.bf16 %v1105
      %v1130 = vunpack.c.l.bf16 %v1106
      %v1131 = vunpack.c.l.bf16 %v1107
      %v1132 = vunpack.c.l.bf16 %v1108
      %v1133 = vunpack.c.l.bf16 %v1109
      %v1134 = vunpack.c.l.bf16 %v1110
      %v1135 = vunpack.c.l.bf16 %v1111
      %v1136 = vunpack.c.l.bf16 %v1112
      %v1137 = vunpack.c.l.bf16 %v1113
      %v1138 = vunpack.c.l.bf16 %v1114
      %v1139 = vunpack.c.l.bf16 %v1115
      %v1140 = vunpack.c.l.bf16 %v1116
      %v1141 = vunpack.c.l.bf16 %v1117
      %v1142 = vunpack.c.l.bf16 %v1118
      %v1143 = vunpack.c.l.bf16 %v1119
      %v1144 = vunpack.c.l.bf16 %v1120
      %v1145 = vunpack.c.l.bf16 %v1121
      %v1146 = vunpack.c.l.bf16 %v1122
      %v1147 = vunpack.c.l.bf16 %v1123
      %v1148 = vunpack.c.l.bf16 %v1124
      %v1149 = vunpack.c.l.bf16 %v1125
      %v1150 = vunpack.c.l.bf16 %v1126
      %v1151 = vunpack.c.l.bf16 %v1127
      %v1152 = vunpack.c.l.bf16 %v1128
      %v1153 = vperm.slane %v1103, 0
      %v1154 = vmul.f32 %v1129, %v1153
      %v1155 = vmul.f32 %v1130, %v1153
      %v1156 = vmul.f32 %v1132, %v1153
      %v1157 = vmul.f32 %v1133, %v1153
      %v1158 = vmul.f32 %v1135, %v1153
      %v1159 = vmul.f32 %v1136, %v1153
      %v1160 = vmul.f32 %v1138, %v1153
      %v1161 = vmul.f32 %v1139, %v1153
      %v1162 = vmul.f32 %v1141, %v1153
      %v1163 = vmul.f32 %v1142, %v1153
      %v1164 = vmul.f32 %v1144, %v1153
      %v1165 = vmul.f32 %v1145, %v1153
      %v1166 = vmul.f32 %v1147, %v1153
      %v1167 = vmul.f32 %v1148, %v1153
      %v1168 = vmul.f32 %v1150, %v1153
      %v1169 = vmul.f32 %v1151, %v1153
      %v1170 = vadd.f32 %v1154, 0.0
      %v1171 = vadd.f32 %v1155, 0.0
      %v1172 = vadd.f32 %v1156, 0.0
      %v1173 = vadd.f32 %v1157, 0.0
      %v1174 = vadd.f32 %v1158, 0.0
      %v1175 = vadd.f32 %v1159, 0.0
      %v1176 = vadd.f32 %v1160, 0.0
      %v1177 = vadd.f32 %v1161, 0.0
      %v1178 = vadd.f32 %v1162, 0.0
      %v1179 = vadd.f32 %v1163, 0.0
      %v1180 = vadd.f32 %v1164, 0.0
      %v1181 = vadd.f32 %v1165, 0.0
      %v1182 = vadd.f32 %v1166, 0.0
      %v1183 = vadd.f32 %v1167, 0.0
      %v1184 = vadd.f32 %v1168, 0.0
      %v1185 = vadd.f32 %v1169, 0.0
      %v1186 = vperm.slane %v1103, 1
      %v1187 = vmul.f32 %v1129, %v1186
      %v1188 = vmul.f32 %v1130, %v1186
      %v1189 = vmul.f32 %v1131, %v1186
      %v1190 = vmul.f32 %v1132, %v1186
      %v1191 = vmul.f32 %v1133, %v1186
      %v1192 = vmul.f32 %v1134, %v1186
      %v1193 = vmul.f32 %v1135, %v1186
      %v1194 = vmul.f32 %v1136, %v1186
      %v1195 = vmul.f32 %v1137, %v1186
      %v1196 = vmul.f32 %v1138, %v1186
      %v1197 = vmul.f32 %v1139, %v1186
      %v1198 = vmul.f32 %v1140, %v1186
      %v1199 = vmul.f32 %v1141, %v1186
      %v1200 = vmul.f32 %v1142, %v1186
      %v1201 = vmul.f32 %v1143, %v1186
      %v1202 = vmul.f32 %v1144, %v1186
      %v1203 = vmul.f32 %v1145, %v1186
      %v1204 = vmul.f32 %v1146, %v1186
      %v1205 = vmul.f32 %v1147, %v1186
      %v1206 = vmul.f32 %v1148, %v1186
      %v1207 = vmul.f32 %v1149, %v1186
      %v1208 = vmul.f32 %v1150, %v1186
      %v1209 = vmul.f32 %v1151, %v1186
      %v1210 = vmul.f32 %v1152, %v1186
      %vm1235 = vcmask 1046528
      %v1236 = vrot.slane %v1187, 1
      %v1237 = vrot.slane %v1188, 1
      %v1238 = vsel %vm1235, %v1236, %v1237
      %v1239 = vrot.slane %v1189, 1
      %v1240 = vsel %vm1235, %v1237, %v1239
      %v1241 = vrot.slane %v1190, 1
      %v1242 = vrot.slane %v1191, 1
      %v1243 = vsel %vm1235, %v1241, %v1242
      %v1244 = vrot.slane %v1192, 1
      %v1245 = vsel %vm1235, %v1242, %v1244
      %v1246 = vrot.slane %v1193, 1
      %v1247 = vrot.slane %v1194, 1
      %v1248 = vsel %vm1235, %v1246, %v1247
      %v1249 = vrot.slane %v1195, 1
      %v1250 = vsel %vm1235, %v1247, %v1249
      %v1251 = vrot.slane %v1196, 1
      %v1252 = vrot.slane %v1197, 1
      %v1253 = vsel %vm1235, %v1251, %v1252
      %v1254 = vrot.slane %v1198, 1
      %v1255 = vsel %vm1235, %v1252, %v1254
      %v1256 = vrot.slane %v1199, 1
      %v1257 = vrot.slane %v1200, 1
      %v1258 = vsel %vm1235, %v1256, %v1257
      %v1259 = vrot.slane %v1201, 1
      %v1260 = vsel %vm1235, %v1257, %v1259
      %v1261 = vrot.slane %v1202, 1
      %v1262 = vrot.slane %v1203, 1
      %v1263 = vsel %vm1235, %v1261, %v1262
      %v1264 = vrot.slane %v1204, 1
      %v1265 = vsel %vm1235, %v1262, %v1264
      %v1266 = vrot.slane %v1205, 1
      %v1267 = vrot.slane %v1206, 1
      %v1268 = vsel %vm1235, %v1266, %v1267
      %v1269 = vrot.slane %v1207, 1
      %v1270 = vsel %vm1235, %v1267, %v1269
      %v1271 = vrot.slane %v1208, 1
      %v1272 = vrot.slane %v1209, 1
      %v1273 = vsel %vm1235, %v1271, %v1272
      %v1274 = vrot.slane %v1210, 1
      %v1275 = vsel %vm1235, %v1272, %v1274
      %v1292 = vadd.f32 %v1170, %v1238
      %v1293 = vadd.f32 %v1171, %v1240
      %v1294 = vadd.f32 %v1172, %v1243
      %v1295 = vadd.f32 %v1173, %v1245
      %v1296 = vadd.f32 %v1174, %v1248
      %v1297 = vadd.f32 %v1175, %v1250
      %v1298 = vadd.f32 %v1176, %v1253
      %v1299 = vadd.f32 %v1177, %v1255
      %v1300 = vadd.f32 %v1178, %v1258
      %v1301 = vadd.f32 %v1179, %v1260
      %v1302 = vadd.f32 %v1180, %v1263
      %v1303 = vadd.f32 %v1181, %v1265
      %v1304 = vadd.f32 %v1182, %v1268
      %v1305 = vadd.f32 %v1183, %v1270
      %v1306 = vadd.f32 %v1184, %v1273
      %v1307 = vadd.f32 %v1185, %v1275
      %v1308 = vperm.slane %v1103, 2
      %v1309 = vmul.f32 %v1129, %v1308
      %v1310 = vmul.f32 %v1130, %v1308
      %v1311 = vmul.f32 %v1131, %v1308
      %v1312 = vmul.f32 %v1132, %v1308
      %v1313 = vmul.f32 %v1133, %v1308
      %v1314 = vmul.f32 %v1134, %v1308
      %v1315 = vmul.f32 %v1135, %v1308
      %v1316 = vmul.f32 %v1136, %v1308
      %v1317 = vmul.f32 %v1137, %v1308
      %v1318 = vmul.f32 %v1138, %v1308
      %v1319 = vmul.f32 %v1139, %v1308
      %v1320 = vmul.f32 %v1140, %v1308
      %v1321 = vmul.f32 %v1141, %v1308
      %v1322 = vmul.f32 %v1142, %v1308
      %v1323 = vmul.f32 %v1143, %v1308
      %v1324 = vmul.f32 %v1144, %v1308
      %v1325 = vmul.f32 %v1145, %v1308
      %v1326 = vmul.f32 %v1146, %v1308
      %v1327 = vmul.f32 %v1147, %v1308
      %v1328 = vmul.f32 %v1148, %v1308
      %v1329 = vmul.f32 %v1149, %v1308
      %v1330 = vmul.f32 %v1150, %v1308
      %v1331 = vmul.f32 %v1151, %v1308
      %v1332 = vmul.f32 %v1152, %v1308
      %vm1357 = vcmask 1045504
      %v1358 = vrot.slane %v1309, 2
      %v1359 = vrot.slane %v1310, 2
      %v1360 = vsel %vm1357, %v1358, %v1359
      %v1361 = vrot.slane %v1311, 2
      %v1362 = vsel %vm1357, %v1359, %v1361
      %v1363 = vrot.slane %v1312, 2
      %v1364 = vrot.slane %v1313, 2
      %v1365 = vsel %vm1357, %v1363, %v1364
      %v1366 = vrot.slane %v1314, 2
      %v1367 = vsel %vm1357, %v1364, %v1366
      %v1368 = vrot.slane %v1315, 2
      %v1369 = vrot.slane %v1316, 2
      %v1370 = vsel %vm1357, %v1368, %v1369
      %v1371 = vrot.slane %v1317, 2
      %v1372 = vsel %vm1357, %v1369, %v1371
      %v1373 = vrot.slane %v1318, 2
      %v1374 = vrot.slane %v1319, 2
      %v1375 = vsel %vm1357, %v1373, %v1374
      %v1376 = vrot.slane %v1320, 2
      %v1377 = vsel %vm1357, %v1374, %v1376
      %v1378 = vrot.slane %v1321, 2
      %v1379 = vrot.slane %v1322, 2
      %v1380 = vsel %vm1357, %v1378, %v1379
      %v1381 = vrot.slane %v1323, 2
      %v1382 = vsel %vm1357, %v1379, %v1381
      %v1383 = vrot.slane %v1324, 2
      %v1384 = vrot.slane %v1325, 2
      %v1385 = vsel %vm1357, %v1383, %v1384
      %v1386 = vrot.slane %v1326, 2
      %v1387 = vsel %vm1357, %v1384, %v1386
      %v1388 = vrot.slane %v1327, 2
      %v1389 = vrot.slane %v1328, 2
      %v1390 = vsel %vm1357, %v1388, %v1389
      %v1391 = vrot.slane %v1329, 2
      %v1392 = vsel %vm1357, %v1389, %v1391
      %v1393 = vrot.slane %v1330, 2
      %v1394 = vrot.slane %v1331, 2
      %v1395 = vsel %vm1357, %v1393, %v1394
      %v1396 = vrot.slane %v1332, 2
      %v1397 = vsel %vm1357, %v1394, %v1396
      %v1414 = vadd.f32 %v1292, %v1360
      %v1415 = vadd.f32 %v1293, %v1362
      %v1416 = vadd.f32 %v1294, %v1365
      %v1417 = vadd.f32 %v1295, %v1367
      %v1418 = vadd.f32 %v1296, %v1370
      %v1419 = vadd.f32 %v1297, %v1372
      %v1420 = vadd.f32 %v1298, %v1375
      %v1421 = vadd.f32 %v1299, %v1377
      %v1422 = vadd.f32 %v1300, %v1380
      %v1423 = vadd.f32 %v1301, %v1382
      %v1424 = vadd.f32 %v1302, %v1385
      %v1425 = vadd.f32 %v1303, %v1387
      %v1426 = vadd.f32 %v1304, %v1390
      %v1427 = vadd.f32 %v1305, %v1392
      %v1428 = vadd.f32 %v1306, %v1395
      %v1429 = vadd.f32 %v1307, %v1397
      %s1430 = scalar_lea.vmem [#allocation2], 12
      %v1431 = vld [vmem:[%s1430] sm:$0xf]
      %v1432 = vld [vmem:[%s1430 + $0x4] sm:$0xf]
      %v1433 = vld [vmem:[%s1430 + $0x8] sm:$0xf]
      %v1434 = vld [vmem:[%s1430 + $0xc] sm:$0xf]
      %v1435 = vld [vmem:[%s1430 + $0x10] sm:$0xf]
      %v1436 = vld [vmem:[%s1430 + $0x14] sm:$0xf]
      %v1437 = vld [vmem:[%s1430 + $0x18] sm:$0xf]
      %v1438 = vld [vmem:[%s1430 + $0x1c] sm:$0xf]
      %v1439 = vld [vmem:[%s1430 + $0x20] sm:$0xf]
      %v1440 = vld [vmem:[%s1430 + $0x24] sm:$0xf]
      %v1441 = vld [vmem:[%s1430 + $0x28] sm:$0xf]
      %v1442 = vld [vmem:[%s1430 + $0x2c] sm:$0xf]
      %v1443 = vld [vmem:[%s1430 + $0x30] sm:$0xf]
      %v1444 = vld [vmem:[%s1430 + $0x34] sm:$0xf]
      %v1445 = vld [vmem:[%s1430 + $0x38] sm:$0xf]
      %v1446 = vld [vmem:[%s1430 + $0x3c] sm:$0xf]
      %v1447 = vld [vmem:[%s1430 + $0x40] sm:$0xf]
      %v1448 = vld [vmem:[%s1430 + $0x44] sm:$0xf]
      %v1449 = vld [vmem:[%s1430 + $0x48] sm:$0xf]
      %v1450 = vld [vmem:[%s1430 + $0x4c] sm:$0xf]
      %v1451 = vld [vmem:[%s1430 + $0x50] sm:$0xf]
      %v1452 = vld [vmem:[%s1430 + $0x54] sm:$0xf]
      %v1453 = vld [vmem:[%s1430 + $0x58] sm:$0xf]
      %v1454 = vld [vmem:[%s1430 + $0x5c] sm:$0xf]
      %v1455 = vunpack.c.l.bf16 %v1431
      %v1456 = vunpack.c.l.bf16 %v1432
      %v1457 = vunpack.c.l.bf16 %v1433
      %v1458 = vunpack.c.l.bf16 %v1434
      %v1459 = vunpack.c.l.bf16 %v1435
      %v1460 = vunpack.c.l.bf16 %v1436
      %v1461 = vunpack.c.l.bf16 %v1437
      %v1462 = vunpack.c.l.bf16 %v1438
      %v1463 = vunpack.c.l.bf16 %v1439
      %v1464 = vunpack.c.l.bf16 %v1440
      %v1465 = vunpack.c.l.bf16 %v1441
      %v1466 = vunpack.c.l.bf16 %v1442
      %v1467 = vunpack.c.l.bf16 %v1443
      %v1468 = vunpack.c.l.bf16 %v1444
      %v1469 = vunpack.c.l.bf16 %v1445
      %v1470 = vunpack.c.l.bf16 %v1446
      %v1471 = vunpack.c.l.bf16 %v1447
      %v1472 = vunpack.c.l.bf16 %v1448
      %v1473 = vunpack.c.l.bf16 %v1449
      %v1474 = vunpack.c.l.bf16 %v1450
      %v1475 = vunpack.c.l.bf16 %v1451
      %v1476 = vunpack.c.l.bf16 %v1452
      %v1477 = vunpack.c.l.bf16 %v1453
      %v1478 = vunpack.c.l.bf16 %v1454
      %v1479 = vperm.slane %v1103, 3
      %v1480 = vmul.f32 %v1455, %v1479
      %v1481 = vmul.f32 %v1456, %v1479
      %v1482 = vmul.f32 %v1458, %v1479
      %v1483 = vmul.f32 %v1459, %v1479
      %v1484 = vmul.f32 %v1461, %v1479
      %v1485 = vmul.f32 %v1462, %v1479
      %v1486 = vmul.f32 %v1464, %v1479
      %v1487 = vmul.f32 %v1465, %v1479
      %v1488 = vmul.f32 %v1467, %v1479
      %v1489 = vmul.f32 %v1468, %v1479
      %v1490 = vmul.f32 %v1470, %v1479
      %v1491 = vmul.f32 %v1471, %v1479
      %v1492 = vmul.f32 %v1473, %v1479
      %v1493 = vmul.f32 %v1474, %v1479
      %v1494 = vmul.f32 %v1476, %v1479
      %v1495 = vmul.f32 %v1477, %v1479
      %v1496 = vadd.f32 %v1414, %v1480
      %v1497 = vadd.f32 %v1415, %v1481
      %v1498 = vadd.f32 %v1416, %v1482
      %v1499 = vadd.f32 %v1417, %v1483
      %v1500 = vadd.f32 %v1418, %v1484
      %v1501 = vadd.f32 %v1419, %v1485
      %v1502 = vadd.f32 %v1420, %v1486
      %v1503 = vadd.f32 %v1421, %v1487
      %v1504 = vadd.f32 %v1422, %v1488
      %v1505 = vadd.f32 %v1423, %v1489
      %v1506 = vadd.f32 %v1424, %v1490
      %v1507 = vadd.f32 %v1425, %v1491
      %v1508 = vadd.f32 %v1426, %v1492
      %v1509 = vadd.f32 %v1427, %v1493
      %v1510 = vadd.f32 %v1428, %v1494
      %v1511 = vadd.f32 %v1429, %v1495
      %v1512 = vperm.slane %v1103, 4
      %v1513 = vmul.f32 %v1455, %v1512
      %v1514 = vmul.f32 %v1456, %v1512
      %v1515 = vmul.f32 %v1457, %v1512
      %v1516 = vmul.f32 %v1458, %v1512
      %v1517 = vmul.f32 %v1459, %v1512
      %v1518 = vmul.f32 %v1460, %v1512
      %v1519 = vmul.f32 %v1461, %v1512
      %v1520 = vmul.f32 %v1462, %v1512
      %v1521 = vmul.f32 %v1463, %v1512
      %v1522 = vmul.f32 %v1464, %v1512
      %v1523 = vmul.f32 %v1465, %v1512
      %v1524 = vmul.f32 %v1466, %v1512
      %v1525 = vmul.f32 %v1467, %v1512
      %v1526 = vmul.f32 %v1468, %v1512
      %v1527 = vmul.f32 %v1469, %v1512
      %v1528 = vmul.f32 %v1470, %v1512
      %v1529 = vmul.f32 %v1471, %v1512
      %v1530 = vmul.f32 %v1472, %v1512
      %v1531 = vmul.f32 %v1473, %v1512
      %v1532 = vmul.f32 %v1474, %v1512
      %v1533 = vmul.f32 %v1475, %v1512
      %v1534 = vmul.f32 %v1476, %v1512
      %v1535 = vmul.f32 %v1477, %v1512
      %v1536 = vmul.f32 %v1478, %v1512
      %v1561 = vrot.slane %v1513, 1
      %v1562 = vrot.slane %v1514, 1
      %v1563 = vsel %vm1235, %v1561, %v1562
      %v1564 = vrot.slane %v1515, 1
      %v1565 = vsel %vm1235, %v1562, %v1564
      %v1566 = vrot.slane %v1516, 1
      %v1567 = vrot.slane %v1517, 1
      %v1568 = vsel %vm1235, %v1566, %v1567
      %v1569 = vrot.slane %v1518, 1
      %v1570 = vsel %vm1235, %v1567, %v1569
      %v1571 = vrot.slane %v1519, 1
      %v1572 = vrot.slane %v1520, 1
      %v1573 = vsel %vm1235, %v1571, %v1572
      %v1574 = vrot.slane %v1521, 1
      %v1575 = vsel %vm1235, %v1572, %v1574
      %v1576 = vrot.slane %v1522, 1
      %v1577 = vrot.slane %v1523, 1
      %v1578 = vsel %vm1235, %v1576, %v1577
      %v1579 = vrot.slane %v1524, 1
      %v1580 = vsel %vm1235, %v1577, %v1579
      %v1581 = vrot.slane %v1525, 1
      %v1582 = vrot.slane %v1526, 1
      %v1583 = vsel %vm1235, %v1581, %v1582
      %v1584 = vrot.slane %v1527, 1
      %v1585 = vsel %vm1235, %v1582, %v1584
      %v1586 = vrot.slane %v1528, 1
      %v1587 = vrot.slane %v1529, 1
      %v1588 = vsel %vm1235, %v1586, %v1587
      %v1589 = vrot.slane %v1530, 1
      %v1590 = vsel %vm1235, %v1587, %v1589
      %v1591 = vrot.slane %v1531, 1
      %v1592 = vrot.slane %v1532, 1
      %v1593 = vsel %vm1235, %v1591, %v1592
      %v1594 = vrot.slane %v1533, 1
      %v1595 = vsel %vm1235, %v1592, %v1594
      %v1596 = vrot.slane %v1534, 1
      %v1597 = vrot.slane %v1535, 1
      %v1598 = vsel %vm1235, %v1596, %v1597
      %v1599 = vrot.slane %v1536, 1
      %v1600 = vsel %vm1235, %v1597, %v1599
      %v1617 = vadd.f32 %v1496, %v1563
      %v1618 = vadd.f32 %v1497, %v1565
      %v1619 = vadd.f32 %v1498, %v1568
      %v1620 = vadd.f32 %v1499, %v1570
      %v1621 = vadd.f32 %v1500, %v1573
      %v1622 = vadd.f32 %v1501, %v1575
      %v1623 = vadd.f32 %v1502, %v1578
      %v1624 = vadd.f32 %v1503, %v1580
      %v1625 = vadd.f32 %v1504, %v1583
      %v1626 = vadd.f32 %v1505, %v1585
      %v1627 = vadd.f32 %v1506, %v1588
      %v1628 = vadd.f32 %v1507, %v1590
      %v1629 = vadd.f32 %v1508, %v1593
      %v1630 = vadd.f32 %v1509, %v1595
      %v1631 = vadd.f32 %v1510, %v1598
      %v1632 = vadd.f32 %v1511, %v1600
      %v1633 = vperm.slane %v1103, 5
      %v1634 = vmul.f32 %v1455, %v1633
      %v1635 = vmul.f32 %v1456, %v1633
      %v1636 = vmul.f32 %v1457, %v1633
      %v1637 = vmul.f32 %v1458, %v1633
      %v1638 = vmul.f32 %v1459, %v1633
      %v1639 = vmul.f32 %v1460, %v1633
      %v1640 = vmul.f32 %v1461, %v1633
      %v1641 = vmul.f32 %v1462, %v1633
      %v1642 = vmul.f32 %v1463, %v1633
      %v1643 = vmul.f32 %v1464, %v1633
      %v1644 = vmul.f32 %v1465, %v1633
      %v1645 = vmul.f32 %v1466, %v1633
      %v1646 = vmul.f32 %v1467, %v1633
      %v1647 = vmul.f32 %v1468, %v1633
      %v1648 = vmul.f32 %v1469, %v1633
      %v1649 = vmul.f32 %v1470, %v1633
      %v1650 = vmul.f32 %v1471, %v1633
      %v1651 = vmul.f32 %v1472, %v1633
      %v1652 = vmul.f32 %v1473, %v1633
      %v1653 = vmul.f32 %v1474, %v1633
      %v1654 = vmul.f32 %v1475, %v1633
      %v1655 = vmul.f32 %v1476, %v1633
      %v1656 = vmul.f32 %v1477, %v1633
      %v1657 = vmul.f32 %v1478, %v1633
      %v1682 = vrot.slane %v1634, 2
      %v1683 = vrot.slane %v1635, 2
      %v1684 = vsel %vm1357, %v1682, %v1683
      %v1685 = vrot.slane %v1636, 2
      %v1686 = vsel %vm1357, %v1683, %v1685
      %v1687 = vrot.slane %v1637, 2
      %v1688 = vrot.slane %v1638, 2
      %v1689 = vsel %vm1357, %v1687, %v1688
      %v1690 = vrot.slane %v1639, 2
      %v1691 = vsel %vm1357, %v1688, %v1690
      %v1692 = vrot.slane %v1640, 2
      %v1693 = vrot.slane %v1641, 2
      %v1694 = vsel %vm1357, %v1692, %v1693
      %v1695 = vrot.slane %v1642, 2
      %v1696 = vsel %vm1357, %v1693, %v1695
      %v1697 = vrot.slane %v1643, 2
      %v1698 = vrot.slane %v1644, 2
      %v1699 = vsel %vm1357, %v1697, %v1698
      %v1700 = vrot.slane %v1645, 2
      %v1701 = vsel %vm1357, %v1698, %v1700
      %v1702 = vrot.slane %v1646, 2
      %v1703 = vrot.slane %v1647, 2
      %v1704 = vsel %vm1357, %v1702, %v1703
      %v1705 = vrot.slane %v1648, 2
      %v1706 = vsel %vm1357, %v1703, %v1705
      %v1707 = vrot.slane %v1649, 2
      %v1708 = vrot.slane %v1650, 2
      %v1709 = vsel %vm1357, %v1707, %v1708
      %v1710 = vrot.slane %v1651, 2
      %v1711 = vsel %vm1357, %v1708, %v1710
      %v1712 = vrot.slane %v1652, 2
      %v1713 = vrot.slane %v1653, 2
      %v1714 = vsel %vm1357, %v1712, %v1713
      %v1715 = vrot.slane %v1654, 2
      %v1716 = vsel %vm1357, %v1713, %v1715
      %v1717 = vrot.slane %v1655, 2
      %v1718 = vrot.slane %v1656, 2
      %v1719 = vsel %vm1357, %v1717, %v1718
      %v1720 = vrot.slane %v1657, 2
      %v1721 = vsel %vm1357, %v1718, %v1720
      %v1738 = vadd.f32 %v1617, %v1684
      %v1739 = vadd.f32 %v1618, %v1686
      %v1740 = vadd.f32 %v1619, %v1689
      %v1741 = vadd.f32 %v1620, %v1691
      %v1742 = vadd.f32 %v1621, %v1694
      %v1743 = vadd.f32 %v1622, %v1696
      %v1744 = vadd.f32 %v1623, %v1699
      %v1745 = vadd.f32 %v1624, %v1701
      %v1746 = vadd.f32 %v1625, %v1704
      %v1747 = vadd.f32 %v1626, %v1706
      %v1748 = vadd.f32 %v1627, %v1709
      %v1749 = vadd.f32 %v1628, %v1711
      %v1750 = vadd.f32 %v1629, %v1714
      %v1751 = vadd.f32 %v1630, %v1716
      %v1752 = vadd.f32 %v1631, %v1719
      %v1753 = vadd.f32 %v1632, %v1721
      %s1754 = scalar_lea.vmem [#allocation2], 24
      %v1755 = vld [vmem:[%s1754] sm:$0xf]
      %v1756 = vld [vmem:[%s1754 + $0x4] sm:$0xf]
      %v1757 = vld [vmem:[%s1754 + $0x8] sm:$0xf]
      %v1758 = vld [vmem:[%s1754 + $0xc] sm:$0xf]
      %v1759 = vld [vmem:[%s1754 + $0x10] sm:$0xf]
      %v1760 = vld [vmem:[%s1754 + $0x14] sm:$0xf]
      %v1761 = vld [vmem:[%s1754 + $0x18] sm:$0xf]
      %v1762 = vld [vmem:[%s1754 + $0x1c] sm:$0xf]
      %v1763 = vld [vmem:[%s1754 + $0x20] sm:$0xf]
      %v1764 = vld [vmem:[%s1754 + $0x24] sm:$0xf]
      %v1765 = vld [vmem:[%s1754 + $0x28] sm:$0xf]
      %v1766 = vld [vmem:[%s1754 + $0x2c] sm:$0xf]
      %v1767 = vld [vmem:[%s1754 + $0x30] sm:$0xf]
      %v1768 = vld [vmem:[%s1754 + $0x34] sm:$0xf]
      %v1769 = vld [vmem:[%s1754 + $0x38] sm:$0xf]
      %v1770 = vld [vmem:[%s1754 + $0x3c] sm:$0xf]
      %v1771 = vld [vmem:[%s1754 + $0x40] sm:$0xf]
      %v1772 = vld [vmem:[%s1754 + $0x44] sm:$0xf]
      %v1773 = vld [vmem:[%s1754 + $0x48] sm:$0xf]
      %v1774 = vld [vmem:[%s1754 + $0x4c] sm:$0xf]
      %v1775 = vld [vmem:[%s1754 + $0x50] sm:$0xf]
      %v1776 = vld [vmem:[%s1754 + $0x54] sm:$0xf]
      %v1777 = vld [vmem:[%s1754 + $0x58] sm:$0xf]
      %v1778 = vld [vmem:[%s1754 + $0x5c] sm:$0xf]
      %v1779 = vunpack.c.l.bf16 %v1755
      %v1780 = vunpack.c.l.bf16 %v1756
      %v1781 = vunpack.c.l.bf16 %v1757
      %v1782 = vunpack.c.l.bf16 %v1758
      %v1783 = vunpack.c.l.bf16 %v1759
      %v1784 = vunpack.c.l.bf16 %v1760
      %v1785 = vunpack.c.l.bf16 %v1761
      %v1786 = vunpack.c.l.bf16 %v1762
      %v1787 = vunpack.c.l.bf16 %v1763
      %v1788 = vunpack.c.l.bf16 %v1764
      %v1789 = vunpack.c.l.bf16 %v1765
      %v1790 = vunpack.c.l.bf16 %v1766
      %v1791 = vunpack.c.l.bf16 %v1767
      %v1792 = vunpack.c.l.bf16 %v1768
      %v1793 = vunpack.c.l.bf16 %v1769
      %v1794 = vunpack.c.l.bf16 %v1770
      %v1795 = vunpack.c.l.bf16 %v1771
      %v1796 = vunpack.c.l.bf16 %v1772
      %v1797 = vunpack.c.l.bf16 %v1773
      %v1798 = vunpack.c.l.bf16 %v1774
      %v1799 = vunpack.c.l.bf16 %v1775
      %v1800 = vunpack.c.l.bf16 %v1776
      %v1801 = vunpack.c.l.bf16 %v1777
      %v1802 = vunpack.c.l.bf16 %v1778
      %v1803 = vperm.slane %v1103, 6
      %v1804 = vmul.f32 %v1779, %v1803
      %v1805 = vmul.f32 %v1780, %v1803
      %v1806 = vmul.f32 %v1782, %v1803
      %v1807 = vmul.f32 %v1783, %v1803
      %v1808 = vmul.f32 %v1785, %v1803
      %v1809 = vmul.f32 %v1786, %v1803
      %v1810 = vmul.f32 %v1788, %v1803
      %v1811 = vmul.f32 %v1789, %v1803
      %v1812 = vmul.f32 %v1791, %v1803
      %v1813 = vmul.f32 %v1792, %v1803
      %v1814 = vmul.f32 %v1794, %v1803
      %v1815 = vmul.f32 %v1795, %v1803
      %v1816 = vmul.f32 %v1797, %v1803
      %v1817 = vmul.f32 %v1798, %v1803
      %v1818 = vmul.f32 %v1800, %v1803
      %v1819 = vmul.f32 %v1801, %v1803
      %v1820 = vadd.f32 %v1738, %v1804
      %v1821 = vadd.f32 %v1739, %v1805
      %v1822 = vadd.f32 %v1740, %v1806
      %v1823 = vadd.f32 %v1741, %v1807
      %v1824 = vadd.f32 %v1742, %v1808
      %v1825 = vadd.f32 %v1743, %v1809
      %v1826 = vadd.f32 %v1744, %v1810
      %v1827 = vadd.f32 %v1745, %v1811
      %v1828 = vadd.f32 %v1746, %v1812
      %v1829 = vadd.f32 %v1747, %v1813
      %v1830 = vadd.f32 %v1748, %v1814
      %v1831 = vadd.f32 %v1749, %v1815
      %v1832 = vadd.f32 %v1750, %v1816
      %v1833 = vadd.f32 %v1751, %v1817
      %v1834 = vadd.f32 %v1752, %v1818
      %v1835 = vadd.f32 %v1753, %v1819
      %v1836 = vperm.slane %v1103, 7
      %v1837 = vmul.f32 %v1779, %v1836
      %v1838 = vmul.f32 %v1780, %v1836
      %v1839 = vmul.f32 %v1781, %v1836
      %v1840 = vmul.f32 %v1782, %v1836
      %v1841 = vmul.f32 %v1783, %v1836
      %v1842 = vmul.f32 %v1784, %v1836
      %v1843 = vmul.f32 %v1785, %v1836
      %v1844 = vmul.f32 %v1786, %v1836
      %v1845 = vmul.f32 %v1787, %v1836
      %v1846 = vmul.f32 %v1788, %v1836
      %v1847 = vmul.f32 %v1789, %v1836
      %v1848 = vmul.f32 %v1790, %v1836
      %v1849 = vmul.f32 %v1791, %v1836
      %v1850 = vmul.f32 %v1792, %v1836
      %v1851 = vmul.f32 %v1793, %v1836
      %v1852 = vmul.f32 %v1794, %v1836
      %v1853 = vmul.f32 %v1795, %v1836
      %v1854 = vmul.f32 %v1796, %v1836
      %v1855 = vmul.f32 %v1797, %v1836
      %v1856 = vmul.f32 %v1798, %v1836
      %v1857 = vmul.f32 %v1799, %v1836
      %v1858 = vmul.f32 %v1800, %v1836
      %v1859 = vmul.f32 %v1801, %v1836
      %v1860 = vmul.f32 %v1802, %v1836
      %v1885 = vrot.slane %v1837, 1
      %v1886 = vrot.slane %v1838, 1
      %v1887 = vsel %vm1235, %v1885, %v1886
      %v1888 = vrot.slane %v1839, 1
      %v1889 = vsel %vm1235, %v1886, %v1888
      %v1890 = vrot.slane %v1840, 1
      %v1891 = vrot.slane %v1841, 1
      %v1892 = vsel %vm1235, %v1890, %v1891
      %v1893 = vrot.slane %v1842, 1
      %v1894 = vsel %vm1235, %v1891, %v1893
      %v1895 = vrot.slane %v1843, 1
      %v1896 = vrot.slane %v1844, 1
      %v1897 = vsel %vm1235, %v1895, %v1896
      %v1898 = vrot.slane %v1845, 1
      %v1899 = vsel %vm1235, %v1896, %v1898
      %v1900 = vrot.slane %v1846, 1
      %v1901 = vrot.slane %v1847, 1
      %v1902 = vsel %vm1235, %v1900, %v1901
      %v1903 = vrot.slane %v1848, 1
      %v1904 = vsel %vm1235, %v1901, %v1903
      %v1905 = vrot.slane %v1849, 1
      %v1906 = vrot.slane %v1850, 1
      %v1907 = vsel %vm1235, %v1905, %v1906
      %v1908 = vrot.slane %v1851, 1
      %v1909 = vsel %vm1235, %v1906, %v1908
      %v1910 = vrot.slane %v1852, 1
      %v1911 = vrot.slane %v1853, 1
      %v1912 = vsel %vm1235, %v1910, %v1911
      %v1913 = vrot.slane %v1854, 1
      %v1914 = vsel %vm1235, %v1911, %v1913
      %v1915 = vrot.slane %v1855, 1
      %v1916 = vrot.slane %v1856, 1
      %v1917 = vsel %vm1235, %v1915, %v1916
      %v1918 = vrot.slane %v1857, 1
      %v1919 = vsel %vm1235, %v1916, %v1918
      %v1920 = vrot.slane %v1858, 1
      %v1921 = vrot.slane %v1859, 1
      %v1922 = vsel %vm1235, %v1920, %v1921
      %v1923 = vrot.slane %v1860, 1
      %v1924 = vsel %vm1235, %v1921, %v1923
      %v1941 = vadd.f32 %v1820, %v1887
      %v1942 = vadd.f32 %v1821, %v1889
      %v1943 = vadd.f32 %v1822, %v1892
      %v1944 = vadd.f32 %v1823, %v1894
      %v1945 = vadd.f32 %v1824, %v1897
      %v1946 = vadd.f32 %v1825, %v1899
      %v1947 = vadd.f32 %v1826, %v1902
      %v1948 = vadd.f32 %v1827, %v1904
      %v1949 = vadd.f32 %v1828, %v1907
      %v1950 = vadd.f32 %v1829, %v1909
      %v1951 = vadd.f32 %v1830, %v1912
      %v1952 = vadd.f32 %v1831, %v1914
      %v1953 = vadd.f32 %v1832, %v1917
      %v1954 = vadd.f32 %v1833, %v1919
      %v1955 = vadd.f32 %v1834, %v1922
      %v1956 = vadd.f32 %v1835, %v1924
      %v1957 = vperm.slane %v1104, 0
      %v1958 = vmul.f32 %v1779, %v1957
      %v1959 = vmul.f32 %v1780, %v1957
      %v1960 = vmul.f32 %v1781, %v1957
      %v1961 = vmul.f32 %v1782, %v1957
      %v1962 = vmul.f32 %v1783, %v1957
      %v1963 = vmul.f32 %v1784, %v1957
      %v1964 = vmul.f32 %v1785, %v1957
      %v1965 = vmul.f32 %v1786, %v1957
      %v1966 = vmul.f32 %v1787, %v1957
      %v1967 = vmul.f32 %v1788, %v1957
      %v1968 = vmul.f32 %v1789, %v1957
      %v1969 = vmul.f32 %v1790, %v1957
      %v1970 = vmul.f32 %v1791, %v1957
      %v1971 = vmul.f32 %v1792, %v1957
      %v1972 = vmul.f32 %v1793, %v1957
      %v1973 = vmul.f32 %v1794, %v1957
      %v1974 = vmul.f32 %v1795, %v1957
      %v1975 = vmul.f32 %v1796, %v1957
      %v1976 = vmul.f32 %v1797, %v1957
      %v1977 = vmul.f32 %v1798, %v1957
      %v1978 = vmul.f32 %v1799, %v1957
      %v1979 = vmul.f32 %v1800, %v1957
      %v1980 = vmul.f32 %v1801, %v1957
      %v1981 = vmul.f32 %v1802, %v1957
      %v2006 = vrot.slane %v1958, 2
      %v2007 = vrot.slane %v1959, 2
      %v2008 = vsel %vm1357, %v2006, %v2007
      %v2009 = vrot.slane %v1960, 2
      %v2010 = vsel %vm1357, %v2007, %v2009
      %v2011 = vrot.slane %v1961, 2
      %v2012 = vrot.slane %v1962, 2
      %v2013 = vsel %vm1357, %v2011, %v2012
      %v2014 = vrot.slane %v1963, 2
      %v2015 = vsel %vm1357, %v2012, %v2014
      %v2016 = vrot.slane %v1964, 2
      %v2017 = vrot.slane %v1965, 2
      %v2018 = vsel %vm1357, %v2016, %v2017
      %v2019 = vrot.slane %v1966, 2
      %v2020 = vsel %vm1357, %v2017, %v2019
      %v2021 = vrot.slane %v1967, 2
      %v2022 = vrot.slane %v1968, 2
      %v2023 = vsel %vm1357, %v2021, %v2022
      %v2024 = vrot.slane %v1969, 2
      %v2025 = vsel %vm1357, %v2022, %v2024
      %v2026 = vrot.slane %v1970, 2
      %v2027 = vrot.slane %v1971, 2
      %v2028 = vsel %vm1357, %v2026, %v2027
      %v2029 = vrot.slane %v1972, 2
      %v2030 = vsel %vm1357, %v2027, %v2029
      %v2031 = vrot.slane %v1973, 2
      %v2032 = vrot.slane %v1974, 2
      %v2033 = vsel %vm1357, %v2031, %v2032
      %v2034 = vrot.slane %v1975, 2
      %v2035 = vsel %vm1357, %v2032, %v2034
      %v2036 = vrot.slane %v1976, 2
      %v2037 = vrot.slane %v1977, 2
      %v2038 = vsel %vm1357, %v2036, %v2037
      %v2039 = vrot.slane %v1978, 2
      %v2040 = vsel %vm1357, %v2037, %v2039
      %v2041 = vrot.slane %v1979, 2
      %v2042 = vrot.slane %v1980, 2
      %v2043 = vsel %vm1357, %v2041, %v2042
      %v2044 = vrot.slane %v1981, 2
      %v2045 = vsel %vm1357, %v2042, %v2044
      %v2062 = vadd.f32 %v1941, %v2008
      %v2063 = vadd.f32 %v1942, %v2010
      %v2064 = vadd.f32 %v1943, %v2013
      %v2065 = vadd.f32 %v1944, %v2015
      %v2066 = vadd.f32 %v1945, %v2018
      %v2067 = vadd.f32 %v1946, %v2020
      %v2068 = vadd.f32 %v1947, %v2023
      %v2069 = vadd.f32 %v1948, %v2025
      %v2070 = vadd.f32 %v1949, %v2028
      %v2071 = vadd.f32 %v1950, %v2030
      %v2072 = vadd.f32 %v1951, %v2033
      %v2073 = vadd.f32 %v1952, %v2035
      %v2074 = vadd.f32 %v1953, %v2038
      %v2075 = vadd.f32 %v1954, %v2040
      %v2076 = vadd.f32 %v1955, %v2043
      %v2077 = vadd.f32 %v1956, %v2045
      %v2078 = vld [vmem:[%s4] sm:$0x1]
      %v2080 = vperm.slane %v2078, 0
      %v2082 = vadd.f32 %v2062, %v2080
      %v2083 = vadd.f32 %v2063, %v2080
      %v2084 = vadd.f32 %v2064, %v2080
      %v2085 = vadd.f32 %v2065, %v2080
      %v2086 = vadd.f32 %v2066, %v2080
      %v2087 = vadd.f32 %v2067, %v2080
      %v2088 = vadd.f32 %v2068, %v2080
      %v2089 = vadd.f32 %v2069, %v2080
      %v2090 = vadd.f32 %v2070, %v2080
      %v2091 = vadd.f32 %v2071, %v2080
      %v2092 = vadd.f32 %v2072, %v2080
      %v2093 = vadd.f32 %v2073, %v2080
      %v2094 = vadd.f32 %v2074, %v2080
      %v2095 = vadd.f32 %v2075, %v2080
      %v2096 = vadd.f32 %v2076, %v2080
      %v2097 = vadd.f32 %v2077, %v2080
      %v2098 = vmax.f32 %v2082, 0.0
      %v2099 = vmax.f32 %v2083, 0.0
      %v2100 = vmax.f32 %v2084, 0.0
      %v2101 = vmax.f32 %v2085, 0.0
      %v2102 = vmax.f32 %v2086, 0.0
      %v2103 = vmax.f32 %v2087, 0.0
      %v2104 = vmax.f32 %v2088, 0.0
      %v2105 = vmax.f32 %v2089, 0.0
      %v2106 = vmax.f32 %v2090, 0.0
      %v2107 = vmax.f32 %v2091, 0.0
      %v2108 = vmax.f32 %v2092, 0.0
      %v2109 = vmax.f32 %v2093, 0.0
      %v2110 = vmax.f32 %v2094, 0.0
      %v2111 = vmax.f32 %v2095, 0.0
      %v2112 = vmax.f32 %v2096, 0.0
      %v2113 = vmax.f32 %v2097, 0.0
      %v2114 = vmin.f32 %v2098, 6.0
      %v2115 = vmin.f32 %v2099, 6.0
      %v2116 = vmin.f32 %v2100, 6.0
      %v2117 = vmin.f32 %v2101, 6.0
      %v2118 = vmin.f32 %v2102, 6.0
      %v2119 = vmin.f32 %v2103, 6.0
      %v2120 = vmin.f32 %v2104, 6.0
      %v2121 = vmin.f32 %v2105, 6.0
      %v2122 = vmin.f32 %v2106, 6.0
      %v2123 = vmin.f32 %v2107, 6.0
      %v2124 = vmin.f32 %v2108, 6.0
      %v2125 = vmin.f32 %v2109, 6.0
      %v2126 = vmin.f32 %v2110, 6.0
      %v2127 = vmin.f32 %v2111, 6.0
      %v2128 = vmin.f32 %v2112, 6.0
      %v2129 = vmin.f32 %v2113, 6.0
      %v2130 = vpack.c.bf16 %v2115, %v2114
      %v2131 = vpack.c.bf16 %v2117, %v2116
      %v2132 = vpack.c.bf16 %v2119, %v2118
      %v2133 = vpack.c.bf16 %v2121, %v2120
      %v2134 = vpack.c.bf16 %v2123, %v2122
      %v2135 = vpack.c.bf16 %v2125, %v2124
      %v2136 = vpack.c.bf16 %v2127, %v2126
      %v2137 = vpack.c.bf16 %v2129, %v2128
      %v2138 = vld [vmem:[%s5] sm:$0xf]
      %v2139 = vld [vmem:[%s5 + $0x4] sm:$0xf]
      %v2140 = vld [vmem:[%s5 + $0x8] sm:$0xf]
      %v2141 = vld [vmem:[%s5 + $0xc] sm:$0xf]
      %v2142 = vld [vmem:[%s5 + $0x10] sm:$0xf]
      %v2143 = vld [vmem:[%s5 + $0x14] sm:$0xf]
      %v2144 = vld [vmem:[%s5 + $0x18] sm:$0xf]
      %v2145 = vld [vmem:[%s5 + $0x1c] sm:$0xf]
      %v2146 = vld [vmem:[%s5 + $0x20] sm:$0xf]
      %v2147 = vld [vmem:[%s5 + $0x24] sm:$0xf]
      %v2148 = vld [vmem:[%s5 + $0x28] sm:$0xf]
      %v2149 = vld [vmem:[%s5 + $0x2c] sm:$0xf]
      %v2150 = vld [vmem:[%s5 + $0x30] sm:$0xf]
      %v2151 = vld [vmem:[%s5 + $0x34] sm:$0xf]
      %v2152 = vld [vmem:[%s5 + $0x38] sm:$0xf]
      %v2153 = vld [vmem:[%s5 + $0x3c] sm:$0xf]
      %v2154 = vld [vmem:[%s6] sm:$0x1]
      %v2156 = vperm.slane %v2154, 0
      %v2174 = vunpack.c.l.b16 %v2138
      %v2175 = vunpack.c.l.b16 %v2139
      %v2176 = vunpack.c.l.b16 %v2140
      %v2177 = vunpack.c.l.b16 %v2141
      %v2178 = vunpack.c.l.b16 %v2142
      %v2179 = vunpack.c.l.b16 %v2143
      %v2180 = vunpack.c.l.b16 %v2144
      %v2181 = vunpack.c.l.b16 %v2145
      %v2182 = vunpack.c.l.b16 %v2146
      %v2183 = vunpack.c.l.b16 %v2147
      %v2184 = vunpack.c.l.b16 %v2148
      %v2185 = vunpack.c.l.b16 %v2149
      %v2186 = vunpack.c.l.b16 %v2150
      %v2187 = vunpack.c.l.b16 %v2151
      %v2188 = vunpack.c.l.b16 %v2152
      %v2189 = vunpack.c.l.b16 %v2153
      %v2190 = vpack.c.b16 %v2175, %v2174
      %v2191 = vpack.c.b16 %v2177, %v2176
      %v2192 = vpack.c.b16 %v2179, %v2178
      %v2193 = vpack.c.b16 %v2181, %v2180
      %v2194 = vpack.c.b16 %v2183, %v2182
      %v2195 = vpack.c.b16 %v2185, %v2184
      %v2196 = vpack.c.b16 %v2187, %v2186
      %v2197 = vpack.c.b16 %v2189, %v2188
      %2206 = vmatpush.bf16.msra.mxu0 %v2197
      %2207 = vmatpush.bf16.msra.mxu0 %v2196
      %2208 = vmatpush.bf16.msra.mxu0 %v2195
      %2209 = vmatpush.bf16.msra.mxu0 %v2194
      %2210 = vmatpush.bf16.msra.mxu0 %v2193
      %2211 = vmatpush.bf16.msra.mxu0 %v2192
      %2212 = vmatpush.bf16.msra.mxu0 %v2191
      %2213 = vmatpush.bf16.msra.mxu0 %v2190
      %2214 = vmatmul.bf16.gmra.mxu0 %v2130
      %v2215 = vpop.f32.mrf.mxu0
      %v2216 = vadd.f32 %v2156, %v2215
      %v2217 = vpop.f32.mrf.mxu0
      %v2218 = vadd.f32 %v2156, %v2217
      %2219 = vmatmul.bf16.gmra.mxu0 %v2131
      %v2220 = vpop.f32.mrf.mxu0
      %v2221 = vadd.f32 %v2156, %v2220
      %v2222 = vpop.f32.mrf.mxu0
      %v2223 = vadd.f32 %v2156, %v2222
      %2224 = vmatmul.bf16.gmra.mxu0 %v2132
      %v2225 = vpop.f32.mrf.mxu0
      %v2226 = vadd.f32 %v2156, %v2225
      %v2227 = vpop.f32.mrf.mxu0
      %v2228 = vadd.f32 %v2156, %v2227
      %2229 = vmatmul.bf16.gmra.mxu0 %v2133
      %v2230 = vpop.f32.mrf.mxu0
      %v2231 = vadd.f32 %v2156, %v2230
      %v2232 = vpop.f32.mrf.mxu0
      %v2233 = vadd.f32 %v2156, %v2232
      %2234 = vmatmul.bf16.gmra.mxu0 %v2134
      %v2235 = vpop.f32.mrf.mxu0
      %v2236 = vadd.f32 %v2156, %v2235
      %v2237 = vpop.f32.mrf.mxu0
      %v2238 = vadd.f32 %v2156, %v2237
      %2239 = vmatmul.bf16.gmra.mxu0 %v2135
      %v2240 = vpop.f32.mrf.mxu0
      %v2241 = vadd.f32 %v2156, %v2240
      %v2242 = vpop.f32.mrf.mxu0
      %v2243 = vadd.f32 %v2156, %v2242
      %2244 = vmatmul.bf16.gmra.mxu0 %v2136
      %v2245 = vpop.f32.mrf.mxu0
      %v2246 = vadd.f32 %v2156, %v2245
      %v2247 = vpop.f32.mrf.mxu0
      %v2248 = vadd.f32 %v2156, %v2247
      %2249 = vmatmul.bf16.gmra.mxu0 %v2137
      %v2250 = vpop.f32.mrf.mxu0
      %v2251 = vadd.f32 %v2156, %v2250
      %v2252 = vpop.f32.mrf.mxu0
      %v2253 = vadd.f32 %v2156, %v2252
      %2254 = vdwg.mxu0
      %s2255 = sadd.s32 %s305, 1
      %s2256 = smul.u32 %s2255, 24
      %s2257 = scalar_lea.vmem %s292, %s2256
      %v2258 = vld [vmem:[%s2257] sm:$0xff]
      %v2259 = vld [vmem:[%s2257 + $0x8] sm:$0xff]
      %v2260 = vld [vmem:[%s2257 + $0x10] sm:$0xff]
      %v2261 = vld [vmem:[%s2257 + $0x18] sm:$0xff]
      %v2262 = vld [vmem:[%s2257 + $0x20] sm:$0xff]
      %v2263 = vld [vmem:[%s2257 + $0x28] sm:$0xff]
      %v2264 = vld [vmem:[%s2257 + $0x30] sm:$0xff]
      %v2265 = vld [vmem:[%s2257 + $0x38] sm:$0xff]
      %v2266 = vld [vmem:[%s2257 + $0x40] sm:$0xff]
      %v2267 = vld [vmem:[%s2257 + $0x48] sm:$0xff]
      %v2268 = vld [vmem:[%s2257 + $0x50] sm:$0xff]
      %v2269 = vld [vmem:[%s2257 + $0x58] sm:$0xff]
      %v2270 = vld [vmem:[%s2257 + $0x60] sm:$0xff]
      %v2271 = vld [vmem:[%s2257 + $0x68] sm:$0xff]
      %v2272 = vld [vmem:[%s2257 + $0x70] sm:$0xff]
      %v2273 = vld [vmem:[%s2257 + $0x78] sm:$0xff]
      %v2274 = vld [vmem:[%s2257 + $0x80] sm:$0xff]
      %v2275 = vld [vmem:[%s2257 + $0x88] sm:$0xff]
      %v2276 = vld [vmem:[%s2257 + $0x90] sm:$0xff]
      %v2277 = vld [vmem:[%s2257 + $0x98] sm:$0xff]
      %v2278 = vld [vmem:[%s2257 + $0xa0] sm:$0xff]
      %v2279 = vld [vmem:[%s2257 + $0xa8] sm:$0xff]
      %v2280 = vld [vmem:[%s2257 + $0xb0] sm:$0xff]
      %v2281 = vld [vmem:[%s2257 + $0xb8] sm:$0xff]
      %v2306 = vrot.slane %v2258, 1
      %v2307 = vrot.slane %v2259, 1
      %v2308 = vsel %vm1235, %v2306, %v2307
      %v2309 = vrot.slane %v2260, 1
      %v2310 = vsel %vm1235, %v2307, %v2309
      %v2311 = vrot.slane %v2261, 1
      %v2312 = vrot.slane %v2262, 1
      %v2313 = vsel %vm1235, %v2311, %v2312
      %v2314 = vrot.slane %v2263, 1
      %v2315 = vsel %vm1235, %v2312, %v2314
      %v2316 = vrot.slane %v2264, 1
      %v2317 = vrot.slane %v2265, 1
      %v2318 = vsel %vm1235, %v2316, %v2317
      %v2319 = vrot.slane %v2266, 1
      %v2320 = vsel %vm1235, %v2317, %v2319
      %v2321 = vrot.slane %v2267, 1
      %v2322 = vrot.slane %v2268, 1
      %v2323 = vsel %vm1235, %v2321, %v2322
      %v2324 = vrot.slane %v2269, 1
      %v2325 = vsel %vm1235, %v2322, %v2324
      %v2326 = vrot.slane %v2270, 1
      %v2327 = vrot.slane %v2271, 1
      %v2328 = vsel %vm1235, %v2326, %v2327
      %v2329 = vrot.slane %v2272, 1
      %v2330 = vsel %vm1235, %v2327, %v2329
      %v2331 = vrot.slane %v2273, 1
      %v2332 = vrot.slane %v2274, 1
      %v2333 = vsel %vm1235, %v2331, %v2332
      %v2334 = vrot.slane %v2275, 1
      %v2335 = vsel %vm1235, %v2332, %v2334
      %v2336 = vrot.slane %v2276, 1
      %v2337 = vrot.slane %v2277, 1
      %v2338 = vsel %vm1235, %v2336, %v2337
      %v2339 = vrot.slane %v2278, 1
      %v2340 = vsel %vm1235, %v2337, %v2339
      %v2341 = vrot.slane %v2279, 1
      %v2342 = vrot.slane %v2280, 1
      %v2343 = vsel %vm1235, %v2341, %v2342
      %v2344 = vrot.slane %v2281, 1
      %v2345 = vsel %vm1235, %v2342, %v2344
      %v2362 = vadd.f32 %v2216, %v2308
      %v2363 = vadd.f32 %v2218, %v2310
      %v2364 = vadd.f32 %v2221, %v2313
      %v2365 = vadd.f32 %v2223, %v2315
      %v2366 = vadd.f32 %v2226, %v2318
      %v2367 = vadd.f32 %v2228, %v2320
      %v2368 = vadd.f32 %v2231, %v2323
      %v2369 = vadd.f32 %v2233, %v2325
      %v2370 = vadd.f32 %v2236, %v2328
      %v2371 = vadd.f32 %v2238, %v2330
      %v2372 = vadd.f32 %v2241, %v2333
      %v2373 = vadd.f32 %v2243, %v2335
      %v2374 = vadd.f32 %v2246, %v2338
      %v2375 = vadd.f32 %v2248, %v2340
      %v2376 = vadd.f32 %v2251, %v2343
      %v2377 = vadd.f32 %v2253, %v2345
      %2378 = vst [vmem:[%s302] sm:$0xff] %v2362
      %2379 = vst [vmem:[%s302 + $0x8] sm:$0xff] %v2363
      %2380 = vst [vmem:[%s302 + $0x10] sm:$0xff] %v2364
      %2381 = vst [vmem:[%s302 + $0x18] sm:$0xff] %v2365
      %2382 = vst [vmem:[%s302 + $0x20] sm:$0xff] %v2366
      %2383 = vst [vmem:[%s302 + $0x28] sm:$0xff] %v2367
      %2384 = vst [vmem:[%s302 + $0x30] sm:$0xff] %v2368
      %2385 = vst [vmem:[%s302 + $0x38] sm:$0xff] %v2369
      %2386 = vst [vmem:[%s302 + $0x40] sm:$0xff] %v2370
      %2387 = vst [vmem:[%s302 + $0x48] sm:$0xff] %v2371
      %2388 = vst [vmem:[%s302 + $0x50] sm:$0xff] %v2372
      %2389 = vst [vmem:[%s302 + $0x58] sm:$0xff] %v2373
      %2390 = vst [vmem:[%s302 + $0x60] sm:$0xff] %v2374
      %2391 = vst [vmem:[%s302 + $0x68] sm:$0xff] %v2375
      %2392 = vst [vmem:[%s302 + $0x70] sm:$0xff] %v2376
      %2393 = vst [vmem:[%s302 + $0x78] sm:$0xff] %v2377
      %v2394 = vld [vmem:[%s825] sm:$0xf]
      %v2395 = vld [vmem:[%s825 + $0x4] sm:$0xf]
      %v2396 = vld [vmem:[%s825 + $0x8] sm:$0xf]
      %v2397 = vld [vmem:[%s825 + $0xc] sm:$0xf]
      %v2398 = vld [vmem:[%s825 + $0x10] sm:$0xf]
      %v2399 = vld [vmem:[%s825 + $0x14] sm:$0xf]
      %v2400 = vld [vmem:[%s825 + $0x18] sm:$0xf]
      %v2401 = vld [vmem:[%s825 + $0x1c] sm:$0xf]
      %v2402 = vld [vmem:[%s825 + $0x20] sm:$0xf]
      %v2403 = vld [vmem:[%s825 + $0x24] sm:$0xf]
      %v2404 = vld [vmem:[%s825 + $0x28] sm:$0xf]
      %v2405 = vld [vmem:[%s825 + $0x2c] sm:$0xf]
      %v2406 = vld [vmem:[%s825 + $0x30] sm:$0xf]
      %v2407 = vld [vmem:[%s825 + $0x34] sm:$0xf]
      %v2408 = vld [vmem:[%s825 + $0x38] sm:$0xf]
      %v2409 = vld [vmem:[%s825 + $0x3c] sm:$0xf]
      %v2410 = vld [vmem:[%s825 + $0x40] sm:$0xf]
      %v2411 = vld [vmem:[%s825 + $0x44] sm:$0xf]
      %v2412 = vld [vmem:[%s825 + $0x48] sm:$0xf]
      %v2413 = vld [vmem:[%s825 + $0x4c] sm:$0xf]
      %v2414 = vld [vmem:[%s825 + $0x50] sm:$0xf]
      %v2415 = vld [vmem:[%s825 + $0x54] sm:$0xf]
      %v2416 = vld [vmem:[%s825 + $0x58] sm:$0xf]
      %v2417 = vld [vmem:[%s825 + $0x5c] sm:$0xf]
      %v2418 = vunpack.c.l.bf16 %v2394
      %v2419 = vunpack.c.l.bf16 %v2395
      %v2420 = vunpack.c.l.bf16 %v2396
      %v2421 = vunpack.c.l.bf16 %v2397
      %v2422 = vunpack.c.l.bf16 %v2398
      %v2423 = vunpack.c.l.bf16 %v2399
      %v2424 = vunpack.c.l.bf16 %v2400
      %v2425 = vunpack.c.l.bf16 %v2401
      %v2426 = vunpack.c.l.bf16 %v2402
      %v2427 = vunpack.c.l.bf16 %v2403
      %v2428 = vunpack.c.l.bf16 %v2404
      %v2429 = vunpack.c.l.bf16 %v2405
      %v2430 = vunpack.c.l.bf16 %v2406
      %v2431 = vunpack.c.l.bf16 %v2407
      %v2432 = vunpack.c.l.bf16 %v2408
      %v2433 = vunpack.c.l.bf16 %v2409
      %v2434 = vunpack.c.l.bf16 %v2410
      %v2435 = vunpack.c.l.bf16 %v2411
      %v2436 = vunpack.c.l.bf16 %v2412
      %v2437 = vunpack.c.l.bf16 %v2413
      %v2438 = vunpack.c.l.bf16 %v2414
      %v2439 = vunpack.c.l.bf16 %v2415
      %v2440 = vunpack.c.l.bf16 %v2416
      %v2441 = vunpack.c.l.bf16 %v2417
      %v2442 = vmul.f32 %v2418, %v1153
      %v2443 = vmul.f32 %v2419, %v1153
      %v2444 = vmul.f32 %v2421, %v1153
      %v2445 = vmul.f32 %v2422, %v1153
      %v2446 = vmul.f32 %v2424, %v1153
      %v2447 = vmul.f32 %v2425, %v1153
      %v2448 = vmul.f32 %v2427, %v1153
      %v2449 = vmul.f32 %v2428, %v1153
      %v2450 = vmul.f32 %v2430, %v1153
      %v2451 = vmul.f32 %v2431, %v1153
      %v2452 = vmul.f32 %v2433, %v1153
      %v2453 = vmul.f32 %v2434, %v1153
      %v2454 = vmul.f32 %v2436, %v1153
      %v2455 = vmul.f32 %v2437, %v1153
      %v2456 = vmul.f32 %v2439, %v1153
      %v2457 = vmul.f32 %v2440, %v1153
      %v2458 = vadd.f32 %v2442, 0.0
      %v2459 = vadd.f32 %v2443, 0.0
      %v2460 = vadd.f32 %v2444, 0.0
      %v2461 = vadd.f32 %v2445, 0.0
      %v2462 = vadd.f32 %v2446, 0.0
      %v2463 = vadd.f32 %v2447, 0.0
      %v2464 = vadd.f32 %v2448, 0.0
      %v2465 = vadd.f32 %v2449, 0.0
      %v2466 = vadd.f32 %v2450, 0.0
      %v2467 = vadd.f32 %v2451, 0.0
      %v2468 = vadd.f32 %v2452, 0.0
      %v2469 = vadd.f32 %v2453, 0.0
      %v2470 = vadd.f32 %v2454, 0.0
      %v2471 = vadd.f32 %v2455, 0.0
      %v2472 = vadd.f32 %v2456, 0.0
      %v2473 = vadd.f32 %v2457, 0.0
      %v2474 = vmul.f32 %v2418, %v1186
      %v2475 = vmul.f32 %v2419, %v1186
      %v2476 = vmul.f32 %v2420, %v1186
      %v2477 = vmul.f32 %v2421, %v1186
      %v2478 = vmul.f32 %v2422, %v1186
      %v2479 = vmul.f32 %v2423, %v1186
      %v2480 = vmul.f32 %v2424, %v1186
      %v2481 = vmul.f32 %v2425, %v1186
      %v2482 = vmul.f32 %v2426, %v1186
      %v2483 = vmul.f32 %v2427, %v1186
      %v2484 = vmul.f32 %v2428, %v1186
      %v2485 = vmul.f32 %v2429, %v1186
      %v2486 = vmul.f32 %v2430, %v1186
      %v2487 = vmul.f32 %v2431, %v1186
      %v2488 = vmul.f32 %v2432, %v1186
      %v2489 = vmul.f32 %v2433, %v1186
      %v2490 = vmul.f32 %v2434, %v1186
      %v2491 = vmul.f32 %v2435, %v1186
      %v2492 = vmul.f32 %v2436, %v1186
      %v2493 = vmul.f32 %v2437, %v1186
      %v2494 = vmul.f32 %v2438, %v1186
      %v2495 = vmul.f32 %v2439, %v1186
      %v2496 = vmul.f32 %v2440, %v1186
      %v2497 = vmul.f32 %v2441, %v1186
      %v2522 = vrot.slane %v2474, 1
      %v2523 = vrot.slane %v2475, 1
      %v2524 = vsel %vm1235, %v2522, %v2523
      %v2525 = vrot.slane %v2476, 1
      %v2526 = vsel %vm1235, %v2523, %v2525
      %v2527 = vrot.slane %v2477, 1
      %v2528 = vrot.slane %v2478, 1
      %v2529 = vsel %vm1235, %v2527, %v2528
      %v2530 = vrot.slane %v2479, 1
      %v2531 = vsel %vm1235, %v2528, %v2530
      %v2532 = vrot.slane %v2480, 1
      %v2533 = vrot.slane %v2481, 1
      %v2534 = vsel %vm1235, %v2532, %v2533
      %v2535 = vrot.slane %v2482, 1
      %v2536 = vsel %vm1235, %v2533, %v2535
      %v2537 = vrot.slane %v2483, 1
      %v2538 = vrot.slane %v2484, 1
      %v2539 = vsel %vm1235, %v2537, %v2538
      %v2540 = vrot.slane %v2485, 1
      %v2541 = vsel %vm1235, %v2538, %v2540
      %v2542 = vrot.slane %v2486, 1
      %v2543 = vrot.slane %v2487, 1
      %v2544 = vsel %vm1235, %v2542, %v2543
      %v2545 = vrot.slane %v2488, 1
      %v2546 = vsel %vm1235, %v2543, %v2545
      %v2547 = vrot.slane %v2489, 1
      %v2548 = vrot.slane %v2490, 1
      %v2549 = vsel %vm1235, %v2547, %v2548
      %v2550 = vrot.slane %v2491, 1
      %v2551 = vsel %vm1235, %v2548, %v2550
      %v2552 = vrot.slane %v2492, 1
      %v2553 = vrot.slane %v2493, 1
      %v2554 = vsel %vm1235, %v2552, %v2553
      %v2555 = vrot.slane %v2494, 1
      %v2556 = vsel %vm1235, %v2553, %v2555
      %v2557 = vrot.slane %v2495, 1
      %v2558 = vrot.slane %v2496, 1
      %v2559 = vsel %vm1235, %v2557, %v2558
      %v2560 = vrot.slane %v2497, 1
      %v2561 = vsel %vm1235, %v2558, %v2560
      %v2578 = vadd.f32 %v2458, %v2524
      %v2579 = vadd.f32 %v2459, %v2526
      %v2580 = vadd.f32 %v2460, %v2529
      %v2581 = vadd.f32 %v2461, %v2531
      %v2582 = vadd.f32 %v2462, %v2534
      %v2583 = vadd.f32 %v2463, %v2536
      %v2584 = vadd.f32 %v2464, %v2539
      %v2585 = vadd.f32 %v2465, %v2541
      %v2586 = vadd.f32 %v2466, %v2544
      %v2587 = vadd.f32 %v2467, %v2546
      %v2588 = vadd.f32 %v2468, %v2549
      %v2589 = vadd.f32 %v2469, %v2551
      %v2590 = vadd.f32 %v2470, %v2554
      %v2591 = vadd.f32 %v2471, %v2556
      %v2592 = vadd.f32 %v2472, %v2559
      %v2593 = vadd.f32 %v2473, %v2561
      %v2594 = vmul.f32 %v2418, %v1308
      %v2595 = vmul.f32 %v2419, %v1308
      %v2596 = vmul.f32 %v2420, %v1308
      %v2597 = vmul.f32 %v2421, %v1308
      %v2598 = vmul.f32 %v2422, %v1308
      %v2599 = vmul.f32 %v2423, %v1308
      %v2600 = vmul.f32 %v2424, %v1308
      %v2601 = vmul.f32 %v2425, %v1308
      %v2602 = vmul.f32 %v2426, %v1308
      %v2603 = vmul.f32 %v2427, %v1308
      %v2604 = vmul.f32 %v2428, %v1308
      %v2605 = vmul.f32 %v2429, %v1308
      %v2606 = vmul.f32 %v2430, %v1308
      %v2607 = vmul.f32 %v2431, %v1308
      %v2608 = vmul.f32 %v2432, %v1308
      %v2609 = vmul.f32 %v2433, %v1308
      %v2610 = vmul.f32 %v2434, %v1308
      %v2611 = vmul.f32 %v2435, %v1308
      %v2612 = vmul.f32 %v2436, %v1308
      %v2613 = vmul.f32 %v2437, %v1308
      %v2614 = vmul.f32 %v2438, %v1308
      %v2615 = vmul.f32 %v2439, %v1308
      %v2616 = vmul.f32 %v2440, %v1308
      %v2617 = vmul.f32 %v2441, %v1308
      %v2642 = vrot.slane %v2594, 2
      %v2643 = vrot.slane %v2595, 2
      %v2644 = vsel %vm1357, %v2642, %v2643
      %v2645 = vrot.slane %v2596, 2
      %v2646 = vsel %vm1357, %v2643, %v2645
      %v2647 = vrot.slane %v2597, 2
      %v2648 = vrot.slane %v2598, 2
      %v2649 = vsel %vm1357, %v2647, %v2648
      %v2650 = vrot.slane %v2599, 2
      %v2651 = vsel %vm1357, %v2648, %v2650
      %v2652 = vrot.slane %v2600, 2
      %v2653 = vrot.slane %v2601, 2
      %v2654 = vsel %vm1357, %v2652, %v2653
      %v2655 = vrot.slane %v2602, 2
      %v2656 = vsel %vm1357, %v2653, %v2655
      %v2657 = vrot.slane %v2603, 2
      %v2658 = vrot.slane %v2604, 2
      %v2659 = vsel %vm1357, %v2657, %v2658
      %v2660 = vrot.slane %v2605, 2
      %v2661 = vsel %vm1357, %v2658, %v2660
      %v2662 = vrot.slane %v2606, 2
      %v2663 = vrot.slane %v2607, 2
      %v2664 = vsel %vm1357, %v2662, %v2663
      %v2665 = vrot.slane %v2608, 2
      %v2666 = vsel %vm1357, %v2663, %v2665
      %v2667 = vrot.slane %v2609, 2
      %v2668 = vrot.slane %v2610, 2
      %v2669 = vsel %vm1357, %v2667, %v2668
      %v2670 = vrot.slane %v2611, 2
      %v2671 = vsel %vm1357, %v2668, %v2670
      %v2672 = vrot.slane %v2612, 2
      %v2673 = vrot.slane %v2613, 2
      %v2674 = vsel %vm1357, %v2672, %v2673
      %v2675 = vrot.slane %v2614, 2
      %v2676 = vsel %vm1357, %v2673, %v2675
      %v2677 = vrot.slane %v2615, 2
      %v2678 = vrot.slane %v2616, 2
      %v2679 = vsel %vm1357, %v2677, %v2678
      %v2680 = vrot.slane %v2617, 2
      %v2681 = vsel %vm1357, %v2678, %v2680
      %v2698 = vadd.f32 %v2578, %v2644
      %v2699 = vadd.f32 %v2579, %v2646
      %v2700 = vadd.f32 %v2580, %v2649
      %v2701 = vadd.f32 %v2581, %v2651
      %v2702 = vadd.f32 %v2582, %v2654
      %v2703 = vadd.f32 %v2583, %v2656
      %v2704 = vadd.f32 %v2584, %v2659
      %v2705 = vadd.f32 %v2585, %v2661
      %v2706 = vadd.f32 %v2586, %v2664
      %v2707 = vadd.f32 %v2587, %v2666
      %v2708 = vadd.f32 %v2588, %v2669
      %v2709 = vadd.f32 %v2589, %v2671
      %v2710 = vadd.f32 %v2590, %v2674
      %v2711 = vadd.f32 %v2591, %v2676
      %v2712 = vadd.f32 %v2592, %v2679
      %v2713 = vadd.f32 %v2593, %v2681
      %s2714 = scalar_lea.vmem [#allocation2], 108
      %v2715 = vld [vmem:[%s2714] sm:$0xf]
      %v2716 = vld [vmem:[%s2714 + $0x4] sm:$0xf]
      %v2717 = vld [vmem:[%s2714 + $0x8] sm:$0xf]
      %v2718 = vld [vmem:[%s2714 + $0xc] sm:$0xf]
      %v2719 = vld [vmem:[%s2714 + $0x10] sm:$0xf]
      %v2720 = vld [vmem:[%s2714 + $0x14] sm:$0xf]
      %v2721 = vld [vmem:[%s2714 + $0x18] sm:$0xf]
      %v2722 = vld [vmem:[%s2714 + $0x1c] sm:$0xf]
      %v2723 = vld [vmem:[%s2714 + $0x20] sm:$0xf]
      %v2724 = vld [vmem:[%s2714 + $0x24] sm:$0xf]
      %v2725 = vld [vmem:[%s2714 + $0x28] sm:$0xf]
      %v2726 = vld [vmem:[%s2714 + $0x2c] sm:$0xf]
      %v2727 = vld [vmem:[%s2714 + $0x30] sm:$0xf]
      %v2728 = vld [vmem:[%s2714 + $0x34] sm:$0xf]
      %v2729 = vld [vmem:[%s2714 + $0x38] sm:$0xf]
      %v2730 = vld [vmem:[%s2714 + $0x3c] sm:$0xf]
      %v2731 = vld [vmem:[%s2714 + $0x40] sm:$0xf]
      %v2732 = vld [vmem:[%s2714 + $0x44] sm:$0xf]
      %v2733 = vld [vmem:[%s2714 + $0x48] sm:$0xf]
      %v2734 = vld [vmem:[%s2714 + $0x4c] sm:$0xf]
      %v2735 = vld [vmem:[%s2714 + $0x50] sm:$0xf]
      %v2736 = vld [vmem:[%s2714 + $0x54] sm:$0xf]
      %v2737 = vld [vmem:[%s2714 + $0x58] sm:$0xf]
      %v2738 = vld [vmem:[%s2714 + $0x5c] sm:$0xf]
      %v2739 = vunpack.c.l.bf16 %v2715
      %v2740 = vunpack.c.l.bf16 %v2716
      %v2741 = vunpack.c.l.bf16 %v2717
      %v2742 = vunpack.c.l.bf16 %v2718
      %v2743 = vunpack.c.l.bf16 %v2719
      %v2744 = vunpack.c.l.bf16 %v2720
      %v2745 = vunpack.c.l.bf16 %v2721
      %v2746 = vunpack.c.l.bf16 %v2722
      %v2747 = vunpack.c.l.bf16 %v2723
      %v2748 = vunpack.c.l.bf16 %v2724
      %v2749 = vunpack.c.l.bf16 %v2725
      %v2750 = vunpack.c.l.bf16 %v2726
      %v2751 = vunpack.c.l.bf16 %v2727
      %v2752 = vunpack.c.l.bf16 %v2728
      %v2753 = vunpack.c.l.bf16 %v2729
      %v2754 = vunpack.c.l.bf16 %v2730
      %v2755 = vunpack.c.l.bf16 %v2731
      %v2756 = vunpack.c.l.bf16 %v2732
      %v2757 = vunpack.c.l.bf16 %v2733
      %v2758 = vunpack.c.l.bf16 %v2734
      %v2759 = vunpack.c.l.bf16 %v2735
      %v2760 = vunpack.c.l.bf16 %v2736
      %v2761 = vunpack.c.l.bf16 %v2737
      %v2762 = vunpack.c.l.bf16 %v2738
      %v2763 = vmul.f32 %v2739, %v1479
      %v2764 = vmul.f32 %v2740, %v1479
      %v2765 = vmul.f32 %v2742, %v1479
      %v2766 = vmul.f32 %v2743, %v1479
      %v2767 = vmul.f32 %v2745, %v1479
      %v2768 = vmul.f32 %v2746, %v1479
      %v2769 = vmul.f32 %v2748, %v1479
      %v2770 = vmul.f32 %v2749, %v1479
      %v2771 = vmul.f32 %v2751, %v1479
      %v2772 = vmul.f32 %v2752, %v1479
      %v2773 = vmul.f32 %v2754, %v1479
      %v2774 = vmul.f32 %v2755, %v1479
      %v2775 = vmul.f32 %v2757, %v1479
      %v2776 = vmul.f32 %v2758, %v1479
      %v2777 = vmul.f32 %v2760, %v1479
      %v2778 = vmul.f32 %v2761, %v1479
      %v2779 = vadd.f32 %v2698, %v2763
      %v2780 = vadd.f32 %v2699, %v2764
      %v2781 = vadd.f32 %v2700, %v2765
      %v2782 = vadd.f32 %v2701, %v2766
      %v2783 = vadd.f32 %v2702, %v2767
      %v2784 = vadd.f32 %v2703, %v2768
      %v2785 = vadd.f32 %v2704, %v2769
      %v2786 = vadd.f32 %v2705, %v2770
      %v2787 = vadd.f32 %v2706, %v2771
      %v2788 = vadd.f32 %v2707, %v2772
      %v2789 = vadd.f32 %v2708, %v2773
      %v2790 = vadd.f32 %v2709, %v2774
      %v2791 = vadd.f32 %v2710, %v2775
      %v2792 = vadd.f32 %v2711, %v2776
      %v2793 = vadd.f32 %v2712, %v2777
      %v2794 = vadd.f32 %v2713, %v2778
      %v2795 = vmul.f32 %v2739, %v1512
      %v2796 = vmul.f32 %v2740, %v1512
      %v2797 = vmul.f32 %v2741, %v1512
      %v2798 = vmul.f32 %v2742, %v1512
      %v2799 = vmul.f32 %v2743, %v1512
      %v2800 = vmul.f32 %v2744, %v1512
      %v2801 = vmul.f32 %v2745, %v1512
      %v2802 = vmul.f32 %v2746, %v1512
      %v2803 = vmul.f32 %v2747, %v1512
      %v2804 = vmul.f32 %v2748, %v1512
      %v2805 = vmul.f32 %v2749, %v1512
      %v2806 = vmul.f32 %v2750, %v1512
      %v2807 = vmul.f32 %v2751, %v1512
      %v2808 = vmul.f32 %v2752, %v1512
      %v2809 = vmul.f32 %v2753, %v1512
      %v2810 = vmul.f32 %v2754, %v1512
      %v2811 = vmul.f32 %v2755, %v1512
      %v2812 = vmul.f32 %v2756, %v1512
      %v2813 = vmul.f32 %v2757, %v1512
      %v2814 = vmul.f32 %v2758, %v1512
      %v2815 = vmul.f32 %v2759, %v1512
      %v2816 = vmul.f32 %v2760, %v1512
      %v2817 = vmul.f32 %v2761, %v1512
      %v2818 = vmul.f32 %v2762, %v1512
      %v2843 = vrot.slane %v2795, 1
      %v2844 = vrot.slane %v2796, 1
      %v2845 = vsel %vm1235, %v2843, %v2844
      %v2846 = vrot.slane %v2797, 1
      %v2847 = vsel %vm1235, %v2844, %v2846
      %v2848 = vrot.slane %v2798, 1
      %v2849 = vrot.slane %v2799, 1
      %v2850 = vsel %vm1235, %v2848, %v2849
      %v2851 = vrot.slane %v2800, 1
      %v2852 = vsel %vm1235, %v2849, %v2851
      %v2853 = vrot.slane %v2801, 1
      %v2854 = vrot.slane %v2802, 1
      %v2855 = vsel %vm1235, %v2853, %v2854
      %v2856 = vrot.slane %v2803, 1
      %v2857 = vsel %vm1235, %v2854, %v2856
      %v2858 = vrot.slane %v2804, 1
      %v2859 = vrot.slane %v2805, 1
      %v2860 = vsel %vm1235, %v2858, %v2859
      %v2861 = vrot.slane %v2806, 1
      %v2862 = vsel %vm1235, %v2859, %v2861
      %v2863 = vrot.slane %v2807, 1
      %v2864 = vrot.slane %v2808, 1
      %v2865 = vsel %vm1235, %v2863, %v2864
      %v2866 = vrot.slane %v2809, 1
      %v2867 = vsel %vm1235, %v2864, %v2866
      %v2868 = vrot.slane %v2810, 1
      %v2869 = vrot.slane %v2811, 1
      %v2870 = vsel %vm1235, %v2868, %v2869
      %v2871 = vrot.slane %v2812, 1
      %v2872 = vsel %vm1235, %v2869, %v2871
      %v2873 = vrot.slane %v2813, 1
      %v2874 = vrot.slane %v2814, 1
      %v2875 = vsel %vm1235, %v2873, %v2874
      %v2876 = vrot.slane %v2815, 1
      %v2877 = vsel %vm1235, %v2874, %v2876
      %v2878 = vrot.slane %v2816, 1
      %v2879 = vrot.slane %v2817, 1
      %v2880 = vsel %vm1235, %v2878, %v2879
      %v2881 = vrot.slane %v2818, 1
      %v2882 = vsel %vm1235, %v2879, %v2881
      %v2899 = vadd.f32 %v2779, %v2845
      %v2900 = vadd.f32 %v2780, %v2847
      %v2901 = vadd.f32 %v2781, %v2850
      %v2902 = vadd.f32 %v2782, %v2852
      %v2903 = vadd.f32 %v2783, %v2855
      %v2904 = vadd.f32 %v2784, %v2857
      %v2905 = vadd.f32 %v2785, %v2860
      %v2906 = vadd.f32 %v2786, %v2862
      %v2907 = vadd.f32 %v2787, %v2865
      %v2908 = vadd.f32 %v2788, %v2867
      %v2909 = vadd.f32 %v2789, %v2870
      %v2910 = vadd.f32 %v2790, %v2872
      %v2911 = vadd.f32 %v2791, %v2875
      %v2912 = vadd.f32 %v2792, %v2877
      %v2913 = vadd.f32 %v2793, %v2880
      %v2914 = vadd.f32 %v2794, %v2882
      %v2915 = vmul.f32 %v2739, %v1633
      %v2916 = vmul.f32 %v2740, %v1633
      %v2917 = vmul.f32 %v2741, %v1633
      %v2918 = vmul.f32 %v2742, %v1633
      %v2919 = vmul.f32 %v2743, %v1633
      %v2920 = vmul.f32 %v2744, %v1633
      %v2921 = vmul.f32 %v2745, %v1633
      %v2922 = vmul.f32 %v2746, %v1633
      %v2923 = vmul.f32 %v2747, %v1633
      %v2924 = vmul.f32 %v2748, %v1633
      %v2925 = vmul.f32 %v2749, %v1633
      %v2926 = vmul.f32 %v2750, %v1633
      %v2927 = vmul.f32 %v2751, %v1633
      %v2928 = vmul.f32 %v2752, %v1633
      %v2929 = vmul.f32 %v2753, %v1633
      %v2930 = vmul.f32 %v2754, %v1633
      %v2931 = vmul.f32 %v2755, %v1633
      %v2932 = vmul.f32 %v2756, %v1633
      %v2933 = vmul.f32 %v2757, %v1633
      %v2934 = vmul.f32 %v2758, %v1633
      %v2935 = vmul.f32 %v2759, %v1633
      %v2936 = vmul.f32 %v2760, %v1633
      %v2937 = vmul.f32 %v2761, %v1633
      %v2938 = vmul.f32 %v2762, %v1633
      %v2963 = vrot.slane %v2915, 2
      %v2964 = vrot.slane %v2916, 2
      %v2965 = vsel %vm1357, %v2963, %v2964
      %v2966 = vrot.slane %v2917, 2
      %v2967 = vsel %vm1357, %v2964, %v2966
      %v2968 = vrot.slane %v2918, 2
      %v2969 = vrot.slane %v2919, 2
      %v2970 = vsel %vm1357, %v2968, %v2969
      %v2971 = vrot.slane %v2920, 2
      %v2972 = vsel %vm1357, %v2969, %v2971
      %v2973 = vrot.slane %v2921, 2
      %v2974 = vrot.slane %v2922, 2
      %v2975 = vsel %vm1357, %v2973, %v2974
      %v2976 = vrot.slane %v2923, 2
      %v2977 = vsel %vm1357, %v2974, %v2976
      %v2978 = vrot.slane %v2924, 2
      %v2979 = vrot.slane %v2925, 2
      %v2980 = vsel %vm1357, %v2978, %v2979
      %v2981 = vrot.slane %v2926, 2
      %v2982 = vsel %vm1357, %v2979, %v2981
      %v2983 = vrot.slane %v2927, 2
      %v2984 = vrot.slane %v2928, 2
      %v2985 = vsel %vm1357, %v2983, %v2984
      %v2986 = vrot.slane %v2929, 2
      %v2987 = vsel %vm1357, %v2984, %v2986
      %v2988 = vrot.slane %v2930, 2
      %v2989 = vrot.slane %v2931, 2
      %v2990 = vsel %vm1357, %v2988, %v2989
      %v2991 = vrot.slane %v2932, 2
      %v2992 = vsel %vm1357, %v2989, %v2991
      %v2993 = vrot.slane %v2933, 2
      %v2994 = vrot.slane %v2934, 2
      %v2995 = vsel %vm1357, %v2993, %v2994
      %v2996 = vrot.slane %v2935, 2
      %v2997 = vsel %vm1357, %v2994, %v2996
      %v2998 = vrot.slane %v2936, 2
      %v2999 = vrot.slane %v2937, 2
      %v3000 = vsel %vm1357, %v2998, %v2999
      %v3001 = vrot.slane %v2938, 2
      %v3002 = vsel %vm1357, %v2999, %v3001
      %v3019 = vadd.f32 %v2899, %v2965
      %v3020 = vadd.f32 %v2900, %v2967
      %v3021 = vadd.f32 %v2901, %v2970
      %v3022 = vadd.f32 %v2902, %v2972
      %v3023 = vadd.f32 %v2903, %v2975
      %v3024 = vadd.f32 %v2904, %v2977
      %v3025 = vadd.f32 %v2905, %v2980
      %v3026 = vadd.f32 %v2906, %v2982
      %v3027 = vadd.f32 %v2907, %v2985
      %v3028 = vadd.f32 %v2908, %v2987
      %v3029 = vadd.f32 %v2909, %v2990
      %v3030 = vadd.f32 %v2910, %v2992
      %v3031 = vadd.f32 %v2911, %v2995
      %v3032 = vadd.f32 %v2912, %v2997
      %v3033 = vadd.f32 %v2913, %v3000
      %v3034 = vadd.f32 %v2914, %v3002
      %s3035 = scalar_lea.vmem [#allocation2], 120
      %v3036 = vld [vmem:[%s3035] sm:$0xf]
      %v3037 = vld [vmem:[%s3035 + $0x4] sm:$0xf]
      %v3038 = vld [vmem:[%s3035 + $0x8] sm:$0xf]
      %v3039 = vld [vmem:[%s3035 + $0xc] sm:$0xf]
      %v3040 = vld [vmem:[%s3035 + $0x10] sm:$0xf]
      %v3041 = vld [vmem:[%s3035 + $0x14] sm:$0xf]
      %v3042 = vld [vmem:[%s3035 + $0x18] sm:$0xf]
      %v3043 = vld [vmem:[%s3035 + $0x1c] sm:$0xf]
      %v3044 = vld [vmem:[%s3035 + $0x20] sm:$0xf]
      %v3045 = vld [vmem:[%s3035 + $0x24] sm:$0xf]
      %v3046 = vld [vmem:[%s3035 + $0x28] sm:$0xf]
      %v3047 = vld [vmem:[%s3035 + $0x2c] sm:$0xf]
      %v3048 = vld [vmem:[%s3035 + $0x30] sm:$0xf]
      %v3049 = vld [vmem:[%s3035 + $0x34] sm:$0xf]
      %v3050 = vld [vmem:[%s3035 + $0x38] sm:$0xf]
      %v3051 = vld [vmem:[%s3035 + $0x3c] sm:$0xf]
      %v3052 = vld [vmem:[%s3035 + $0x40] sm:$0xf]
      %v3053 = vld [vmem:[%s3035 + $0x44] sm:$0xf]
      %v3054 = vld [vmem:[%s3035 + $0x48] sm:$0xf]
      %v3055 = vld [vmem:[%s3035 + $0x4c] sm:$0xf]
      %v3056 = vld [vmem:[%s3035 + $0x50] sm:$0xf]
      %v3057 = vld [vmem:[%s3035 + $0x54] sm:$0xf]
      %v3058 = vld [vmem:[%s3035 + $0x58] sm:$0xf]
      %v3059 = vld [vmem:[%s3035 + $0x5c] sm:$0xf]
      %v3060 = vunpack.c.l.bf16 %v3036
      %v3061 = vunpack.c.l.bf16 %v3037
      %v3062 = vunpack.c.l.bf16 %v3038
      %v3063 = vunpack.c.l.bf16 %v3039
      %v3064 = vunpack.c.l.bf16 %v3040
      %v3065 = vunpack.c.l.bf16 %v3041
      %v3066 = vunpack.c.l.bf16 %v3042
      %v3067 = vunpack.c.l.bf16 %v3043
      %v3068 = vunpack.c.l.bf16 %v3044
      %v3069 = vunpack.c.l.bf16 %v3045
      %v3070 = vunpack.c.l.bf16 %v3046
      %v3071 = vunpack.c.l.bf16 %v3047
      %v3072 = vunpack.c.l.bf16 %v3048
      %v3073 = vunpack.c.l.bf16 %v3049
      %v3074 = vunpack.c.l.bf16 %v3050
      %v3075 = vunpack.c.l.bf16 %v3051
      %v3076 = vunpack.c.l.bf16 %v3052
      %v3077 = vunpack.c.l.bf16 %v3053
      %v3078 = vunpack.c.l.bf16 %v3054
      %v3079 = vunpack.c.l.bf16 %v3055
      %v3080 = vunpack.c.l.bf16 %v3056
      %v3081 = vunpack.c.l.bf16 %v3057
      %v3082 = vunpack.c.l.bf16 %v3058
      %v3083 = vunpack.c.l.bf16 %v3059
      %v3084 = vmul.f32 %v3060, %v1803
      %v3085 = vmul.f32 %v3061, %v1803
      %v3086 = vmul.f32 %v3063, %v1803
      %v3087 = vmul.f32 %v3064, %v1803
      %v3088 = vmul.f32 %v3066, %v1803
      %v3089 = vmul.f32 %v3067, %v1803
      %v3090 = vmul.f32 %v3069, %v1803
      %v3091 = vmul.f32 %v3070, %v1803
      %v3092 = vmul.f32 %v3072, %v1803
      %v3093 = vmul.f32 %v3073, %v1803
      %v3094 = vmul.f32 %v3075, %v1803
      %v3095 = vmul.f32 %v3076, %v1803
      %v3096 = vmul.f32 %v3078, %v1803
      %v3097 = vmul.f32 %v3079, %v1803
      %v3098 = vmul.f32 %v3081, %v1803
      %v3099 = vmul.f32 %v3082, %v1803
      %v3100 = vadd.f32 %v3019, %v3084
      %v3101 = vadd.f32 %v3020, %v3085
      %v3102 = vadd.f32 %v3021, %v3086
      %v3103 = vadd.f32 %v3022, %v3087
      %v3104 = vadd.f32 %v3023, %v3088
      %v3105 = vadd.f32 %v3024, %v3089
      %v3106 = vadd.f32 %v3025, %v3090
      %v3107 = vadd.f32 %v3026, %v3091
      %v3108 = vadd.f32 %v3027, %v3092
      %v3109 = vadd.f32 %v3028, %v3093
      %v3110 = vadd.f32 %v3029, %v3094
      %v3111 = vadd.f32 %v3030, %v3095
      %v3112 = vadd.f32 %v3031, %v3096
      %v3113 = vadd.f32 %v3032, %v3097
      %v3114 = vadd.f32 %v3033, %v3098
      %v3115 = vadd.f32 %v3034, %v3099
      %v3116 = vmul.f32 %v3060, %v1836
      %v3117 = vmul.f32 %v3061, %v1836
      %v3118 = vmul.f32 %v3062, %v1836
      %v3119 = vmul.f32 %v3063, %v1836
      %v3120 = vmul.f32 %v3064, %v1836
      %v3121 = vmul.f32 %v3065, %v1836
      %v3122 = vmul.f32 %v3066, %v1836
      %v3123 = vmul.f32 %v3067, %v1836
      %v3124 = vmul.f32 %v3068, %v1836
      %v3125 = vmul.f32 %v3069, %v1836
      %v3126 = vmul.f32 %v3070, %v1836
      %v3127 = vmul.f32 %v3071, %v1836
      %v3128 = vmul.f32 %v3072, %v1836
      %v3129 = vmul.f32 %v3073, %v1836
      %v3130 = vmul.f32 %v3074, %v1836
      %v3131 = vmul.f32 %v3075, %v1836
      %v3132 = vmul.f32 %v3076, %v1836
      %v3133 = vmul.f32 %v3077, %v1836
      %v3134 = vmul.f32 %v3078, %v1836
      %v3135 = vmul.f32 %v3079, %v1836
      %v3136 = vmul.f32 %v3080, %v1836
      %v3137 = vmul.f32 %v3081, %v1836
      %v3138 = vmul.f32 %v3082, %v1836
      %v3139 = vmul.f32 %v3083, %v1836
      %v3164 = vrot.slane %v3116, 1
      %v3165 = vrot.slane %v3117, 1
      %v3166 = vsel %vm1235, %v3164, %v3165
      %v3167 = vrot.slane %v3118, 1
      %v3168 = vsel %vm1235, %v3165, %v3167
      %v3169 = vrot.slane %v3119, 1
      %v3170 = vrot.slane %v3120, 1
      %v3171 = vsel %vm1235, %v3169, %v3170
      %v3172 = vrot.slane %v3121, 1
      %v3173 = vsel %vm1235, %v3170, %v3172
      %v3174 = vrot.slane %v3122, 1
      %v3175 = vrot.slane %v3123, 1
      %v3176 = vsel %vm1235, %v3174, %v3175
      %v3177 = vrot.slane %v3124, 1
      %v3178 = vsel %vm1235, %v3175, %v3177
      %v3179 = vrot.slane %v3125, 1
      %v3180 = vrot.slane %v3126, 1
      %v3181 = vsel %vm1235, %v3179, %v3180
      %v3182 = vrot.slane %v3127, 1
      %v3183 = vsel %vm1235, %v3180, %v3182
      %v3184 = vrot.slane %v3128, 1
      %v3185 = vrot.slane %v3129, 1
      %v3186 = vsel %vm1235, %v3184, %v3185
      %v3187 = vrot.slane %v3130, 1
      %v3188 = vsel %vm1235, %v3185, %v3187
      %v3189 = vrot.slane %v3131, 1
      %v3190 = vrot.slane %v3132, 1
      %v3191 = vsel %vm1235, %v3189, %v3190
      %v3192 = vrot.slane %v3133, 1
      %v3193 = vsel %vm1235, %v3190, %v3192
      %v3194 = vrot.slane %v3134, 1
      %v3195 = vrot.slane %v3135, 1
      %v3196 = vsel %vm1235, %v3194, %v3195
      %v3197 = vrot.slane %v3136, 1
      %v3198 = vsel %vm1235, %v3195, %v3197
      %v3199 = vrot.slane %v3137, 1
      %v3200 = vrot.slane %v3138, 1
      %v3201 = vsel %vm1235, %v3199, %v3200
      %v3202 = vrot.slane %v3139, 1
      %v3203 = vsel %vm1235, %v3200, %v3202
      %v3220 = vadd.f32 %v3100, %v3166
      %v3221 = vadd.f32 %v3101, %v3168
      %v3222 = vadd.f32 %v3102, %v3171
      %v3223 = vadd.f32 %v3103, %v3173
      %v3224 = vadd.f32 %v3104, %v3176
      %v3225 = vadd.f32 %v3105, %v3178
      %v3226 = vadd.f32 %v3106, %v3181
      %v3227 = vadd.f32 %v3107, %v3183
      %v3228 = vadd.f32 %v3108, %v3186
      %v3229 = vadd.f32 %v3109, %v3188
      %v3230 = vadd.f32 %v3110, %v3191
      %v3231 = vadd.f32 %v3111, %v3193
      %v3232 = vadd.f32 %v3112, %v3196
      %v3233 = vadd.f32 %v3113, %v3198
      %v3234 = vadd.f32 %v3114, %v3201
      %v3235 = vadd.f32 %v3115, %v3203
      %v3236 = vmul.f32 %v3060, %v1957
      %v3237 = vmul.f32 %v3061, %v1957
      %v3238 = vmul.f32 %v3062, %v1957
      %v3239 = vmul.f32 %v3063, %v1957
      %v3240 = vmul.f32 %v3064, %v1957
      %v3241 = vmul.f32 %v3065, %v1957
      %v3242 = vmul.f32 %v3066, %v1957
      %v3243 = vmul.f32 %v3067, %v1957
      %v3244 = vmul.f32 %v3068, %v1957
      %v3245 = vmul.f32 %v3069, %v1957
      %v3246 = vmul.f32 %v3070, %v1957
      %v3247 = vmul.f32 %v3071, %v1957
      %v3248 = vmul.f32 %v3072, %v1957
      %v3249 = vmul.f32 %v3073, %v1957
      %v3250 = vmul.f32 %v3074, %v1957
      %v3251 = vmul.f32 %v3075, %v1957
      %v3252 = vmul.f32 %v3076, %v1957
      %v3253 = vmul.f32 %v3077, %v1957
      %v3254 = vmul.f32 %v3078, %v1957
      %v3255 = vmul.f32 %v3079, %v1957
      %v3256 = vmul.f32 %v3080, %v1957
      %v3257 = vmul.f32 %v3081, %v1957
      %v3258 = vmul.f32 %v3082, %v1957
      %v3259 = vmul.f32 %v3083, %v1957
      %v3284 = vrot.slane %v3236, 2
      %v3285 = vrot.slane %v3237, 2
      %v3286 = vsel %vm1357, %v3284, %v3285
      %v3287 = vrot.slane %v3238, 2
      %v3288 = vsel %vm1357, %v3285, %v3287
      %v3289 = vrot.slane %v3239, 2
      %v3290 = vrot.slane %v3240, 2
      %v3291 = vsel %vm1357, %v3289, %v3290
      %v3292 = vrot.slane %v3241, 2
      %v3293 = vsel %vm1357, %v3290, %v3292
      %v3294 = vrot.slane %v3242, 2
      %v3295 = vrot.slane %v3243, 2
      %v3296 = vsel %vm1357, %v3294, %v3295
      %v3297 = vrot.slane %v3244, 2
      %v3298 = vsel %vm1357, %v3295, %v3297
      %v3299 = vrot.slane %v3245, 2
      %v3300 = vrot.slane %v3246, 2
      %v3301 = vsel %vm1357, %v3299, %v3300
      %v3302 = vrot.slane %v3247, 2
      %v3303 = vsel %vm1357, %v3300, %v3302
      %v3304 = vrot.slane %v3248, 2
      %v3305 = vrot.slane %v3249, 2
      %v3306 = vsel %vm1357, %v3304, %v3305
      %v3307 = vrot.slane %v3250, 2
      %v3308 = vsel %vm1357, %v3305, %v3307
      %v3309 = vrot.slane %v3251, 2
      %v3310 = vrot.slane %v3252, 2
      %v3311 = vsel %vm1357, %v3309, %v3310
      %v3312 = vrot.slane %v3253, 2
      %v3313 = vsel %vm1357, %v3310, %v3312
      %v3314 = vrot.slane %v3254, 2
      %v3315 = vrot.slane %v3255, 2
      %v3316 = vsel %vm1357, %v3314, %v3315
      %v3317 = vrot.slane %v3256, 2
      %v3318 = vsel %vm1357, %v3315, %v3317
      %v3319 = vrot.slane %v3257, 2
      %v3320 = vrot.slane %v3258, 2
      %v3321 = vsel %vm1357, %v3319, %v3320
      %v3322 = vrot.slane %v3259, 2
      %v3323 = vsel %vm1357, %v3320, %v3322
      %v3340 = vadd.f32 %v3220, %v3286
      %v3341 = vadd.f32 %v3221, %v3288
      %v3342 = vadd.f32 %v3222, %v3291
      %v3343 = vadd.f32 %v3223, %v3293
      %v3344 = vadd.f32 %v3224, %v3296
      %v3345 = vadd.f32 %v3225, %v3298
      %v3346 = vadd.f32 %v3226, %v3301
      %v3347 = vadd.f32 %v3227, %v3303
      %v3348 = vadd.f32 %v3228, %v3306
      %v3349 = vadd.f32 %v3229, %v3308
      %v3350 = vadd.f32 %v3230, %v3311
      %v3351 = vadd.f32 %v3231, %v3313
      %v3352 = vadd.f32 %v3232, %v3316
      %v3353 = vadd.f32 %v3233, %v3318
      %v3354 = vadd.f32 %v3234, %v3321
      %v3355 = vadd.f32 %v3235, %v3323
      %v3356 = vld [vmem:[%s4] sm:$0x1]
      %v3358 = vperm.slane %v3356, 0
      %v3360 = vadd.f32 %v3340, %v3358
      %v3361 = vadd.f32 %v3341, %v3358
      %v3362 = vadd.f32 %v3342, %v3358
      %v3363 = vadd.f32 %v3343, %v3358
      %v3364 = vadd.f32 %v3344, %v3358
      %v3365 = vadd.f32 %v3345, %v3358
      %v3366 = vadd.f32 %v3346, %v3358
      %v3367 = vadd.f32 %v3347, %v3358
      %v3368 = vadd.f32 %v3348, %v3358
      %v3369 = vadd.f32 %v3349, %v3358
      %v3370 = vadd.f32 %v3350, %v3358
      %v3371 = vadd.f32 %v3351, %v3358
      %v3372 = vadd.f32 %v3352, %v3358
      %v3373 = vadd.f32 %v3353, %v3358
      %v3374 = vadd.f32 %v3354, %v3358
      %v3375 = vadd.f32 %v3355, %v3358
      %v3376 = vmax.f32 %v3360, 0.0
      %v3377 = vmax.f32 %v3361, 0.0
      %v3378 = vmax.f32 %v3362, 0.0
      %v3379 = vmax.f32 %v3363, 0.0
      %v3380 = vmax.f32 %v3364, 0.0
      %v3381 = vmax.f32 %v3365, 0.0
      %v3382 = vmax.f32 %v3366, 0.0
      %v3383 = vmax.f32 %v3367, 0.0
      %v3384 = vmax.f32 %v3368, 0.0
      %v3385 = vmax.f32 %v3369, 0.0
      %v3386 = vmax.f32 %v3370, 0.0
      %v3387 = vmax.f32 %v3371, 0.0
      %v3388 = vmax.f32 %v3372, 0.0
      %v3389 = vmax.f32 %v3373, 0.0
      %v3390 = vmax.f32 %v3374, 0.0
      %v3391 = vmax.f32 %v3375, 0.0
      %v3392 = vmin.f32 %v3376, 6.0
      %v3393 = vmin.f32 %v3377, 6.0
      %v3394 = vmin.f32 %v3378, 6.0
      %v3395 = vmin.f32 %v3379, 6.0
      %v3396 = vmin.f32 %v3380, 6.0
      %v3397 = vmin.f32 %v3381, 6.0
      %v3398 = vmin.f32 %v3382, 6.0
      %v3399 = vmin.f32 %v3383, 6.0
      %v3400 = vmin.f32 %v3384, 6.0
      %v3401 = vmin.f32 %v3385, 6.0
      %v3402 = vmin.f32 %v3386, 6.0
      %v3403 = vmin.f32 %v3387, 6.0
      %v3404 = vmin.f32 %v3388, 6.0
      %v3405 = vmin.f32 %v3389, 6.0
      %v3406 = vmin.f32 %v3390, 6.0
      %v3407 = vmin.f32 %v3391, 6.0
      %v3408 = vpack.c.bf16 %v3393, %v3392
      %v3409 = vpack.c.bf16 %v3395, %v3394
      %v3410 = vpack.c.bf16 %v3397, %v3396
      %v3411 = vpack.c.bf16 %v3399, %v3398
      %v3412 = vpack.c.bf16 %v3401, %v3400
      %v3413 = vpack.c.bf16 %v3403, %v3402
      %v3414 = vpack.c.bf16 %v3405, %v3404
      %v3415 = vpack.c.bf16 %v3407, %v3406
      %v3416 = vld [vmem:[%s5] sm:$0xf]
      %v3417 = vld [vmem:[%s5 + $0x4] sm:$0xf]
      %v3418 = vld [vmem:[%s5 + $0x8] sm:$0xf]
      %v3419 = vld [vmem:[%s5 + $0xc] sm:$0xf]
      %v3420 = vld [vmem:[%s5 + $0x10] sm:$0xf]
      %v3421 = vld [vmem:[%s5 + $0x14] sm:$0xf]
      %v3422 = vld [vmem:[%s5 + $0x18] sm:$0xf]
      %v3423 = vld [vmem:[%s5 + $0x1c] sm:$0xf]
      %v3424 = vld [vmem:[%s5 + $0x20] sm:$0xf]
      %v3425 = vld [vmem:[%s5 + $0x24] sm:$0xf]
      %v3426 = vld [vmem:[%s5 + $0x28] sm:$0xf]
      %v3427 = vld [vmem:[%s5 + $0x2c] sm:$0xf]
      %v3428 = vld [vmem:[%s5 + $0x30] sm:$0xf]
      %v3429 = vld [vmem:[%s5 + $0x34] sm:$0xf]
      %v3430 = vld [vmem:[%s5 + $0x38] sm:$0xf]
      %v3431 = vld [vmem:[%s5 + $0x3c] sm:$0xf]
      %v3432 = vld [vmem:[%s6] sm:$0x1]
      %v3434 = vperm.slane %v3432, 0
      %v3452 = vunpack.c.l.b16 %v3416
      %v3453 = vunpack.c.l.b16 %v3417
      %v3454 = vunpack.c.l.b16 %v3418
      %v3455 = vunpack.c.l.b16 %v3419
      %v3456 = vunpack.c.l.b16 %v3420
      %v3457 = vunpack.c.l.b16 %v3421
      %v3458 = vunpack.c.l.b16 %v3422
      %v3459 = vunpack.c.l.b16 %v3423
      %v3460 = vunpack.c.l.b16 %v3424
      %v3461 = vunpack.c.l.b16 %v3425
      %v3462 = vunpack.c.l.b16 %v3426
      %v3463 = vunpack.c.l.b16 %v3427
      %v3464 = vunpack.c.l.b16 %v3428
      %v3465 = vunpack.c.l.b16 %v3429
      %v3466 = vunpack.c.l.b16 %v3430
      %v3467 = vunpack.c.l.b16 %v3431
      %v3468 = vpack.c.b16 %v3453, %v3452
      %v3469 = vpack.c.b16 %v3455, %v3454
      %v3470 = vpack.c.b16 %v3457, %v3456
      %v3471 = vpack.c.b16 %v3459, %v3458
      %v3472 = vpack.c.b16 %v3461, %v3460
      %v3473 = vpack.c.b16 %v3463, %v3462
      %v3474 = vpack.c.b16 %v3465, %v3464
      %v3475 = vpack.c.b16 %v3467, %v3466
      %3484 = vmatpush.bf16.msra.mxu0 %v3475
      %3485 = vmatpush.bf16.msra.mxu0 %v3474
      %3486 = vmatpush.bf16.msra.mxu0 %v3473
      %3487 = vmatpush.bf16.msra.mxu0 %v3472
      %3488 = vmatpush.bf16.msra.mxu0 %v3471
      %3489 = vmatpush.bf16.msra.mxu0 %v3470
      %3490 = vmatpush.bf16.msra.mxu0 %v3469
      %3491 = vmatpush.bf16.msra.mxu0 %v3468
      %3492 = vmatmul.bf16.gmra.mxu0 %v3408
      %v3493 = vpop.f32.mrf.mxu0
      %v3494 = vadd.f32 %v3434, %v3493
      %v3495 = vpop.f32.mrf.mxu0
      %v3496 = vadd.f32 %v3434, %v3495
      %3497 = vmatmul.bf16.gmra.mxu0 %v3409
      %v3498 = vpop.f32.mrf.mxu0
      %v3499 = vadd.f32 %v3434, %v3498
      %v3500 = vpop.f32.mrf.mxu0
      %v3501 = vadd.f32 %v3434, %v3500
      %3502 = vmatmul.bf16.gmra.mxu0 %v3410
      %v3503 = vpop.f32.mrf.mxu0
      %v3504 = vadd.f32 %v3434, %v3503
      %v3505 = vpop.f32.mrf.mxu0
      %v3506 = vadd.f32 %v3434, %v3505
      %3507 = vmatmul.bf16.gmra.mxu0 %v3411
      %v3508 = vpop.f32.mrf.mxu0
      %v3509 = vadd.f32 %v3434, %v3508
      %v3510 = vpop.f32.mrf.mxu0
      %v3511 = vadd.f32 %v3434, %v3510
      %3512 = vmatmul.bf16.gmra.mxu0 %v3412
      %v3513 = vpop.f32.mrf.mxu0
      %v3514 = vadd.f32 %v3434, %v3513
      %v3515 = vpop.f32.mrf.mxu0
      %v3516 = vadd.f32 %v3434, %v3515
      %3517 = vmatmul.bf16.gmra.mxu0 %v3413
      %v3518 = vpop.f32.mrf.mxu0
      %v3519 = vadd.f32 %v3434, %v3518
      %v3520 = vpop.f32.mrf.mxu0
      %v3521 = vadd.f32 %v3434, %v3520
      %3522 = vmatmul.bf16.gmra.mxu0 %v3414
      %v3523 = vpop.f32.mrf.mxu0
      %v3524 = vadd.f32 %v3434, %v3523
      %v3525 = vpop.f32.mrf.mxu0
      %v3526 = vadd.f32 %v3434, %v3525
      %3527 = vmatmul.bf16.gmra.mxu0 %v3415
      %v3528 = vpop.f32.mrf.mxu0
      %v3529 = vadd.f32 %v3434, %v3528
      %v3530 = vpop.f32.mrf.mxu0
      %v3531 = vadd.f32 %v3434, %v3530
      %3532 = vdwg.mxu0
      %s3533 = sadd.s32 %s305, 9
      %s3534 = smul.u32 %s3533, 24
      %s3535 = scalar_lea.vmem %s292, %s3534
      %v3536 = vld [vmem:[%s3535] sm:$0xff]
      %v3537 = vld [vmem:[%s3535 + $0x8] sm:$0xff]
      %v3538 = vld [vmem:[%s3535 + $0x10] sm:$0xff]
      %v3539 = vld [vmem:[%s3535 + $0x18] sm:$0xff]
      %v3540 = vld [vmem:[%s3535 + $0x20] sm:$0xff]
      %v3541 = vld [vmem:[%s3535 + $0x28] sm:$0xff]
      %v3542 = vld [vmem:[%s3535 + $0x30] sm:$0xff]
      %v3543 = vld [vmem:[%s3535 + $0x38] sm:$0xff]
      %v3544 = vld [vmem:[%s3535 + $0x40] sm:$0xff]
      %v3545 = vld [vmem:[%s3535 + $0x48] sm:$0xff]
      %v3546 = vld [vmem:[%s3535 + $0x50] sm:$0xff]
      %v3547 = vld [vmem:[%s3535 + $0x58] sm:$0xff]
      %v3548 = vld [vmem:[%s3535 + $0x60] sm:$0xff]
      %v3549 = vld [vmem:[%s3535 + $0x68] sm:$0xff]
      %v3550 = vld [vmem:[%s3535 + $0x70] sm:$0xff]
      %v3551 = vld [vmem:[%s3535 + $0x78] sm:$0xff]
      %v3552 = vld [vmem:[%s3535 + $0x80] sm:$0xff]
      %v3553 = vld [vmem:[%s3535 + $0x88] sm:$0xff]
      %v3554 = vld [vmem:[%s3535 + $0x90] sm:$0xff]
      %v3555 = vld [vmem:[%s3535 + $0x98] sm:$0xff]
      %v3556 = vld [vmem:[%s3535 + $0xa0] sm:$0xff]
      %v3557 = vld [vmem:[%s3535 + $0xa8] sm:$0xff]
      %v3558 = vld [vmem:[%s3535 + $0xb0] sm:$0xff]
      %v3559 = vld [vmem:[%s3535 + $0xb8] sm:$0xff]
      %v3584 = vrot.slane %v3536, 1
      %v3585 = vrot.slane %v3537, 1
      %v3586 = vsel %vm1235, %v3584, %v3585
      %v3587 = vrot.slane %v3538, 1
      %v3588 = vsel %vm1235, %v3585, %v3587
      %v3589 = vrot.slane %v3539, 1
      %v3590 = vrot.slane %v3540, 1
      %v3591 = vsel %vm1235, %v3589, %v3590
      %v3592 = vrot.slane %v3541, 1
      %v3593 = vsel %vm1235, %v3590, %v3592
      %v3594 = vrot.slane %v3542, 1
      %v3595 = vrot.slane %v3543, 1
      %v3596 = vsel %vm1235, %v3594, %v3595
      %v3597 = vrot.slane %v3544, 1
      %v3598 = vsel %vm1235, %v3595, %v3597
      %v3599 = vrot.slane %v3545, 1
      %v3600 = vrot.slane %v3546, 1
      %v3601 = vsel %vm1235, %v3599, %v3600
      %v3602 = vrot.slane %v3547, 1
      %v3603 = vsel %vm1235, %v3600, %v3602
      %v3604 = vrot.slane %v3548, 1
      %v3605 = vrot.slane %v3549, 1
      %v3606 = vsel %vm1235, %v3604, %v3605
      %v3607 = vrot.slane %v3550, 1
      %v3608 = vsel %vm1235, %v3605, %v3607
      %v3609 = vrot.slane %v3551, 1
      %v3610 = vrot.slane %v3552, 1
      %v3611 = vsel %vm1235, %v3609, %v3610
      %v3612 = vrot.slane %v3553, 1
      %v3613 = vsel %vm1235, %v3610, %v3612
      %v3614 = vrot.slane %v3554, 1
      %v3615 = vrot.slane %v3555, 1
      %v3616 = vsel %vm1235, %v3614, %v3615
      %v3617 = vrot.slane %v3556, 1
      %v3618 = vsel %vm1235, %v3615, %v3617
      %v3619 = vrot.slane %v3557, 1
      %v3620 = vrot.slane %v3558, 1
      %v3621 = vsel %vm1235, %v3619, %v3620
      %v3622 = vrot.slane %v3559, 1
      %v3623 = vsel %vm1235, %v3620, %v3622
      %v3640 = vadd.f32 %v3494, %v3586
      %v3641 = vadd.f32 %v3496, %v3588
      %v3642 = vadd.f32 %v3499, %v3591
      %v3643 = vadd.f32 %v3501, %v3593
      %v3644 = vadd.f32 %v3504, %v3596
      %v3645 = vadd.f32 %v3506, %v3598
      %v3646 = vadd.f32 %v3509, %v3601
      %v3647 = vadd.f32 %v3511, %v3603
      %v3648 = vadd.f32 %v3514, %v3606
      %v3649 = vadd.f32 %v3516, %v3608
      %v3650 = vadd.f32 %v3519, %v3611
      %v3651 = vadd.f32 %v3521, %v3613
      %v3652 = vadd.f32 %v3524, %v3616
      %v3653 = vadd.f32 %v3526, %v3618
      %v3654 = vadd.f32 %v3529, %v3621
      %v3655 = vadd.f32 %v3531, %v3623
      %s3656 = scalar_lea.vmem %s302, 128
      %3657 = vst [vmem:[%s3656] sm:$0xff] %v3640
      %3658 = vst [vmem:[%s3656 + $0x8] sm:$0xff] %v3641
      %3659 = vst [vmem:[%s3656 + $0x10] sm:$0xff] %v3642
      %3660 = vst [vmem:[%s3656 + $0x18] sm:$0xff] %v3643
      %3661 = vst [vmem:[%s3656 + $0x20] sm:$0xff] %v3644
      %3662 = vst [vmem:[%s3656 + $0x28] sm:$0xff] %v3645
      %3663 = vst [vmem:[%s3656 + $0x30] sm:$0xff] %v3646
      %3664 = vst [vmem:[%s3656 + $0x38] sm:$0xff] %v3647
      %3665 = vst [vmem:[%s3656 + $0x40] sm:$0xff] %v3648
      %3666 = vst [vmem:[%s3656 + $0x48] sm:$0xff] %v3649
      %3667 = vst [vmem:[%s3656 + $0x50] sm:$0xff] %v3650
      %3668 = vst [vmem:[%s3656 + $0x58] sm:$0xff] %v3651
      %3669 = vst [vmem:[%s3656 + $0x60] sm:$0xff] %v3652
      %3670 = vst [vmem:[%s3656 + $0x68] sm:$0xff] %v3653
      %3671 = vst [vmem:[%s3656 + $0x70] sm:$0xff] %v3654
      %3672 = vst [vmem:[%s3656 + $0x78] sm:$0xff] %v3655
      %s3673 = smul.u32 16, %s23
      %p3674 = scmp.lt.s32.totalorder %s22, 1
      %s3675 = scalar_select %p3674, %s22, 1
      %p3676 = scmp.lt.s32.totalorder %s3673, 15
      %s3677 = scalar_select %p3676, %s3673, 15
      %s3678 = smul.addr %s3677, 2
      %s3679 = smul.addr %s3675, 32
      %s3680 = sadd.s32 %s3678, %s3679
      %s3681 = smul.addr %s3680, 8
      %s3682 = scalar_lea.vmem %s7, %s3681
      // Predicated region
      $region53: #{inverted_residual.1} parent=47 // pred_check
        %p3683 = pneg %p202
      $region54: #{inverted_residual.1} parent=47 // pred_check_branch
        %3685 = sbr.rel (%p3683) target = $region56
      $region55: #{inverted_residual.1} parent=47 // pred_region
        %s3686 = smul.u32 16, %s23
      $region56: #{inverted_residual.1} parent=47 // pred_fallthru
        _
    $region48: #{inverted_residual.1} parent=5 // pred_fallthru
      _
    %p3687 = scmp.le.s32.totalorder 2, %s13
    // Predicated region
    $region57: #{inverted_residual.1} parent=5 // pred_check
      %p3688 = pneg %p3687
    $region58: #{inverted_residual.1} parent=5 // pred_check_branch
      %3690 = sbr.rel (%p3688) target = $region60
    $region59: #{inverted_residual.1} parent=5 // pred_region
      %s3691 = ssub.s32 %s13, 2
      // Predicated region
      $region61: #{inverted_residual.1} parent=59 // pred_check
        %p3692 = pneg %p208
      $region62: #{inverted_residual.1} parent=59 // pred_check_branch
        %3694 = sbr.rel (%p3692) target = $region64
      $region63: #{inverted_residual.1} parent=59 // pred_region
        %s3695 = smul.u32 16, %s25
        %p3696 = scmp.lt.s32.totalorder %s24, 1
        %s3697 = scalar_select %p3696, %s24, 1
        %p3698 = scmp.lt.s32.totalorder %s3695, 15
        %s3699 = scalar_select %p3698, %s3695, 15
        %s3700 = smul.addr %s3699, 2
        %s3701 = smul.addr %s3697, 32
        %s3702 = sadd.s32 %s3700, %s3701
        %s3703 = smul.addr %s3702, 8
        %s3704 = scalar_lea.vmem %s7, %s3703
      $region64: #{inverted_residual.1} parent=59 // pred_fallthru
        _
    $region60: #{inverted_residual.1} parent=5 // pred_fallthru
      _
  $region6: #{inverted_residual.1} parent=0 // loop_footer
    %s17 = sadd.s32 1, %s13
  $region7: #{inverted_residual.1} parent=0 // loop_footer_branch
    %12 = sbr.rel target = $region3
  $region8: #{inverted_residual.1} parent=0 // loop_exit
    _

</llo_original>
